<compile_context>
chip_gen: v7x
topology: tpu7x:2x2x1
jax: 0.10.0
libtpu: 0.0.40
codegen_flags: <defaults>
</compile_context>

<pallas_src>
import functools

import jax
import jax.numpy as jnp
from jax.experimental import pallas as pl
from jax.experimental.pallas import tpu as pltpu


# ----------------------------------------------------------------------------
# Fused kernel: num_layers LSTM layers + Linear classifier, all in VMEM.
# Ref order: x, [wih_t, whh_t, bias] * L, cls_w_t, cls_b   (inputs)
#            logits, h_n, c_n                              (outputs)
#            y_scr                                         (scratch)
# ----------------------------------------------------------------------------
def _fused_lstm_cls_kernel(num_layers, hidden, x_ref, *refs):
    n_w = 3 * num_layers + 2
    w_refs = refs[:n_w]
    logits_ref, h_n_ref, c_n_ref, y_scr = refs[n_w:]

    H = hidden
    B, T, D = x_ref.shape

    # Batch-major flat rows (b, t): matches PyTorch batch_first .view(-1, H).
    cur_flat = x_ref[...].reshape(B * T, D)

    for layer in range(num_layers):
        wih = w_refs[3 * layer + 0][...]       # (D_in, 4H)  == W_ih^T
        whh = w_refs[3 * layer + 1][...]       # (H,   4H)  == W_hh^T
        bias = w_refs[3 * layer + 2][...]      # (1,   4H)  == b_ih + b_hh

        # Hoisted input projection: one matmul for all T timesteps.
        gx = (jnp.dot(cur_flat, wih, preferred_element_type=jnp.float32)
              + bias).reshape(B, T, 4 * H)

        h = jnp.zeros((B, H), jnp.float32)
        c = jnp.zeros((B, H), jnp.float32)
        for t in range(T):                     # static unroll; T is small
            gates = gx[:, t, :] + jnp.dot(
                h, whh, preferred_element_type=jnp.float32)   # (B, 4H)
            sig = jax.nn.sigmoid(gates)        # one EUP pass -> i, f, o gates
            i_g = sig[:, 0 * H:1 * H]
            f_g = sig[:, 1 * H:2 * H]
            o_g = sig[:, 3 * H:4 * H]
            g_g = jnp.tanh(gates[:, 2 * H:3 * H])
            c = f_g * c + i_g * g_g
            h = o_g * jnp.tanh(c)
            y_scr[:, t, :] = h                 # VMEM scratch, static slice

        h_n_ref[layer] = h                     # final state only, once/layer
        c_n_ref[layer] = c
        # TODO(synk): nn.LSTM dropout=0.5 between layers applies only in
        # training mode; eval semantics (no dropout) implemented here.
        cur_flat = y_scr[...].reshape(B * T, H)

    cls_w = w_refs[n_w - 2][...]               # (H, out)
    cls_b = w_refs[n_w - 1][...]               # (1, out)
    logits_ref[...] = (jnp.dot(cur_flat, cls_w,
                               preferred_element_type=jnp.float32)
                       + cls_b).astype(logits_ref.dtype)


# ----------------------------------------------------------------------------
# Wrapper (mirrors MyModel.forward)
# ----------------------------------------------------------------------------
def _flatten_params(params):
    flat = []
    for lp in params["layers"]:
        four_h = lp["w_ih"].shape[0]
        flat.append(jnp.transpose(lp["w_ih"]))                 # (D_in, 4H)
        flat.append(jnp.transpose(lp["w_hh"]))                 # (H, 4H)
        flat.append((lp["b_ih"] + lp["b_hh"]).reshape(1, four_h))
    flat.append(jnp.transpose(params["cls_w"]))                # (H, out)
    flat.append(params["cls_b"].reshape(1, -1))                # (1, out)
    return flat


@functools.partial(jax.jit, static_argnames=("hidden",))
def my_model_forward(params, x, hidden):
    # x: (B, T, input_size), h0 = c0 = zeros (handled inside the kernel).
    B, T, D = x.shape
    L = len(params["layers"])
    H = hidden
    out_dim = params["cls_w"].shape[0]
    flat_w = _flatten_params(params)

    kernel = functools.partial(_fused_lstm_cls_kernel, L, H)
    logits, h_n, c_n = pl.pallas_call(
        kernel,
        out_shape=(jax.ShapeDtypeStruct((B * T, out_dim), jnp.float32),
                   jax.ShapeDtypeStruct((L, B, H), jnp.float32),
                   jax.ShapeDtypeStruct((L, B, H), jnp.float32)),
        scratch_shapes=[pltpu.VMEM((B, T, H), jnp.float32)],
    )(x, *flat_w)
    return logits, (h_n, c_n)


# ----------------------------------------------------------------------------
# Parameter init (PyTorch nn.LSTM / nn.Linear layouts)
# ----------------------------------------------------------------------------
def init_params(key, input_size, hidden, num_layers):
    params = {"layers": []}
    k = 1.0 / jnp.sqrt(hidden)
    for layer in range(num_layers):
        d_in = input_size if layer == 0 else hidden
        key, *ks = jax.random.split(key, 5)
        params["layers"].append({
            "w_ih": jax.random.uniform(ks[0], (4 * hidden, d_in), jnp.float32, -k, k),
            "w_hh": jax.random.uniform(ks[1], (4 * hidden, hidden), jnp.float32, -k, k),
            "b_ih": jax.random.uniform(ks[2], (4 * hidden,), jnp.float32, -k, k),
            "b_hh": jax.random.uniform(ks[3], (4 * hidden,), jnp.float32, -k, k),
        })
    key, k1, k2 = jax.random.split(key, 3)
    kc = 1.0 / jnp.sqrt(hidden)
    params["cls_w"] = jax.random.uniform(k1, (input_size, hidden), jnp.float32, -kc, kc)
    params["cls_b"] = jax.random.uniform(k2, (input_size,), jnp.float32, -kc, kc)
    return params


# ----------------------------------------------------------------------------
# Pure-JAX reference (for correctness check)
# ----------------------------------------------------------------------------
def _lstm_ref(params, x, hidden):
    B, T, D = x.shape
    cur = x
    h_ns, c_ns = [], []
    for lp in params["layers"]:
        h = jnp.zeros((B, hidden), jnp.float32)
        c = jnp.zeros((B, hidden), jnp.float32)
        ys = []
        for t in range(T):
            g = cur[:, t, :] @ lp["w_ih"].T + lp["b_ih"] + h @ lp["w_hh"].T + lp["b_hh"]
            i_g = jax.nn.sigmoid(g[:, 0 * hidden:1 * hidden])
            f_g = jax.nn.sigmoid(g[:, 1 * hidden:2 * hidden])
            g_g = jnp.tanh(g[:, 2 * hidden:3 * hidden])
            o_g = jax.nn.sigmoid(g[:, 3 * hidden:4 * hidden])
            c = f_g * c + i_g * g_g
            h = o_g * jnp.tanh(c)
            ys.append(h)
        cur = jnp.stack(ys, axis=1)
        h_ns.append(h)
        c_ns.append(c)
    flat = cur.reshape(-1, hidden)
    logits = flat @ params["cls_w"].T + params["cls_b"]
    return logits, (jnp.stack(h_ns, 0), jnp.stack(c_ns, 0))


if __name__ == "__main__":
    INPUT_SIZE = 16
    HIDDEN = 32
    NUM_LAYERS = 2
    B, T = 2, 8

    key = jax.random.PRNGKey(0)
    kp, kx = jax.random.split(key)
    params = init_params(kp, INPUT_SIZE, HIDDEN, NUM_LAYERS)
    x = jax.random.normal(kx, (B, T, INPUT_SIZE), jnp.float32)

    logits, (h_n, c_n) = my_model_forward(params, x, hidden=HIDDEN)
    jax.block_until_ready((logits, h_n, c_n))

    ref_logits, (ref_h, ref_c) = _lstm_ref(params, x, HIDDEN)
    assert logits.shape == (B * T, INPUT_SIZE)
    assert h_n.shape == (NUM_LAYERS, B, HIDDEN) and c_n.shape == (NUM_LAYERS, B, HIDDEN)
    assert jnp.allclose(logits, ref_logits, atol=1e-4, rtol=1e-4)
    assert jnp.allclose(h_n, ref_h, atol=1e-4, rtol=1e-4)
    assert jnp.allclose(c_n, ref_c, atol=1e-4, rtol=1e-4)

    print("KERNEL_OK")
</pallas_src>

<mosaic_0001>
module attributes {stable_mosaic.version = 11 : i64} {
  func.func @_fused_lstm_cls_kernel(%arg0: memref<2x8x16xf32, #tpu.memory_space<vmem>>, %arg1: memref<16x128xf32, #tpu.memory_space<vmem>>, %arg2: memref<32x128xf32, #tpu.memory_space<vmem>>, %arg3: memref<1x128xf32, #tpu.memory_space<vmem>>, %arg4: memref<32x128xf32, #tpu.memory_space<vmem>>, %arg5: memref<32x128xf32, #tpu.memory_space<vmem>>, %arg6: memref<1x128xf32, #tpu.memory_space<vmem>>, %arg7: memref<32x16xf32, #tpu.memory_space<vmem>>, %arg8: memref<1x16xf32, #tpu.memory_space<vmem>>, %arg9: memref<16x16xf32, #tpu.memory_space<vmem>>, %arg10: memref<2x2x32xf32, #tpu.memory_space<vmem>>, %arg11: memref<2x2x32xf32, #tpu.memory_space<vmem>>, %arg12: memref<2x8x32xf32, #tpu.memory_space<vmem>>) attributes {dimension_semantics = [], scalar_prefetch = 0 : i64, scratch_operands = 1 : i64, tpu.core_type = #tpu.core_type<tc>} {
    %c0 = arith.constant 0 : index
    %c0_0 = arith.constant 0 : index
    %c0_1 = arith.constant 0 : index
    %0 = vector.load %arg0[%c0, %c0_0, %c0_1] : memref<2x8x16xf32, #tpu.memory_space<vmem>>, vector<2x8x16xf32>
    %1 = vector.shape_cast %0 : vector<2x8x16xf32> to vector<16x16xf32>
    %c0_2 = arith.constant 0 : index
    %c0_3 = arith.constant 0 : index
    %2 = vector.load %arg1[%c0_2, %c0_3] : memref<16x128xf32, #tpu.memory_space<vmem>>, vector<16x128xf32>
    %c0_4 = arith.constant 0 : index
    %c0_5 = arith.constant 0 : index
    %3 = vector.load %arg2[%c0_4, %c0_5] : memref<32x128xf32, #tpu.memory_space<vmem>>, vector<32x128xf32>
    %c0_6 = arith.constant 0 : index
    %c0_7 = arith.constant 0 : index
    %4 = vector.load %arg3[%c0_6, %c0_7] : memref<1x128xf32, #tpu.memory_space<vmem>>, vector<1x128xf32>
    %cst = arith.constant dense<0.000000e+00> : vector<16x128xf32>
    %5 = tpu.matmul %1, %2, %cst {dimension_numbers = #tpu.dot_dimension_numbers<[1], [0], [0], [1], [0, 0, 1, 1], [], []>} : vector<16x16xf32>, vector<16x128xf32>, vector<16x128xf32> -> vector<16x128xf32>
    %6 = vector.broadcast %4 : vector<1x128xf32> to vector<16x128xf32>
    %7 = arith.addf %5, %6 : vector<16x128xf32>
    %8 = vector.shape_cast %7 : vector<16x128xf32> to vector<2x8x128xf32>
    %cst_8 = arith.constant 0.000000e+00 : f32
    %9 = vector.broadcast %cst_8 : f32 to vector<2x32xf32>
    %cst_9 = arith.constant 0.000000e+00 : f32
    %10 = vector.broadcast %cst_9 : f32 to vector<2x32xf32>
    %11 = vector.extract_strided_slice %8 {offsets = [0, 0, 0], sizes = [2, 1, 128], strides = [1, 1, 1]} : vector<2x8x128xf32> to vector<2x1x128xf32>
    %12 = vector.shape_cast %11 : vector<2x1x128xf32> to vector<2x128xf32>
    %cst_10 = arith.constant dense<0.000000e+00> : vector<2x128xf32>
    %13 = tpu.matmul %9, %3, %cst_10 {dimension_numbers = #tpu.dot_dimension_numbers<[1], [0], [0], [1], [0, 0, 1, 1], [], []>} : vector<2x32xf32>, vector<32x128xf32>, vector<2x128xf32> -> vector<2x128xf32>
    %14 = arith.addf %12, %13 : vector<2x128xf32>
    %15 = arith.negf %14 : vector<2x128xf32>
    %16 = math.exp %15 : vector<2x128xf32>
    %cst_11 = arith.constant 1.000000e+00 : f32
    %17 = vector.broadcast %cst_11 : f32 to vector<2x128xf32>
    %18 = arith.addf %17, %16 : vector<2x128xf32>
    %19 = arith.divf %17, %18 : vector<2x128xf32>
    %20 = vector.extract_strided_slice %19 {offsets = [0, 0], sizes = [2, 32], strides = [1, 1]} : vector<2x128xf32> to vector<2x32xf32>
    %21 = vector.extract_strided_slice %19 {offsets = [0, 32], sizes = [2, 32], strides = [1, 1]} : vector<2x128xf32> to vector<2x32xf32>
    %22 = vector.extract_strided_slice %19 {offsets = [0, 96], sizes = [2, 32], strides = [1, 1]} : vector<2x128xf32> to vector<2x32xf32>
    %23 = vector.extract_strided_slice %14 {offsets = [0, 64], sizes = [2, 32], strides = [1, 1]} : vector<2x128xf32> to vector<2x32xf32>
    %24 = math.tanh %23 : vector<2x32xf32>
    %25 = arith.mulf %21, %10 : vector<2x32xf32>
    %26 = arith.mulf %20, %24 : vector<2x32xf32>
    %27 = arith.addf %25, %26 : vector<2x32xf32>
    %28 = math.tanh %27 : vector<2x32xf32>
    %29 = arith.mulf %22, %28 : vector<2x32xf32>
    %c0_12 = arith.constant 0 : index
    %c0_13 = arith.constant 0 : index
    %c0_14 = arith.constant 0 : index
    %30 = vector.load %arg12[%c0_12, %c0_13, %c0_14] : memref<2x8x32xf32, #tpu.memory_space<vmem>>, vector<2x1x32xf32>
    %31 = vector.shape_cast %30 : vector<2x1x32xf32> to vector<2x32xf32>
    %32 = vector.shape_cast %29 : vector<2x32xf32> to vector<2x1x32xf32>
    tpu.vector_store %arg12[%c0_12, %c0_13, %c0_14], %32 {strides = array<i32>} : memref<2x8x32xf32, #tpu.memory_space<vmem>>, vector<2x1x32xf32>,
    %33 = vector.extract_strided_slice %8 {offsets = [0, 1, 0], sizes = [2, 1, 128], strides = [1, 1, 1]} : vector<2x8x128xf32> to vector<2x1x128xf32>
    %34 = vector.shape_cast %33 : vector<2x1x128xf32> to vector<2x128xf32>
    %cst_15 = arith.constant dense<0.000000e+00> : vector<2x128xf32>
    %35 = tpu.matmul %29, %3, %cst_15 {dimension_numbers = #tpu.dot_dimension_numbers<[1], [0], [0], [1], [0, 0, 1, 1], [], []>} : vector<2x32xf32>, vector<32x128xf32>, vector<2x128xf32> -> vector<2x128xf32>
    %36 = arith.addf %34, %35 : vector<2x128xf32>
    %37 = arith.negf %36 : vector<2x128xf32>
    %38 = math.exp %37 : vector<2x128xf32>
    %cst_16 = arith.constant 1.000000e+00 : f32
    %39 = vector.broadcast %cst_16 : f32 to vector<2x128xf32>
    %40 = arith.addf %39, %38 : vector<2x128xf32>
    %41 = arith.divf %39, %40 : vector<2x128xf32>
    %42 = vector.extract_strided_slice %41 {offsets = [0, 0], sizes = [2, 32], strides = [1, 1]} : vector<2x128xf32> to vector<2x32xf32>
    %43 = vector.extract_strided_slice %41 {offsets = [0, 32], sizes = [2, 32], strides = [1, 1]} : vector<2x128xf32> to vector<2x32xf32>
    %44 = vector.extract_strided_slice %41 {offsets = [0, 96], sizes = [2, 32], strides = [1, 1]} : vector<2x128xf32> to vector<2x32xf32>
    %45 = vector.extract_strided_slice %36 {offsets = [0, 64], sizes = [2, 32], strides = [1, 1]} : vector<2x128xf32> to vector<2x32xf32>
    %46 = math.tanh %45 : vector<2x32xf32>
    %47 = arith.mulf %43, %27 : vector<2x32xf32>
    %48 = arith.mulf %42, %46 : vector<2x32xf32>
    %49 = arith.addf %47, %48 : vector<2x32xf32>
    %50 = math.tanh %49 : vector<2x32xf32>
    %51 = arith.mulf %44, %50 : vector<2x32xf32>
    %c0_17 = arith.constant 0 : index
    %c1 = arith.constant 1 : index
    %c0_18 = arith.constant 0 : index
    %52 = vector.load %arg12[%c0_17, %c1, %c0_18] : memref<2x8x32xf32, #tpu.memory_space<vmem>>, vector<2x1x32xf32>
    %53 = vector.shape_cast %52 : vector<2x1x32xf32> to vector<2x32xf32>
    %54 = vector.shape_cast %51 : vector<2x32xf32> to vector<2x1x32xf32>
    tpu.vector_store %arg12[%c0_17, %c1, %c0_18], %54 {strides = array<i32>} : memref<2x8x32xf32, #tpu.memory_space<vmem>>, vector<2x1x32xf32>,
    %55 = vector.extract_strided_slice %8 {offsets = [0, 2, 0], sizes = [2, 1, 128], strides = [1, 1, 1]} : vector<2x8x128xf32> to vector<2x1x128xf32>
    %56 = vector.shape_cast %55 : vector<2x1x128xf32> to vector<2x128xf32>
    %cst_19 = arith.constant dense<0.000000e+00> : vector<2x128xf32>
    %57 = tpu.matmul %51, %3, %cst_19 {dimension_numbers = #tpu.dot_dimension_numbers<[1], [0], [0], [1], [0, 0, 1, 1], [], []>} : vector<2x32xf32>, vector<32x128xf32>, vector<2x128xf32> -> vector<2x128xf32>
    %58 = arith.addf %56, %57 : vector<2x128xf32>
    %59 = arith.negf %58 : vector<2x128xf32>
    %60 = math.exp %59 : vector<2x128xf32>
    %cst_20 = arith.constant 1.000000e+00 : f32
    %61 = vector.broadcast %cst_20 : f32 to vector<2x128xf32>
    %62 = arith.addf %61, %60 : vector<2x128xf32>
    %63 = arith.divf %61, %62 : vector<2x128xf32>
    %64 = vector.extract_strided_slice %63 {offsets = [0, 0], sizes = [2, 32], strides = [1, 1]} : vector<2x128xf32> to vector<2x32xf32>
    %65 = vector.extract_strided_slice %63 {offsets = [0, 32], sizes = [2, 32], strides = [1, 1]} : vector<2x128xf32> to vector<2x32xf32>
    %66 = vector.extract_strided_slice %63 {offsets = [0, 96], sizes = [2, 32], strides = [1, 1]} : vector<2x128xf32> to vector<2x32xf32>
    %67 = vector.extract_strided_slice %58 {offsets = [0, 64], sizes = [2, 32], strides = [1, 1]} : vector<2x128xf32> to vector<2x32xf32>
    %68 = math.tanh %67 : vector<2x32xf32>
    %69 = arith.mulf %65, %49 : vector<2x32xf32>
    %70 = arith.mulf %64, %68 : vector<2x32xf32>
    %71 = arith.addf %69, %70 : vector<2x32xf32>
    %72 = math.tanh %71 : vector<2x32xf32>
    %73 = arith.mulf %66, %72 : vector<2x32xf32>
    %c0_21 = arith.constant 0 : index
    %c2 = arith.constant 2 : index
    %c0_22 = arith.constant 0 : index
    %74 = vector.load %arg12[%c0_21, %c2, %c0_22] : memref<2x8x32xf32, #tpu.memory_space<vmem>>, vector<2x1x32xf32>
    %75 = vector.shape_cast %74 : vector<2x1x32xf32> to vector<2x32xf32>
    %76 = vector.shape_cast %73 : vector<2x32xf32> to vector<2x1x32xf32>
    tpu.vector_store %arg12[%c0_21, %c2, %c0_22], %76 {strides = array<i32>} : memref<2x8x32xf32, #tpu.memory_space<vmem>>, vector<2x1x32xf32>,
    %77 = vector.extract_strided_slice %8 {offsets = [0, 3, 0], sizes = [2, 1, 128], strides = [1, 1, 1]} : vector<2x8x128xf32> to vector<2x1x128xf32>
    %78 = vector.shape_cast %77 : vector<2x1x128xf32> to vector<2x128xf32>
    %cst_23 = arith.constant dense<0.000000e+00> : vector<2x128xf32>
    %79 = tpu.matmul %73, %3, %cst_23 {dimension_numbers = #tpu.dot_dimension_numbers<[1], [0], [0], [1], [0, 0, 1, 1], [], []>} : vector<2x32xf32>, vector<32x128xf32>, vector<2x128xf32> -> vector<2x128xf32>
    %80 = arith.addf %78, %79 : vector<2x128xf32>
    %81 = arith.negf %80 : vector<2x128xf32>
    %82 = math.exp %81 : vector<2x128xf32>
    %cst_24 = arith.constant 1.000000e+00 : f32
    %83 = vector.broadcast %cst_24 : f32 to vector<2x128xf32>
    %84 = arith.addf %83, %82 : vector<2x128xf32>
    %85 = arith.divf %83, %84 : vector<2x128xf32>
    %86 = vector.extract_strided_slice %85 {offsets = [0, 0], sizes = [2, 32], strides = [1, 1]} : vector<2x128xf32> to vector<2x32xf32>
    %87 = vector.extract_strided_slice %85 {offsets = [0, 32], sizes = [2, 32], strides = [1, 1]} : vector<2x128xf32> to vector<2x32xf32>
    %88 = vector.extract_strided_slice %85 {offsets = [0, 96], sizes = [2, 32], strides = [1, 1]} : vector<2x128xf32> to vector<2x32xf32>
    %89 = vector.extract_strided_slice %80 {offsets = [0, 64], sizes = [2, 32], strides = [1, 1]} : vector<2x128xf32> to vector<2x32xf32>
    %90 = math.tanh %89 : vector<2x32xf32>
    %91 = arith.mulf %87, %71 : vector<2x32xf32>
    %92 = arith.mulf %86, %90 : vector<2x32xf32>
    %93 = arith.addf %91, %92 : vector<2x32xf32>
    %94 = math.tanh %93 : vector<2x32xf32>
    %95 = arith.mulf %88, %94 : vector<2x32xf32>
    %c0_25 = arith.constant 0 : index
    %c3 = arith.constant 3 : index
    %c0_26 = arith.constant 0 : index
    %96 = vector.load %arg12[%c0_25, %c3, %c0_26] : memref<2x8x32xf32, #tpu.memory_space<vmem>>, vector<2x1x32xf32>
    %97 = vector.shape_cast %96 : vector<2x1x32xf32> to vector<2x32xf32>
    %98 = vector.shape_cast %95 : vector<2x32xf32> to vector<2x1x32xf32>
    tpu.vector_store %arg12[%c0_25, %c3, %c0_26], %98 {strides = array<i32>} : memref<2x8x32xf32, #tpu.memory_space<vmem>>, vector<2x1x32xf32>,
    %99 = vector.extract_strided_slice %8 {offsets = [0, 4, 0], sizes = [2, 1, 128], strides = [1, 1, 1]} : vector<2x8x128xf32> to vector<2x1x128xf32>
    %100 = vector.shape_cast %99 : vector<2x1x128xf32> to vector<2x128xf32>
    %cst_27 = arith.constant dense<0.000000e+00> : vector<2x128xf32>
    %101 = tpu.matmul %95, %3, %cst_27 {dimension_numbers = #tpu.dot_dimension_numbers<[1], [0], [0], [1], [0, 0, 1, 1], [], []>} : vector<2x32xf32>, vector<32x128xf32>, vector<2x128xf32> -> vector<2x128xf32>
    %102 = arith.addf %100, %101 : vector<2x128xf32>
    %103 = arith.negf %102 : vector<2x128xf32>
    %104 = math.exp %103 : vector<2x128xf32>
    %cst_28 = arith.constant 1.000000e+00 : f32
    %105 = vector.broadcast %cst_28 : f32 to vector<2x128xf32>
    %106 = arith.addf %105, %104 : vector<2x128xf32>
    %107 = arith.divf %105, %106 : vector<2x128xf32>
    %108 = vector.extract_strided_slice %107 {offsets = [0, 0], sizes = [2, 32], strides = [1, 1]} : vector<2x128xf32> to vector<2x32xf32>
    %109 = vector.extract_strided_slice %107 {offsets = [0, 32], sizes = [2, 32], strides = [1, 1]} : vector<2x128xf32> to vector<2x32xf32>
    %110 = vector.extract_strided_slice %107 {offsets = [0, 96], sizes = [2, 32], strides = [1, 1]} : vector<2x128xf32> to vector<2x32xf32>
    %111 = vector.extract_strided_slice %102 {offsets = [0, 64], sizes = [2, 32], strides = [1, 1]} : vector<2x128xf32> to vector<2x32xf32>
    %112 = math.tanh %111 : vector<2x32xf32>
    %113 = arith.mulf %109, %93 : vector<2x32xf32>
    %114 = arith.mulf %108, %112 : vector<2x32xf32>
    %115 = arith.addf %113, %114 : vector<2x32xf32>
    %116 = math.tanh %115 : vector<2x32xf32>
    %117 = arith.mulf %110, %116 : vector<2x32xf32>
    %c0_29 = arith.constant 0 : index
    %c4 = arith.constant 4 : index
    %c0_30 = arith.constant 0 : index
    %118 = vector.load %arg12[%c0_29, %c4, %c0_30] : memref<2x8x32xf32, #tpu.memory_space<vmem>>, vector<2x1x32xf32>
    %119 = vector.shape_cast %118 : vector<2x1x32xf32> to vector<2x32xf32>
    %120 = vector.shape_cast %117 : vector<2x32xf32> to vector<2x1x32xf32>
    tpu.vector_store %arg12[%c0_29, %c4, %c0_30], %120 {strides = array<i32>} : memref<2x8x32xf32, #tpu.memory_space<vmem>>, vector<2x1x32xf32>,
    %121 = vector.extract_strided_slice %8 {offsets = [0, 5, 0], sizes = [2, 1, 128], strides = [1, 1, 1]} : vector<2x8x128xf32> to vector<2x1x128xf32>
    %122 = vector.shape_cast %121 : vector<2x1x128xf32> to vector<2x128xf32>
    %cst_31 = arith.constant dense<0.000000e+00> : vector<2x128xf32>
    %123 = tpu.matmul %117, %3, %cst_31 {dimension_numbers = #tpu.dot_dimension_numbers<[1], [0], [0], [1], [0, 0, 1, 1], [], []>} : vector<2x32xf32>, vector<32x128xf32>, vector<2x128xf32> -> vector<2x128xf32>
    %124 = arith.addf %122, %123 : vector<2x128xf32>
    %125 = arith.negf %124 : vector<2x128xf32>
    %126 = math.exp %125 : vector<2x128xf32>
    %cst_32 = arith.constant 1.000000e+00 : f32
    %127 = vector.broadcast %cst_32 : f32 to vector<2x128xf32>
    %128 = arith.addf %127, %126 : vector<2x128xf32>
    %129 = arith.divf %127, %128 : vector<2x128xf32>
    %130 = vector.extract_strided_slice %129 {offsets = [0, 0], sizes = [2, 32], strides = [1, 1]} : vector<2x128xf32> to vector<2x32xf32>
    %131 = vector.extract_strided_slice %129 {offsets = [0, 32], sizes = [2, 32], strides = [1, 1]} : vector<2x128xf32> to vector<2x32xf32>
    %132 = vector.extract_strided_slice %129 {offsets = [0, 96], sizes = [2, 32], strides = [1, 1]} : vector<2x128xf32> to vector<2x32xf32>
    %133 = vector.extract_strided_slice %124 {offsets = [0, 64], sizes = [2, 32], strides = [1, 1]} : vector<2x128xf32> to vector<2x32xf32>
    %134 = math.tanh %133 : vector<2x32xf32>
    %135 = arith.mulf %131, %115 : vector<2x32xf32>
    %136 = arith.mulf %130, %134 : vector<2x32xf32>
    %137 = arith.addf %135, %136 : vector<2x32xf32>
    %138 = math.tanh %137 : vector<2x32xf32>
    %139 = arith.mulf %132, %138 : vector<2x32xf32>
    %c0_33 = arith.constant 0 : index
    %c5 = arith.constant 5 : index
    %c0_34 = arith.constant 0 : index
    %140 = vector.load %arg12[%c0_33, %c5, %c0_34] : memref<2x8x32xf32, #tpu.memory_space<vmem>>, vector<2x1x32xf32>
    %141 = vector.shape_cast %140 : vector<2x1x32xf32> to vector<2x32xf32>
    %142 = vector.shape_cast %139 : vector<2x32xf32> to vector<2x1x32xf32>
    tpu.vector_store %arg12[%c0_33, %c5, %c0_34], %142 {strides = array<i32>} : memref<2x8x32xf32, #tpu.memory_space<vmem>>, vector<2x1x32xf32>,
    %143 = vector.extract_strided_slice %8 {offsets = [0, 6, 0], sizes = [2, 1, 128], strides = [1, 1, 1]} : vector<2x8x128xf32> to vector<2x1x128xf32>
    %144 = vector.shape_cast %143 : vector<2x1x128xf32> to vector<2x128xf32>
    %cst_35 = arith.constant dense<0.000000e+00> : vector<2x128xf32>
    %145 = tpu.matmul %139, %3, %cst_35 {dimension_numbers = #tpu.dot_dimension_numbers<[1], [0], [0], [1], [0, 0, 1, 1], [], []>} : vector<2x32xf32>, vector<32x128xf32>, vector<2x128xf32> -> vector<2x128xf32>
    %146 = arith.addf %144, %145 : vector<2x128xf32>
    %147 = arith.negf %146 : vector<2x128xf32>
    %148 = math.exp %147 : vector<2x128xf32>
    %cst_36 = arith.constant 1.000000e+00 : f32
    %149 = vector.broadcast %cst_36 : f32 to vector<2x128xf32>
    %150 = arith.addf %149, %148 : vector<2x128xf32>
    %151 = arith.divf %149, %150 : vector<2x128xf32>
    %152 = vector.extract_strided_slice %151 {offsets = [0, 0], sizes = [2, 32], strides = [1, 1]} : vector<2x128xf32> to vector<2x32xf32>
    %153 = vector.extract_strided_slice %151 {offsets = [0, 32], sizes = [2, 32], strides = [1, 1]} : vector<2x128xf32> to vector<2x32xf32>
    %154 = vector.extract_strided_slice %151 {offsets = [0, 96], sizes = [2, 32], strides = [1, 1]} : vector<2x128xf32> to vector<2x32xf32>
    %155 = vector.extract_strided_slice %146 {offsets = [0, 64], sizes = [2, 32], strides = [1, 1]} : vector<2x128xf32> to vector<2x32xf32>
    %156 = math.tanh %155 : vector<2x32xf32>
    %157 = arith.mulf %153, %137 : vector<2x32xf32>
    %158 = arith.mulf %152, %156 : vector<2x32xf32>
    %159 = arith.addf %157, %158 : vector<2x32xf32>
    %160 = math.tanh %159 : vector<2x32xf32>
    %161 = arith.mulf %154, %160 : vector<2x32xf32>
    %c0_37 = arith.constant 0 : index
    %c6 = arith.constant 6 : index
    %c0_38 = arith.constant 0 : index
    %162 = vector.load %arg12[%c0_37, %c6, %c0_38] : memref<2x8x32xf32, #tpu.memory_space<vmem>>, vector<2x1x32xf32>
    %163 = vector.shape_cast %162 : vector<2x1x32xf32> to vector<2x32xf32>
    %164 = vector.shape_cast %161 : vector<2x32xf32> to vector<2x1x32xf32>
    tpu.vector_store %arg12[%c0_37, %c6, %c0_38], %164 {strides = array<i32>} : memref<2x8x32xf32, #tpu.memory_space<vmem>>, vector<2x1x32xf32>,
    %165 = vector.extract_strided_slice %8 {offsets = [0, 7, 0], sizes = [2, 1, 128], strides = [1, 1, 1]} : vector<2x8x128xf32> to vector<2x1x128xf32>
    %166 = vector.shape_cast %165 : vector<2x1x128xf32> to vector<2x128xf32>
    %cst_39 = arith.constant dense<0.000000e+00> : vector<2x128xf32>
    %167 = tpu.matmul %161, %3, %cst_39 {dimension_numbers = #tpu.dot_dimension_numbers<[1], [0], [0], [1], [0, 0, 1, 1], [], []>} : vector<2x32xf32>, vector<32x128xf32>, vector<2x128xf32> -> vector<2x128xf32>
    %168 = arith.addf %166, %167 : vector<2x128xf32>
    %169 = arith.negf %168 : vector<2x128xf32>
    %170 = math.exp %169 : vector<2x128xf32>
    %cst_40 = arith.constant 1.000000e+00 : f32
    %171 = vector.broadcast %cst_40 : f32 to vector<2x128xf32>
    %172 = arith.addf %171, %170 : vector<2x128xf32>
    %173 = arith.divf %171, %172 : vector<2x128xf32>
    %174 = vector.extract_strided_slice %173 {offsets = [0, 0], sizes = [2, 32], strides = [1, 1]} : vector<2x128xf32> to vector<2x32xf32>
    %175 = vector.extract_strided_slice %173 {offsets = [0, 32], sizes = [2, 32], strides = [1, 1]} : vector<2x128xf32> to vector<2x32xf32>
    %176 = vector.extract_strided_slice %173 {offsets = [0, 96], sizes = [2, 32], strides = [1, 1]} : vector<2x128xf32> to vector<2x32xf32>
    %177 = vector.extract_strided_slice %168 {offsets = [0, 64], sizes = [2, 32], strides = [1, 1]} : vector<2x128xf32> to vector<2x32xf32>
    %178 = math.tanh %177 : vector<2x32xf32>
    %179 = arith.mulf %175, %159 : vector<2x32xf32>
    %180 = arith.mulf %174, %178 : vector<2x32xf32>
    %181 = arith.addf %179, %180 : vector<2x32xf32>
    %182 = math.tanh %181 : vector<2x32xf32>
    %183 = arith.mulf %176, %182 : vector<2x32xf32>
    %c0_41 = arith.constant 0 : index
    %c7 = arith.constant 7 : index
    %c0_42 = arith.constant 0 : index
    %184 = vector.load %arg12[%c0_41, %c7, %c0_42] : memref<2x8x32xf32, #tpu.memory_space<vmem>>, vector<2x1x32xf32>
    %185 = vector.shape_cast %184 : vector<2x1x32xf32> to vector<2x32xf32>
    %186 = vector.shape_cast %183 : vector<2x32xf32> to vector<2x1x32xf32>
    tpu.vector_store %arg12[%c0_41, %c7, %c0_42], %186 {strides = array<i32>} : memref<2x8x32xf32, #tpu.memory_space<vmem>>, vector<2x1x32xf32>,
    %c0_43 = arith.constant 0 : index
    %c0_44 = arith.constant 0 : index
    %c0_45 = arith.constant 0 : index
    %187 = vector.load %arg10[%c0_43, %c0_44, %c0_45] : memref<2x2x32xf32, #tpu.memory_space<vmem>>, vector<1x2x32xf32>
    %188 = vector.shape_cast %187 : vector<1x2x32xf32> to vector<2x32xf32>
    %189 = vector.shape_cast %183 : vector<2x32xf32> to vector<1x2x32xf32>
    tpu.vector_store %arg10[%c0_43, %c0_44, %c0_45], %189 {strides = array<i32>} : memref<2x2x32xf32, #tpu.memory_space<vmem>>, vector<1x2x32xf32>,
    %c0_46 = arith.constant 0 : index
    %c0_47 = arith.constant 0 : index
    %c0_48 = arith.constant 0 : index
    %190 = vector.load %arg11[%c0_46, %c0_47, %c0_48] : memref<2x2x32xf32, #tpu.memory_space<vmem>>, vector<1x2x32xf32>
    %191 = vector.shape_cast %190 : vector<1x2x32xf32> to vector<2x32xf32>
    %192 = vector.shape_cast %181 : vector<2x32xf32> to vector<1x2x32xf32>
    tpu.vector_store %arg11[%c0_46, %c0_47, %c0_48], %192 {strides = array<i32>} : memref<2x2x32xf32, #tpu.memory_space<vmem>>, vector<1x2x32xf32>,
    %c0_49 = arith.constant 0 : index
    %c0_50 = arith.constant 0 : index
    %c0_51 = arith.constant 0 : index
    %193 = vector.load %arg12[%c0_49, %c0_50, %c0_51] : memref<2x8x32xf32, #tpu.memory_space<vmem>>, vector<2x8x32xf32>
    %194 = vector.shape_cast %193 : vector<2x8x32xf32> to vector<16x32xf32>
    %c0_52 = arith.constant 0 : index
    %c0_53 = arith.constant 0 : index
    %195 = vector.load %arg4[%c0_52, %c0_53] : memref<32x128xf32, #tpu.memory_space<vmem>>, vector<32x128xf32>
    %c0_54 = arith.constant 0 : index
    %c0_55 = arith.constant 0 : index
    %196 = vector.load %arg5[%c0_54, %c0_55] : memref<32x128xf32, #tpu.memory_space<vmem>>, vector<32x128xf32>
    %c0_56 = arith.constant 0 : index
    %c0_57 = arith.constant 0 : index
    %197 = vector.load %arg6[%c0_56, %c0_57] : memref<1x128xf32, #tpu.memory_space<vmem>>, vector<1x128xf32>
    %cst_58 = arith.constant dense<0.000000e+00> : vector<16x128xf32>
    %198 = tpu.matmul %194, %195, %cst_58 {dimension_numbers = #tpu.dot_dimension_numbers<[1], [0], [0], [1], [0, 0, 1, 1], [], []>} : vector<16x32xf32>, vector<32x128xf32>, vector<16x128xf32> -> vector<16x128xf32>
    %199 = vector.broadcast %197 : vector<1x128xf32> to vector<16x128xf32>
    %200 = arith.addf %198, %199 : vector<16x128xf32>
    %201 = vector.shape_cast %200 : vector<16x128xf32> to vector<2x8x128xf32>
    %cst_59 = arith.constant 0.000000e+00 : f32
    %202 = vector.broadcast %cst_59 : f32 to vector<2x32xf32>
    %cst_60 = arith.constant 0.000000e+00 : f32
    %203 = vector.broadcast %cst_60 : f32 to vector<2x32xf32>
    %204 = vector.extract_strided_slice %201 {offsets = [0, 0, 0], sizes = [2, 1, 128], strides = [1, 1, 1]} : vector<2x8x128xf32> to vector<2x1x128xf32>
    %205 = vector.shape_cast %204 : vector<2x1x128xf32> to vector<2x128xf32>
    %cst_61 = arith.constant dense<0.000000e+00> : vector<2x128xf32>
    %206 = tpu.matmul %202, %196, %cst_61 {dimension_numbers = #tpu.dot_dimension_numbers<[1], [0], [0], [1], [0, 0, 1, 1], [], []>} : vector<2x32xf32>, vector<32x128xf32>, vector<2x128xf32> -> vector<2x128xf32>
    %207 = arith.addf %205, %206 : vector<2x128xf32>
    %208 = arith.negf %207 : vector<2x128xf32>
    %209 = math.exp %208 : vector<2x128xf32>
    %cst_62 = arith.constant 1.000000e+00 : f32
    %210 = vector.broadcast %cst_62 : f32 to vector<2x128xf32>
    %211 = arith.addf %210, %209 : vector<2x128xf32>
    %212 = arith.divf %210, %211 : vector<2x128xf32>
    %213 = vector.extract_strided_slice %212 {offsets = [0, 0], sizes = [2, 32], strides = [1, 1]} : vector<2x128xf32> to vector<2x32xf32>
    %214 = vector.extract_strided_slice %212 {offsets = [0, 32], sizes = [2, 32], strides = [1, 1]} : vector<2x128xf32> to vector<2x32xf32>
    %215 = vector.extract_strided_slice %212 {offsets = [0, 96], sizes = [2, 32], strides = [1, 1]} : vector<2x128xf32> to vector<2x32xf32>
    %216 = vector.extract_strided_slice %207 {offsets = [0, 64], sizes = [2, 32], strides = [1, 1]} : vector<2x128xf32> to vector<2x32xf32>
    %217 = math.tanh %216 : vector<2x32xf32>
    %218 = arith.mulf %214, %203 : vector<2x32xf32>
    %219 = arith.mulf %213, %217 : vector<2x32xf32>
    %220 = arith.addf %218, %219 : vector<2x32xf32>
    %221 = math.tanh %220 : vector<2x32xf32>
    %222 = arith.mulf %215, %221 : vector<2x32xf32>
    %c0_63 = arith.constant 0 : index
    %c0_64 = arith.constant 0 : index
    %c0_65 = arith.constant 0 : index
    %223 = vector.load %arg12[%c0_63, %c0_64, %c0_65] : memref<2x8x32xf32, #tpu.memory_space<vmem>>, vector<2x1x32xf32>
    %224 = vector.shape_cast %223 : vector<2x1x32xf32> to vector<2x32xf32>
    %225 = vector.shape_cast %222 : vector<2x32xf32> to vector<2x1x32xf32>
    tpu.vector_store %arg12[%c0_63, %c0_64, %c0_65], %225 {strides = array<i32>} : memref<2x8x32xf32, #tpu.memory_space<vmem>>, vector<2x1x32xf32>,
    %226 = vector.extract_strided_slice %201 {offsets = [0, 1, 0], sizes = [2, 1, 128], strides = [1, 1, 1]} : vector<2x8x128xf32> to vector<2x1x128xf32>
    %227 = vector.shape_cast %226 : vector<2x1x128xf32> to vector<2x128xf32>
    %cst_66 = arith.constant dense<0.000000e+00> : vector<2x128xf32>
    %228 = tpu.matmul %222, %196, %cst_66 {dimension_numbers = #tpu.dot_dimension_numbers<[1], [0], [0], [1], [0, 0, 1, 1], [], []>} : vector<2x32xf32>, vector<32x128xf32>, vector<2x128xf32> -> vector<2x128xf32>
    %229 = arith.addf %227, %228 : vector<2x128xf32>
    %230 = arith.negf %229 : vector<2x128xf32>
    %231 = math.exp %230 : vector<2x128xf32>
    %cst_67 = arith.constant 1.000000e+00 : f32
    %232 = vector.broadcast %cst_67 : f32 to vector<2x128xf32>
    %233 = arith.addf %232, %231 : vector<2x128xf32>
    %234 = arith.divf %232, %233 : vector<2x128xf32>
    %235 = vector.extract_strided_slice %234 {offsets = [0, 0], sizes = [2, 32], strides = [1, 1]} : vector<2x128xf32> to vector<2x32xf32>
    %236 = vector.extract_strided_slice %234 {offsets = [0, 32], sizes = [2, 32], strides = [1, 1]} : vector<2x128xf32> to vector<2x32xf32>
    %237 = vector.extract_strided_slice %234 {offsets = [0, 96], sizes = [2, 32], strides = [1, 1]} : vector<2x128xf32> to vector<2x32xf32>
    %238 = vector.extract_strided_slice %229 {offsets = [0, 64], sizes = [2, 32], strides = [1, 1]} : vector<2x128xf32> to vector<2x32xf32>
    %239 = math.tanh %238 : vector<2x32xf32>
    %240 = arith.mulf %236, %220 : vector<2x32xf32>
    %241 = arith.mulf %235, %239 : vector<2x32xf32>
    %242 = arith.addf %240, %241 : vector<2x32xf32>
    %243 = math.tanh %242 : vector<2x32xf32>
    %244 = arith.mulf %237, %243 : vector<2x32xf32>
    %c0_68 = arith.constant 0 : index
    %c1_69 = arith.constant 1 : index
    %c0_70 = arith.constant 0 : index
    %245 = vector.load %arg12[%c0_68, %c1_69, %c0_70] : memref<2x8x32xf32, #tpu.memory_space<vmem>>, vector<2x1x32xf32>
    %246 = vector.shape_cast %245 : vector<2x1x32xf32> to vector<2x32xf32>
    %247 = vector.shape_cast %244 : vector<2x32xf32> to vector<2x1x32xf32>
    tpu.vector_store %arg12[%c0_68, %c1_69, %c0_70], %247 {strides = array<i32>} : memref<2x8x32xf32, #tpu.memory_space<vmem>>, vector<2x1x32xf32>,
    %248 = vector.extract_strided_slice %201 {offsets = [0, 2, 0], sizes = [2, 1, 128], strides = [1, 1, 1]} : vector<2x8x128xf32> to vector<2x1x128xf32>
    %249 = vector.shape_cast %248 : vector<2x1x128xf32> to vector<2x128xf32>
    %cst_71 = arith.constant dense<0.000000e+00> : vector<2x128xf32>
    %250 = tpu.matmul %244, %196, %cst_71 {dimension_numbers = #tpu.dot_dimension_numbers<[1], [0], [0], [1], [0, 0, 1, 1], [], []>} : vector<2x32xf32>, vector<32x128xf32>, vector<2x128xf32> -> vector<2x128xf32>
    %251 = arith.addf %249, %250 : vector<2x128xf32>
    %252 = arith.negf %251 : vector<2x128xf32>
    %253 = math.exp %252 : vector<2x128xf32>
    %cst_72 = arith.constant 1.000000e+00 : f32
    %254 = vector.broadcast %cst_72 : f32 to vector<2x128xf32>
    %255 = arith.addf %254, %253 : vector<2x128xf32>
    %256 = arith.divf %254, %255 : vector<2x128xf32>
    %257 = vector.extract_strided_slice %256 {offsets = [0, 0], sizes = [2, 32], strides = [1, 1]} : vector<2x128xf32> to vector<2x32xf32>
    %258 = vector.extract_strided_slice %256 {offsets = [0, 32], sizes = [2, 32], strides = [1, 1]} : vector<2x128xf32> to vector<2x32xf32>
    %259 = vector.extract_strided_slice %256 {offsets = [0, 96], sizes = [2, 32], strides = [1, 1]} : vector<2x128xf32> to vector<2x32xf32>
    %260 = vector.extract_strided_slice %251 {offsets = [0, 64], sizes = [2, 32], strides = [1, 1]} : vector<2x128xf32> to vector<2x32xf32>
    %261 = math.tanh %260 : vector<2x32xf32>
    %262 = arith.mulf %258, %242 : vector<2x32xf32>
    %263 = arith.mulf %257, %261 : vector<2x32xf32>
    %264 = arith.addf %262, %263 : vector<2x32xf32>
    %265 = math.tanh %264 : vector<2x32xf32>
    %266 = arith.mulf %259, %265 : vector<2x32xf32>
    %c0_73 = arith.constant 0 : index
    %c2_74 = arith.constant 2 : index
    %c0_75 = arith.constant 0 : index
    %267 = vector.load %arg12[%c0_73, %c2_74, %c0_75] : memref<2x8x32xf32, #tpu.memory_space<vmem>>, vector<2x1x32xf32>
    %268 = vector.shape_cast %267 : vector<2x1x32xf32> to vector<2x32xf32>
    %269 = vector.shape_cast %266 : vector<2x32xf32> to vector<2x1x32xf32>
    tpu.vector_store %arg12[%c0_73, %c2_74, %c0_75], %269 {strides = array<i32>} : memref<2x8x32xf32, #tpu.memory_space<vmem>>, vector<2x1x32xf32>,
    %270 = vector.extract_strided_slice %201 {offsets = [0, 3, 0], sizes = [2, 1, 128], strides = [1, 1, 1]} : vector<2x8x128xf32> to vector<2x1x128xf32>
    %271 = vector.shape_cast %270 : vector<2x1x128xf32> to vector<2x128xf32>
    %cst_76 = arith.constant dense<0.000000e+00> : vector<2x128xf32>
    %272 = tpu.matmul %266, %196, %cst_76 {dimension_numbers = #tpu.dot_dimension_numbers<[1], [0], [0], [1], [0, 0, 1, 1], [], []>} : vector<2x32xf32>, vector<32x128xf32>, vector<2x128xf32> -> vector<2x128xf32>
    %273 = arith.addf %271, %272 : vector<2x128xf32>
    %274 = arith.negf %273 : vector<2x128xf32>
    %275 = math.exp %274 : vector<2x128xf32>
    %cst_77 = arith.constant 1.000000e+00 : f32
    %276 = vector.broadcast %cst_77 : f32 to vector<2x128xf32>
    %277 = arith.addf %276, %275 : vector<2x128xf32>
    %278 = arith.divf %276, %277 : vector<2x128xf32>
    %279 = vector.extract_strided_slice %278 {offsets = [0, 0], sizes = [2, 32], strides = [1, 1]} : vector<2x128xf32> to vector<2x32xf32>
    %280 = vector.extract_strided_slice %278 {offsets = [0, 32], sizes = [2, 32], strides = [1, 1]} : vector<2x128xf32> to vector<2x32xf32>
    %281 = vector.extract_strided_slice %278 {offsets = [0, 96], sizes = [2, 32], strides = [1, 1]} : vector<2x128xf32> to vector<2x32xf32>
    %282 = vector.extract_strided_slice %273 {offsets = [0, 64], sizes = [2, 32], strides = [1, 1]} : vector<2x128xf32> to vector<2x32xf32>
    %283 = math.tanh %282 : vector<2x32xf32>
    %284 = arith.mulf %280, %264 : vector<2x32xf32>
    %285 = arith.mulf %279, %283 : vector<2x32xf32>
    %286 = arith.addf %284, %285 : vector<2x32xf32>
    %287 = math.tanh %286 : vector<2x32xf32>
    %288 = arith.mulf %281, %287 : vector<2x32xf32>
    %c0_78 = arith.constant 0 : index
    %c3_79 = arith.constant 3 : index
    %c0_80 = arith.constant 0 : index
    %289 = vector.load %arg12[%c0_78, %c3_79, %c0_80] : memref<2x8x32xf32, #tpu.memory_space<vmem>>, vector<2x1x32xf32>
    %290 = vector.shape_cast %289 : vector<2x1x32xf32> to vector<2x32xf32>
    %291 = vector.shape_cast %288 : vector<2x32xf32> to vector<2x1x32xf32>
    tpu.vector_store %arg12[%c0_78, %c3_79, %c0_80], %291 {strides = array<i32>} : memref<2x8x32xf32, #tpu.memory_space<vmem>>, vector<2x1x32xf32>,
    %292 = vector.extract_strided_slice %201 {offsets = [0, 4, 0], sizes = [2, 1, 128], strides = [1, 1, 1]} : vector<2x8x128xf32> to vector<2x1x128xf32>
    %293 = vector.shape_cast %292 : vector<2x1x128xf32> to vector<2x128xf32>
    %cst_81 = arith.constant dense<0.000000e+00> : vector<2x128xf32>
    %294 = tpu.matmul %288, %196, %cst_81 {dimension_numbers = #tpu.dot_dimension_numbers<[1], [0], [0], [1], [0, 0, 1, 1], [], []>} : vector<2x32xf32>, vector<32x128xf32>, vector<2x128xf32> -> vector<2x128xf32>
    %295 = arith.addf %293, %294 : vector<2x128xf32>
    %296 = arith.negf %295 : vector<2x128xf32>
    %297 = math.exp %296 : vector<2x128xf32>
    %cst_82 = arith.constant 1.000000e+00 : f32
    %298 = vector.broadcast %cst_82 : f32 to vector<2x128xf32>
    %299 = arith.addf %298, %297 : vector<2x128xf32>
    %300 = arith.divf %298, %299 : vector<2x128xf32>
    %301 = vector.extract_strided_slice %300 {offsets = [0, 0], sizes = [2, 32], strides = [1, 1]} : vector<2x128xf32> to vector<2x32xf32>
    %302 = vector.extract_strided_slice %300 {offsets = [0, 32], sizes = [2, 32], strides = [1, 1]} : vector<2x128xf32> to vector<2x32xf32>
    %303 = vector.extract_strided_slice %300 {offsets = [0, 96], sizes = [2, 32], strides = [1, 1]} : vector<2x128xf32> to vector<2x32xf32>
    %304 = vector.extract_strided_slice %295 {offsets = [0, 64], sizes = [2, 32], strides = [1, 1]} : vector<2x128xf32> to vector<2x32xf32>
    %305 = math.tanh %304 : vector<2x32xf32>
    %306 = arith.mulf %302, %286 : vector<2x32xf32>
    %307 = arith.mulf %301, %305 : vector<2x32xf32>
    %308 = arith.addf %306, %307 : vector<2x32xf32>
    %309 = math.tanh %308 : vector<2x32xf32>
    %310 = arith.mulf %303, %309 : vector<2x32xf32>
    %c0_83 = arith.constant 0 : index
    %c4_84 = arith.constant 4 : index
    %c0_85 = arith.constant 0 : index
    %311 = vector.load %arg12[%c0_83, %c4_84, %c0_85] : memref<2x8x32xf32, #tpu.memory_space<vmem>>, vector<2x1x32xf32>
    %312 = vector.shape_cast %311 : vector<2x1x32xf32> to vector<2x32xf32>
    %313 = vector.shape_cast %310 : vector<2x32xf32> to vector<2x1x32xf32>
    tpu.vector_store %arg12[%c0_83, %c4_84, %c0_85], %313 {strides = array<i32>} : memref<2x8x32xf32, #tpu.memory_space<vmem>>, vector<2x1x32xf32>,
    %314 = vector.extract_strided_slice %201 {offsets = [0, 5, 0], sizes = [2, 1, 128], strides = [1, 1, 1]} : vector<2x8x128xf32> to vector<2x1x128xf32>
    %315 = vector.shape_cast %314 : vector<2x1x128xf32> to vector<2x128xf32>
    %cst_86 = arith.constant dense<0.000000e+00> : vector<2x128xf32>
    %316 = tpu.matmul %310, %196, %cst_86 {dimension_numbers = #tpu.dot_dimension_numbers<[1], [0], [0], [1], [0, 0, 1, 1], [], []>} : vector<2x32xf32>, vector<32x128xf32>, vector<2x128xf32> -> vector<2x128xf32>
    %317 = arith.addf %315, %316 : vector<2x128xf32>
    %318 = arith.negf %317 : vector<2x128xf32>
    %319 = math.exp %318 : vector<2x128xf32>
    %cst_87 = arith.constant 1.000000e+00 : f32
    %320 = vector.broadcast %cst_87 : f32 to vector<2x128xf32>
    %321 = arith.addf %320, %319 : vector<2x128xf32>
    %322 = arith.divf %320, %321 : vector<2x128xf32>
    %323 = vector.extract_strided_slice %322 {offsets = [0, 0], sizes = [2, 32], strides = [1, 1]} : vector<2x128xf32> to vector<2x32xf32>
    %324 = vector.extract_strided_slice %322 {offsets = [0, 32], sizes = [2, 32], strides = [1, 1]} : vector<2x128xf32> to vector<2x32xf32>
    %325 = vector.extract_strided_slice %322 {offsets = [0, 96], sizes = [2, 32], strides = [1, 1]} : vector<2x128xf32> to vector<2x32xf32>
    %326 = vector.extract_strided_slice %317 {offsets = [0, 64], sizes = [2, 32], strides = [1, 1]} : vector<2x128xf32> to vector<2x32xf32>
    %327 = math.tanh %326 : vector<2x32xf32>
    %328 = arith.mulf %324, %308 : vector<2x32xf32>
    %329 = arith.mulf %323, %327 : vector<2x32xf32>
    %330 = arith.addf %328, %329 : vector<2x32xf32>
    %331 = math.tanh %330 : vector<2x32xf32>
    %332 = arith.mulf %325, %331 : vector<2x32xf32>
    %c0_88 = arith.constant 0 : index
    %c5_89 = arith.constant 5 : index
    %c0_90 = arith.constant 0 : index
    %333 = vector.load %arg12[%c0_88, %c5_89, %c0_90] : memref<2x8x32xf32, #tpu.memory_space<vmem>>, vector<2x1x32xf32>
    %334 = vector.shape_cast %333 : vector<2x1x32xf32> to vector<2x32xf32>
    %335 = vector.shape_cast %332 : vector<2x32xf32> to vector<2x1x32xf32>
    tpu.vector_store %arg12[%c0_88, %c5_89, %c0_90], %335 {strides = array<i32>} : memref<2x8x32xf32, #tpu.memory_space<vmem>>, vector<2x1x32xf32>,
    %336 = vector.extract_strided_slice %201 {offsets = [0, 6, 0], sizes = [2, 1, 128], strides = [1, 1, 1]} : vector<2x8x128xf32> to vector<2x1x128xf32>
    %337 = vector.shape_cast %336 : vector<2x1x128xf32> to vector<2x128xf32>
    %cst_91 = arith.constant dense<0.000000e+00> : vector<2x128xf32>
    %338 = tpu.matmul %332, %196, %cst_91 {dimension_numbers = #tpu.dot_dimension_numbers<[1], [0], [0], [1], [0, 0, 1, 1], [], []>} : vector<2x32xf32>, vector<32x128xf32>, vector<2x128xf32> -> vector<2x128xf32>
    %339 = arith.addf %337, %338 : vector<2x128xf32>
    %340 = arith.negf %339 : vector<2x128xf32>
    %341 = math.exp %340 : vector<2x128xf32>
    %cst_92 = arith.constant 1.000000e+00 : f32
    %342 = vector.broadcast %cst_92 : f32 to vector<2x128xf32>
    %343 = arith.addf %342, %341 : vector<2x128xf32>
    %344 = arith.divf %342, %343 : vector<2x128xf32>
    %345 = vector.extract_strided_slice %344 {offsets = [0, 0], sizes = [2, 32], strides = [1, 1]} : vector<2x128xf32> to vector<2x32xf32>
    %346 = vector.extract_strided_slice %344 {offsets = [0, 32], sizes = [2, 32], strides = [1, 1]} : vector<2x128xf32> to vector<2x32xf32>
    %347 = vector.extract_strided_slice %344 {offsets = [0, 96], sizes = [2, 32], strides = [1, 1]} : vector<2x128xf32> to vector<2x32xf32>
    %348 = vector.extract_strided_slice %339 {offsets = [0, 64], sizes = [2, 32], strides = [1, 1]} : vector<2x128xf32> to vector<2x32xf32>
    %349 = math.tanh %348 : vector<2x32xf32>
    %350 = arith.mulf %346, %330 : vector<2x32xf32>
    %351 = arith.mulf %345, %349 : vector<2x32xf32>
    %352 = arith.addf %350, %351 : vector<2x32xf32>
    %353 = math.tanh %352 : vector<2x32xf32>
    %354 = arith.mulf %347, %353 : vector<2x32xf32>
    %c0_93 = arith.constant 0 : index
    %c6_94 = arith.constant 6 : index
    %c0_95 = arith.constant 0 : index
    %355 = vector.load %arg12[%c0_93, %c6_94, %c0_95] : memref<2x8x32xf32, #tpu.memory_space<vmem>>, vector<2x1x32xf32>
    %356 = vector.shape_cast %355 : vector<2x1x32xf32> to vector<2x32xf32>
    %357 = vector.shape_cast %354 : vector<2x32xf32> to vector<2x1x32xf32>
    tpu.vector_store %arg12[%c0_93, %c6_94, %c0_95], %357 {strides = array<i32>} : memref<2x8x32xf32, #tpu.memory_space<vmem>>, vector<2x1x32xf32>,
    %358 = vector.extract_strided_slice %201 {offsets = [0, 7, 0], sizes = [2, 1, 128], strides = [1, 1, 1]} : vector<2x8x128xf32> to vector<2x1x128xf32>
    %359 = vector.shape_cast %358 : vector<2x1x128xf32> to vector<2x128xf32>
    %cst_96 = arith.constant dense<0.000000e+00> : vector<2x128xf32>
    %360 = tpu.matmul %354, %196, %cst_96 {dimension_numbers = #tpu.dot_dimension_numbers<[1], [0], [0], [1], [0, 0, 1, 1], [], []>} : vector<2x32xf32>, vector<32x128xf32>, vector<2x128xf32> -> vector<2x128xf32>
    %361 = arith.addf %359, %360 : vector<2x128xf32>
    %362 = arith.negf %361 : vector<2x128xf32>
    %363 = math.exp %362 : vector<2x128xf32>
    %cst_97 = arith.constant 1.000000e+00 : f32
    %364 = vector.broadcast %cst_97 : f32 to vector<2x128xf32>
    %365 = arith.addf %364, %363 : vector<2x128xf32>
    %366 = arith.divf %364, %365 : vector<2x128xf32>
    %367 = vector.extract_strided_slice %366 {offsets = [0, 0], sizes = [2, 32], strides = [1, 1]} : vector<2x128xf32> to vector<2x32xf32>
    %368 = vector.extract_strided_slice %366 {offsets = [0, 32], sizes = [2, 32], strides = [1, 1]} : vector<2x128xf32> to vector<2x32xf32>
    %369 = vector.extract_strided_slice %366 {offsets = [0, 96], sizes = [2, 32], strides = [1, 1]} : vector<2x128xf32> to vector<2x32xf32>
    %370 = vector.extract_strided_slice %361 {offsets = [0, 64], sizes = [2, 32], strides = [1, 1]} : vector<2x128xf32> to vector<2x32xf32>
    %371 = math.tanh %370 : vector<2x32xf32>
    %372 = arith.mulf %368, %352 : vector<2x32xf32>
    %373 = arith.mulf %367, %371 : vector<2x32xf32>
    %374 = arith.addf %372, %373 : vector<2x32xf32>
    %375 = math.tanh %374 : vector<2x32xf32>
    %376 = arith.mulf %369, %375 : vector<2x32xf32>
    %c0_98 = arith.constant 0 : index
    %c7_99 = arith.constant 7 : index
    %c0_100 = arith.constant 0 : index
    %377 = vector.load %arg12[%c0_98, %c7_99, %c0_100] : memref<2x8x32xf32, #tpu.memory_space<vmem>>, vector<2x1x32xf32>
    %378 = vector.shape_cast %377 : vector<2x1x32xf32> to vector<2x32xf32>
    %379 = vector.shape_cast %376 : vector<2x32xf32> to vector<2x1x32xf32>
    tpu.vector_store %arg12[%c0_98, %c7_99, %c0_100], %379 {strides = array<i32>} : memref<2x8x32xf32, #tpu.memory_space<vmem>>, vector<2x1x32xf32>,
    %c1_101 = arith.constant 1 : index
    %c0_102 = arith.constant 0 : index
    %c0_103 = arith.constant 0 : index
    %380 = vector.load %arg10[%c1_101, %c0_102, %c0_103] : memref<2x2x32xf32, #tpu.memory_space<vmem>>, vector<1x2x32xf32>
    %381 = vector.shape_cast %380 : vector<1x2x32xf32> to vector<2x32xf32>
    %382 = vector.shape_cast %376 : vector<2x32xf32> to vector<1x2x32xf32>
    tpu.vector_store %arg10[%c1_101, %c0_102, %c0_103], %382 {strides = array<i32>} : memref<2x2x32xf32, #tpu.memory_space<vmem>>, vector<1x2x32xf32>,
    %c1_104 = arith.constant 1 : index
    %c0_105 = arith.constant 0 : index
    %c0_106 = arith.constant 0 : index
    %383 = vector.load %arg11[%c1_104, %c0_105, %c0_106] : memref<2x2x32xf32, #tpu.memory_space<vmem>>, vector<1x2x32xf32>
    %384 = vector.shape_cast %383 : vector<1x2x32xf32> to vector<2x32xf32>
    %385 = vector.shape_cast %374 : vector<2x32xf32> to vector<1x2x32xf32>
    tpu.vector_store %arg11[%c1_104, %c0_105, %c0_106], %385 {strides = array<i32>} : memref<2x2x32xf32, #tpu.memory_space<vmem>>, vector<1x2x32xf32>,
    %c0_107 = arith.constant 0 : index
    %c0_108 = arith.constant 0 : index
    %c0_109 = arith.constant 0 : index
    %386 = vector.load %arg12[%c0_107, %c0_108, %c0_109] : memref<2x8x32xf32, #tpu.memory_space<vmem>>, vector<2x8x32xf32>
    %387 = vector.shape_cast %386 : vector<2x8x32xf32> to vector<16x32xf32>
    %c0_110 = arith.constant 0 : index
    %c0_111 = arith.constant 0 : index
    %388 = vector.load %arg7[%c0_110, %c0_111] : memref<32x16xf32, #tpu.memory_space<vmem>>, vector<32x16xf32>
    %c0_112 = arith.constant 0 : index
    %c0_113 = arith.constant 0 : index
    %389 = vector.load %arg8[%c0_112, %c0_113] : memref<1x16xf32, #tpu.memory_space<vmem>>, vector<1x16xf32>
    %cst_114 = arith.constant dense<0.000000e+00> : vector<16x16xf32>
    %390 = tpu.matmul %387, %388, %cst_114 {dimension_numbers = #tpu.dot_dimension_numbers<[1], [0], [0], [1], [0, 0, 1, 1], [], []>} : vector<16x32xf32>, vector<32x16xf32>, vector<16x16xf32> -> vector<16x16xf32>
    %391 = vector.broadcast %389 : vector<1x16xf32> to vector<16x16xf32>
    %392 = arith.addf %390, %391 : vector<16x16xf32>
    %c0_115 = arith.constant 0 : index
    %c0_116 = arith.constant 0 : index
    %393 = vector.load %arg9[%c0_115, %c0_116] : memref<16x16xf32, #tpu.memory_space<vmem>>, vector<16x16xf32>
    tpu.vector_store %arg9[%c0_115, %c0_116], %392 {strides = array<i32>} : memref<16x16xf32, #tpu.memory_space<vmem>>, vector<16x16xf32>,
    return
  }
}

</mosaic_0001>

<llo_original>
// kernel: my_model_forward.1
$region0: #{my_model_forward.1}
  #allocation0 [shape = 'u32[]', space=smem, size = 0x4, offset = 0x4, fixed_abs, tag = 'smem constant byte address 0x4 - core index']
  #allocation1 [shape = 'u32[144,128]{1,0:T(1,128)}', space=vmem, size = 0x12000, scoped, tag = 'internal scratch']
  #allocation2 [shape = 'f32[2,8,32]{2,1,0:T(8,128)}', space=vmem, size = 0x2000, scoped, tag = 'scratch operand']
  %s0 = inlined_call_operand.vmem [shape: f32[2,8,16], index: 0, kind: input, shape index: {}]
  %s1 = inlined_call_operand.hbm [shape: f32[16,128], index: 1, kind: input, shape index: {}]
  %s2 = inlined_call_operand.vmem [shape: f32[32,128], index: 2, kind: input, shape index: {}]
  %s3 = inlined_call_operand.vmem [shape: f32[1,128], index: 3, kind: input, shape index: {}]
  %s4 = inlined_call_operand.vmem [shape: f32[32,128], index: 4, kind: input, shape index: {}]
  %s5 = inlined_call_operand.vmem [shape: f32[32,128], index: 5, kind: input, shape index: {}]
  %s6 = inlined_call_operand.vmem [shape: f32[1,128], index: 6, kind: input, shape index: {}]
  %s7 = inlined_call_operand.vmem [shape: f32[32,16], index: 7, kind: input, shape index: {}]
  %s8 = inlined_call_operand.vmem [shape: f32[1,16], index: 8, kind: input, shape index: {}]
  %s9 = inlined_call_operand.hbm [shape: f32[16,16], index: 9, kind: output, shape index: {0}]
  %s10 = inlined_call_operand.hbm [shape: f32[2,2,32], index: 10, kind: output, shape index: {1}]
  %s11 = inlined_call_operand.hbm [shape: f32[2,2,32], index: 11, kind: output, shape index: {2}]
  %12 = xla_tuple %s9, %s10, %s11
  %s13 = sld [smem:[#allocation0]]
  $region66: #{my_model_forward.1} parent=0
    _
  %s15 = ssub.s32 1, %s13
  %s16 = scalar_select 0, %s15, %s13
  $region1: #{my_model_forward.1} parent=0
    #allocation3 [shape = 'u8[8192]{0}', space=vmem, size = 0x2000, scoped, tag = 'input window, operand 1, single buffered']
    #allocation4 [shape = 's32[1]{0}', space=sflag, size = 0x4, scoped, tag = 'scoped memory for my_model_forward.1']
    #allocation5 [shape = 's32[1]{0}', space=sflag, size = 0x4, scoped, tag = 'scoped memory for my_model_forward.1']
    #allocation6 [shape = 'u8[8192]{0}', space=vmem, size = 0x2000, scoped, tag = 'output window, operand 0, single buffered']
    #allocation7 [shape = 'u8[2048]{0}', space=vmem, size = 0x800, scoped, tag = 'output window, operand 1, single buffered']
    #allocation8 [shape = 's32[1]{0}', space=sflag, size = 0x4, scoped, tag = 'scoped memory for my_model_forward.1']
    #allocation9 [shape = 'u8[2048]{0}', space=vmem, size = 0x800, scoped, tag = 'output window, operand 2, single buffered']
    %17 = vsyncpa [#allocation4], 0
    %18 = vsyncpa [#allocation5], 0
    %19 = vsyncpa [#allocation8], 0
    // Predicated region
    $region2: #{my_model_forward.1} parent=1 // pred_check
      _
    $region3: #{my_model_forward.1} parent=1 // pred_check_branch
      %21 = sbr.rel (0) target = $region5
    $region4: #{my_model_forward.1} parent=1 // pred_region
      _
    $region5: #{my_model_forward.1} parent=1 // pred_fallthru
      _
    // Predicated region
    $region6: #{my_model_forward.1} parent=1 // pred_check
      _
    $region7: #{my_model_forward.1} parent=1 // pred_check_branch
      %23 = sbr.rel (0) target = $region9
    $region8: #{my_model_forward.1} parent=1 // pred_region
      %s25 = ssub.s32 256, 256
      %26 = vsyncadd [#allocation4], %s25
      %s27 = sshll.u32 [#allocation3], 4
      %s28 = int_to_ptr.vmem [resolvable:$true] %s27
      %33 = dma.hbm_to_vmem [thread:$0]  %s1, 256, %s28, [#allocation4], 128, 128, 8
    $region9: #{my_model_forward.1} parent=1 // pred_fallthru
      _
    // Predicated region
    $region10: #{my_model_forward.1} parent=1 // pred_check
      _
    $region11: #{my_model_forward.1} parent=1 // pred_check_branch
      %35 = sbr.rel (0) target = $region13
    $region12: #{my_model_forward.1} parent=1 // pred_region
      _
    $region13: #{my_model_forward.1} parent=1 // pred_fallthru
      _
    // Predicated region
    $region14: #{my_model_forward.1} parent=1 // pred_check
      _
    $region15: #{my_model_forward.1} parent=1 // pred_check_branch
      %37 = sbr.rel (0) target = $region17
    $region16: #{my_model_forward.1} parent=1 // pred_region
      _
    $region17: #{my_model_forward.1} parent=1 // pred_fallthru
      _
    // Predicated region
    $region18: #{my_model_forward.1} parent=1 // pred_check
      _
    $region19: #{my_model_forward.1} parent=1 // pred_check_branch
      %39 = sbr.rel (0) target = $region21
    $region20: #{my_model_forward.1} parent=1 // pred_region
      _
    $region21: #{my_model_forward.1} parent=1 // pred_fallthru
      _
    // Predicated region
    $region22: #{my_model_forward.1} parent=1 // pred_check
      _
    $region23: #{my_model_forward.1} parent=1 // pred_check_branch
      %41 = sbr.rel (0) target = $region25
    $region24: #{my_model_forward.1} parent=1 // pred_region
      _
    $region25: #{my_model_forward.1} parent=1 // pred_fallthru
      _
    // Predicated region
    $region26: #{my_model_forward.1} parent=1 // pred_check
      _
    $region27: #{my_model_forward.1} parent=1 // pred_check_branch
      %43 = sbr.rel (0) target = $region29
    $region28: #{my_model_forward.1} parent=1 // pred_region
      _
    $region29: #{my_model_forward.1} parent=1 // pred_fallthru
      _
    // Predicated region
    $region30: #{my_model_forward.1} parent=1 // pred_check
      _
    $region31: #{my_model_forward.1} parent=1 // pred_check_branch
      %45 = sbr.rel (0) target = $region33
    $region32: #{my_model_forward.1} parent=1 // pred_region
      _
    $region33: #{my_model_forward.1} parent=1 // pred_fallthru
      _
    // Predicated region
    $region34: #{my_model_forward.1} parent=1 // pred_check
      _
    $region35: #{my_model_forward.1} parent=1 // pred_check_branch
      %47 = sbr.rel (0) target = $region37
    $region36: #{my_model_forward.1} parent=1 // pred_region
      _
    $region37: #{my_model_forward.1} parent=1 // pred_fallthru
      _
    // Predicated region
    $region38: #{my_model_forward.1} parent=1 // pred_check
      _
    $region39: #{my_model_forward.1} parent=1 // pred_check_branch
      %49 = sbr.rel (0) target = $region41
    $region40: #{my_model_forward.1} parent=1 // pred_region
      %50 = dma.done [#allocation4], 256
    $region41: #{my_model_forward.1} parent=1 // pred_fallthru
      _
    %v51 = vld [vmem:[%s0] sm:$0xff]
    %v52 = vld [vmem:[%s0 + $0x8] sm:$0xff]
    %v53 = vld [vmem:[#allocation3] sm:$0xff]
    %v54 = vld [vmem:[#allocation3 + $0x8] sm:$0xff]
    %v55 = vld [vmem:[%s2] sm:$0xff]
    %v56 = vld [vmem:[%s2 + $0x8] sm:$0xff]
    %v57 = vld [vmem:[%s2 + $0x10] sm:$0xff]
    %v58 = vld [vmem:[%s2 + $0x18] sm:$0xff]
    %v59 = vld [vmem:[%s3] sm:$0x1]
    %v61 = vlaneseq
    %v62 = vshrl.u32 %v61, 7
    %v63 = vsub.s32 0, %v62
    %v64 = vrot.slane %v59, %v63
    %vm66 = vcmask 130048
    %v68 = vsel %vm66, %v51, 0
    %v71 = vsel %vm66, %v52, 0
    %73 = vmatprep.subr.mxu0 0.0
    %74 = vmatpush1.msra.mxu0 %v53
    %75 = vmatprep.subr.mxu0 0.0
    %76 = vmatpush1.msra.mxu0 %v54
    %77 = vmatprep.subr.mxu0 0.0
    %78 = vmatpush1.msra.mxu0 0.0
    %79 = vmatprep.subr.mxu0 0.0
    %80 = vmatpush1.msra.mxu0 0.0
    %81 = vmatprep.subr.mxu0 0.0
    %82 = vmatpush1.msra.mxu0 0.0
    %83 = vmatprep.subr.mxu0 0.0
    %84 = vmatpush1.msra.mxu0 0.0
    %85 = vmatprep.subr.mxu0 0.0
    %86 = vmatpush1.msra.mxu0 0.0
    %87 = vmatprep.subr.mxu0 0.0
    %88 = vmatpush1.msra.mxu0 0.0
    %89 = vmatprep.subr.mxu0 0.0
    %90 = vmatpush1.msra.mxu0 0.0
    %91 = vmatprep.subr.mxu0 0.0
    %92 = vmatpush1.msra.mxu0 0.0
    %93 = vmatprep.subr.mxu0 0.0
    %94 = vmatpush1.msra.mxu0 0.0
    %95 = vmatprep.subr.mxu0 0.0
    %96 = vmatpush1.msra.mxu0 0.0
    %97 = vmatprep.subr.mxu0 0.0
    %98 = vmatpush1.msra.mxu0 0.0
    %99 = vmatprep.subr.mxu0 0.0
    %100 = vmatpush1.msra.mxu0 0.0
    %101 = vmatprep.subr.mxu0 0.0
    %102 = vmatpush1.msra.mxu0 0.0
    %103 = vmatprep.subr.mxu0 0.0
    %104 = vmatpush1.msra.mxu0 0.0
    %105 = vmatprep.subr.mxu0 0.0
    %106 = vmatpush1.msra.mxu0 0.0
    %107 = vmatprep.subr.mxu0 0.0
    %108 = vmatpush1.msra.mxu0 0.0
    %109 = vmatprep.subr.mxu0 0.0
    %110 = vmatpush1.msra.mxu0 0.0
    %111 = vmatprep.subr.mxu0 0.0
    %112 = vmatpush1.msra.mxu0 0.0
    %113 = vmatprep.subr.mxu0 0.0
    %114 = vmatpush1.msra.mxu0 0.0
    %115 = vmatprep.subr.mxu0 0.0
    %116 = vmatpush1.msra.mxu0 0.0
    %117 = vmatprep.subr.mxu0 0.0
    %118 = vmatpush1.msra.mxu0 0.0
    %119 = vmatprep.subr.mxu0 0.0
    %120 = vmatpush1.msra.mxu0 0.0
    %121 = vmatprep.subr.mxu0 0.0
    %122 = vmatpush1.msra.mxu0 0.0
    %123 = vmatprep.subr.mxu0 0.0
    %124 = vmatpush1.msra.mxu0 0.0
    %125 = vmatprep.subr.mxu0 0.0
    %126 = vmatpush1.msra.mxu0 0.0
    %127 = vmatprep.subr.mxu0 0.0
    %128 = vmatpush1.msra.mxu0 0.0
    %129 = vmatprep.subr.mxu0 0.0
    %130 = vmatpush1.msra.mxu0 0.0
    %131 = vmatprep.subr.mxu0 0.0
    %132 = vmatpush1.msra.mxu0 0.0
    %133 = vmatprep.subr.mxu0 0.0
    %134 = vmatpush1.msra.mxu0 0.0
    %135 = vmatprep.subr.mxu0 0.0
    %136 = vmatpush1.msra.mxu0 0.0
    %137 = vmatprep.mubr.f32.mxu0 0.0
    %138 = vmatmul.mubr.f32.gmra.mrb[0].mxu0 %v68
    %v139 = vpop.f32.mrb[0].mxu0
    %v140 = vadd.f32 %v64, %v139
    %v141 = vpop.f32.mrb[0].mxu0
    %142 = vmatprep.mubr.f32.mxu0 0.0
    %143 = vmatmul.mubr.f32.gmra.mrb[0].mxu0 %v71
    %v144 = vpop.f32.mrb[0].mxu0
    %v145 = vadd.f32 %v64, %v144
    %v146 = vpop.f32.mrb[0].mxu0
    %147 = vdwg.mxu0
    %vm148 = vcmask 261120
    %v150 = vsel %vm148, 0.0, 0
    %152 = vmatprep.subr.mxu0 0.0
    %153 = vmatpush1.msra.mxu0 %v55
    %154 = vmatprep.subr.mxu0 0.0
    %155 = vmatpush1.msra.mxu0 %v56
    %156 = vmatprep.subr.mxu0 0.0
    %157 = vmatpush1.msra.mxu0 %v57
    %158 = vmatprep.subr.mxu0 0.0
    %159 = vmatpush1.msra.mxu0 %v58
    %160 = vmatprep.subr.mxu0 0.0
    %161 = vmatpush1.msra.mxu0 0.0
    %162 = vmatprep.subr.mxu0 0.0
    %163 = vmatpush1.msra.mxu0 0.0
    %164 = vmatprep.subr.mxu0 0.0
    %165 = vmatpush1.msra.mxu0 0.0
    %166 = vmatprep.subr.mxu0 0.0
    %167 = vmatpush1.msra.mxu0 0.0
    %168 = vmatprep.subr.mxu0 0.0
    %169 = vmatpush1.msra.mxu0 0.0
    %170 = vmatprep.subr.mxu0 0.0
    %171 = vmatpush1.msra.mxu0 0.0
    %172 = vmatprep.subr.mxu0 0.0
    %173 = vmatpush1.msra.mxu0 0.0
    %174 = vmatprep.subr.mxu0 0.0
    %175 = vmatpush1.msra.mxu0 0.0
    %176 = vmatprep.subr.mxu0 0.0
    %177 = vmatpush1.msra.mxu0 0.0
    %178 = vmatprep.subr.mxu0 0.0
    %179 = vmatpush1.msra.mxu0 0.0
    %180 = vmatprep.subr.mxu0 0.0
    %181 = vmatpush1.msra.mxu0 0.0
    %182 = vmatprep.subr.mxu0 0.0
    %183 = vmatpush1.msra.mxu0 0.0
    %184 = vmatprep.subr.mxu0 0.0
    %185 = vmatpush1.msra.mxu0 0.0
    %186 = vmatprep.subr.mxu0 0.0
    %187 = vmatpush1.msra.mxu0 0.0
    %188 = vmatprep.subr.mxu0 0.0
    %189 = vmatpush1.msra.mxu0 0.0
    %190 = vmatprep.subr.mxu0 0.0
    %191 = vmatpush1.msra.mxu0 0.0
    %192 = vmatprep.subr.mxu0 0.0
    %193 = vmatpush1.msra.mxu0 0.0
    %194 = vmatprep.subr.mxu0 0.0
    %195 = vmatpush1.msra.mxu0 0.0
    %196 = vmatprep.subr.mxu0 0.0
    %197 = vmatpush1.msra.mxu0 0.0
    %198 = vmatprep.subr.mxu0 0.0
    %199 = vmatpush1.msra.mxu0 0.0
    %200 = vmatprep.subr.mxu0 0.0
    %201 = vmatpush1.msra.mxu0 0.0
    %202 = vmatprep.subr.mxu0 0.0
    %203 = vmatpush1.msra.mxu0 0.0
    %204 = vmatprep.subr.mxu0 0.0
    %205 = vmatpush1.msra.mxu0 0.0
    %206 = vmatprep.subr.mxu0 0.0
    %207 = vmatpush1.msra.mxu0 0.0
    %208 = vmatprep.subr.mxu0 0.0
    %209 = vmatpush1.msra.mxu0 0.0
    %210 = vmatprep.subr.mxu0 0.0
    %211 = vmatpush1.msra.mxu0 0.0
    %212 = vmatprep.subr.mxu0 0.0
    %213 = vmatpush1.msra.mxu0 0.0
    %214 = vmatprep.subr.mxu0 0.0
    %215 = vmatpush1.msra.mxu0 0.0
    %216 = vmatprep.mubr.f32.mxu0 0.0
    %217 = vmatmul.mubr.f32.gmra.mrb[0].mxu0 %v150
    %v218 = vpop.f32.mrb[0].mxu0
    %v219 = vadd.f32 0.0, %v218
    %v220 = vpop.f32.mrb[0].mxu0
    %221 = vdwg.mxu0
    %v223 = vrot.slane %v219, 1
    %v226 = vadd.f32 %v140, %v219
    %v227 = vadd.f32 %v145, %v223
    %v228 = vxor.u32 %v226, 2147483648
    %v229 = vxor.u32 %v227, 2147483648
    %v230 = vmul.f32 %v228, 1.442695
    %v231 = vpow.pop %v230
    %v232 = vmul.f32 %v229, 1.442695
    %v233 = vpow.pop %v232
    %v234 = vadd.f32 %v231, 1.0
    %v235 = vadd.f32 %v233, 1.0
    %v236 = vrcp.pop %v234
    %v237 = vmul.f32 1.0, %v236
    %v238 = vrcp.pop %v235
    %v239 = vmul.f32 1.0, %v238
    %v240 = vtanh.pop %v226
    %v241 = vtanh.pop %v227
    %v242 = vmul.f32 %v237, 0.0
    %v243 = vmul.f32 %v239, 0.0
    %246 = vrot.lane.b32.xlu0 %v240, 64
    %v247 = vpop.permute.xlu0 %246
    %248 = vrot.lane.b32.xlu0 %v241, 64
    %v249 = vpop.permute.xlu0 %248
    %v252 = vmul.f32 %v237, %v247
    %v253 = vmul.f32 %v239, %v249
    %256 = vrot.lane.b32.xlu0 %v252, 32
    %v257 = vpop.permute.xlu0 %256
    %258 = vrot.lane.b32.xlu0 %v253, 32
    %v259 = vpop.permute.xlu0 %258
    %v262 = vadd.f32 %v242, %v257
    %v263 = vadd.f32 %v243, %v259
    %v264 = vtanh.pop %v262
    %v265 = vtanh.pop %v263
    %268 = vrot.lane.b32.xlu0 %v264, 64
    %v269 = vpop.permute.xlu0 %268
    %270 = vrot.lane.b32.xlu0 %v265, 64
    %v271 = vpop.permute.xlu0 %270
    %v274 = vmul.f32 %v237, %v269
    %v275 = vmul.f32 %v239, %v271
    %278 = vrot.lane.b32.xlu0 %v274, 32
    %v279 = vpop.permute.xlu0 %278
    %280 = vrot.lane.b32.xlu0 %v275, 32
    %v281 = vpop.permute.xlu0 %280
    %vm284 = vcmask 253952
    %285 = vst.msk [vmem:[#allocation2] sm:$0x1] %vm284, %v279
    %286 = vst.msk [vmem:[#allocation2 + $0x8] sm:$0x1] %vm284, %v281
    %v287 = vrot.slane %v275, 7
    %vm288 = vcmask 1041409
    %v289 = vsel %vm288, %v287, %v274
    %290 = vrot.lane.b32.xlu0 %v289, 32
    %v291 = vpop.permute.xlu0 %290
    %v292 = vsel %vm148, %v291, 0
    %294 = vmatprep.subr.mxu0 0.0
    %295 = vmatpush1.msra.mxu0 %v55
    %296 = vmatprep.subr.mxu0 0.0
    %297 = vmatpush1.msra.mxu0 %v56
    %298 = vmatprep.subr.mxu0 0.0
    %299 = vmatpush1.msra.mxu0 %v57
    %300 = vmatprep.subr.mxu0 0.0
    %301 = vmatpush1.msra.mxu0 %v58
    %302 = vmatprep.subr.mxu0 0.0
    %303 = vmatpush1.msra.mxu0 0.0
    %304 = vmatprep.subr.mxu0 0.0
    %305 = vmatpush1.msra.mxu0 0.0
    %306 = vmatprep.subr.mxu0 0.0
    %307 = vmatpush1.msra.mxu0 0.0
    %308 = vmatprep.subr.mxu0 0.0
    %309 = vmatpush1.msra.mxu0 0.0
    %310 = vmatprep.subr.mxu0 0.0
    %311 = vmatpush1.msra.mxu0 0.0
    %312 = vmatprep.subr.mxu0 0.0
    %313 = vmatpush1.msra.mxu0 0.0
    %314 = vmatprep.subr.mxu0 0.0
    %315 = vmatpush1.msra.mxu0 0.0
    %316 = vmatprep.subr.mxu0 0.0
    %317 = vmatpush1.msra.mxu0 0.0
    %318 = vmatprep.subr.mxu0 0.0
    %319 = vmatpush1.msra.mxu0 0.0
    %320 = vmatprep.subr.mxu0 0.0
    %321 = vmatpush1.msra.mxu0 0.0
    %322 = vmatprep.subr.mxu0 0.0
    %323 = vmatpush1.msra.mxu0 0.0
    %324 = vmatprep.subr.mxu0 0.0
    %325 = vmatpush1.msra.mxu0 0.0
    %326 = vmatprep.subr.mxu0 0.0
    %327 = vmatpush1.msra.mxu0 0.0
    %328 = vmatprep.subr.mxu0 0.0
    %329 = vmatpush1.msra.mxu0 0.0
    %330 = vmatprep.subr.mxu0 0.0
    %331 = vmatpush1.msra.mxu0 0.0
    %332 = vmatprep.subr.mxu0 0.0
    %333 = vmatpush1.msra.mxu0 0.0
    %334 = vmatprep.subr.mxu0 0.0
    %335 = vmatpush1.msra.mxu0 0.0
    %336 = vmatprep.subr.mxu0 0.0
    %337 = vmatpush1.msra.mxu0 0.0
    %338 = vmatprep.subr.mxu0 0.0
    %339 = vmatpush1.msra.mxu0 0.0
    %340 = vmatprep.subr.mxu0 0.0
    %341 = vmatpush1.msra.mxu0 0.0
    %342 = vmatprep.subr.mxu0 0.0
    %343 = vmatpush1.msra.mxu0 0.0
    %344 = vmatprep.subr.mxu0 0.0
    %345 = vmatpush1.msra.mxu0 0.0
    %346 = vmatprep.subr.mxu0 0.0
    %347 = vmatpush1.msra.mxu0 0.0
    %348 = vmatprep.subr.mxu0 0.0
    %349 = vmatpush1.msra.mxu0 0.0
    %350 = vmatprep.subr.mxu0 0.0
    %351 = vmatpush1.msra.mxu0 0.0
    %352 = vmatprep.subr.mxu0 0.0
    %353 = vmatpush1.msra.mxu0 0.0
    %354 = vmatprep.subr.mxu0 0.0
    %355 = vmatpush1.msra.mxu0 0.0
    %356 = vmatprep.subr.mxu0 0.0
    %357 = vmatpush1.msra.mxu0 0.0
    %358 = vmatprep.mubr.f32.mxu0 0.0
    %359 = vmatmul.mubr.f32.gmra.mrb[0].mxu0 %v292
    %v360 = vpop.f32.mrb[0].mxu0
    %v361 = vadd.f32 0.0, %v360
    %v362 = vpop.f32.mrb[0].mxu0
    %363 = vdwg.mxu0
    %v365 = vrot.slane %v361, 7
    %v368 = vadd.f32 %v140, %v365
    %v369 = vadd.f32 %v145, %v361
    %v370 = vxor.u32 %v368, 2147483648
    %v371 = vxor.u32 %v369, 2147483648
    %v372 = vmul.f32 %v370, 1.442695
    %v373 = vpow.pop %v372
    %v374 = vmul.f32 %v371, 1.442695
    %v375 = vpow.pop %v374
    %v376 = vadd.f32 %v373, 1.0
    %v377 = vadd.f32 %v375, 1.0
    %v378 = vrcp.pop %v376
    %v379 = vmul.f32 1.0, %v378
    %v380 = vrcp.pop %v377
    %v381 = vmul.f32 1.0, %v380
    %v382 = vtanh.pop %v368
    %v383 = vtanh.pop %v369
    %v386 = vrot.slane %v262, 7
    %v387 = vrot.slane %v263, 7
    %v390 = vmul.f32 %v379, %v386
    %v391 = vmul.f32 %v381, %v387
    %394 = vrot.lane.b32.xlu0 %v382, 64
    %v395 = vpop.permute.xlu0 %394
    %396 = vrot.lane.b32.xlu0 %v383, 64
    %v397 = vpop.permute.xlu0 %396
    %v400 = vmul.f32 %v379, %v395
    %v401 = vmul.f32 %v381, %v397
    %404 = vrot.lane.b32.xlu0 %v400, 32
    %v405 = vpop.permute.xlu0 %404
    %406 = vrot.lane.b32.xlu0 %v401, 32
    %v407 = vpop.permute.xlu0 %406
    %v410 = vadd.f32 %v390, %v405
    %v411 = vadd.f32 %v391, %v407
    %v412 = vtanh.pop %v410
    %v413 = vtanh.pop %v411
    %416 = vrot.lane.b32.xlu0 %v412, 64
    %v417 = vpop.permute.xlu0 %416
    %418 = vrot.lane.b32.xlu0 %v413, 64
    %v419 = vpop.permute.xlu0 %418
    %v422 = vmul.f32 %v379, %v417
    %v423 = vmul.f32 %v381, %v419
    %426 = vrot.lane.b32.xlu0 %v422, 32
    %v427 = vpop.permute.xlu0 %426
    %428 = vrot.lane.b32.xlu0 %v423, 32
    %v429 = vpop.permute.xlu0 %428
    %vm432 = vcmask 254977
    %433 = vst.msk [vmem:[#allocation2] sm:$0x2] %vm432, %v427
    %434 = vst.msk [vmem:[#allocation2 + $0x8] sm:$0x2] %vm432, %v429
    %v435 = vrot.slane %v422, 1
    %v436 = vsel %vm288, %v423, %v435
    %437 = vrot.lane.b32.xlu0 %v436, 32
    %v438 = vpop.permute.xlu0 %437
    %v439 = vsel %vm148, %v438, 0
    %441 = vmatprep.subr.mxu0 0.0
    %442 = vmatpush1.msra.mxu0 %v55
    %443 = vmatprep.subr.mxu0 0.0
    %444 = vmatpush1.msra.mxu0 %v56
    %445 = vmatprep.subr.mxu0 0.0
    %446 = vmatpush1.msra.mxu0 %v57
    %447 = vmatprep.subr.mxu0 0.0
    %448 = vmatpush1.msra.mxu0 %v58
    %449 = vmatprep.subr.mxu0 0.0
    %450 = vmatpush1.msra.mxu0 0.0
    %451 = vmatprep.subr.mxu0 0.0
    %452 = vmatpush1.msra.mxu0 0.0
    %453 = vmatprep.subr.mxu0 0.0
    %454 = vmatpush1.msra.mxu0 0.0
    %455 = vmatprep.subr.mxu0 0.0
    %456 = vmatpush1.msra.mxu0 0.0
    %457 = vmatprep.subr.mxu0 0.0
    %458 = vmatpush1.msra.mxu0 0.0
    %459 = vmatprep.subr.mxu0 0.0
    %460 = vmatpush1.msra.mxu0 0.0
    %461 = vmatprep.subr.mxu0 0.0
    %462 = vmatpush1.msra.mxu0 0.0
    %463 = vmatprep.subr.mxu0 0.0
    %464 = vmatpush1.msra.mxu0 0.0
    %465 = vmatprep.subr.mxu0 0.0
    %466 = vmatpush1.msra.mxu0 0.0
    %467 = vmatprep.subr.mxu0 0.0
    %468 = vmatpush1.msra.mxu0 0.0
    %469 = vmatprep.subr.mxu0 0.0
    %470 = vmatpush1.msra.mxu0 0.0
    %471 = vmatprep.subr.mxu0 0.0
    %472 = vmatpush1.msra.mxu0 0.0
    %473 = vmatprep.subr.mxu0 0.0
    %474 = vmatpush1.msra.mxu0 0.0
    %475 = vmatprep.subr.mxu0 0.0
    %476 = vmatpush1.msra.mxu0 0.0
    %477 = vmatprep.subr.mxu0 0.0
    %478 = vmatpush1.msra.mxu0 0.0
    %479 = vmatprep.subr.mxu0 0.0
    %480 = vmatpush1.msra.mxu0 0.0
    %481 = vmatprep.subr.mxu0 0.0
    %482 = vmatpush1.msra.mxu0 0.0
    %483 = vmatprep.subr.mxu0 0.0
    %484 = vmatpush1.msra.mxu0 0.0
    %485 = vmatprep.subr.mxu0 0.0
    %486 = vmatpush1.msra.mxu0 0.0
    %487 = vmatprep.subr.mxu0 0.0
    %488 = vmatpush1.msra.mxu0 0.0
    %489 = vmatprep.subr.mxu0 0.0
    %490 = vmatpush1.msra.mxu0 0.0
    %491 = vmatprep.subr.mxu0 0.0
    %492 = vmatpush1.msra.mxu0 0.0
    %493 = vmatprep.subr.mxu0 0.0
    %494 = vmatpush1.msra.mxu0 0.0
    %495 = vmatprep.subr.mxu0 0.0
    %496 = vmatpush1.msra.mxu0 0.0
    %497 = vmatprep.subr.mxu0 0.0
    %498 = vmatpush1.msra.mxu0 0.0
    %499 = vmatprep.subr.mxu0 0.0
    %500 = vmatpush1.msra.mxu0 0.0
    %501 = vmatprep.subr.mxu0 0.0
    %502 = vmatpush1.msra.mxu0 0.0
    %503 = vmatprep.subr.mxu0 0.0
    %504 = vmatpush1.msra.mxu0 0.0
    %505 = vmatprep.mubr.f32.mxu0 0.0
    %506 = vmatmul.mubr.f32.gmra.mrb[0].mxu0 %v439
    %v507 = vpop.f32.mrb[0].mxu0
    %v508 = vadd.f32 0.0, %v507
    %v509 = vpop.f32.mrb[0].mxu0
    %510 = vdwg.mxu0
    %v512 = vrot.slane %v508, 6
    %v513 = vrot.slane %v508, 7
    %v516 = vadd.f32 %v140, %v512
    %v517 = vadd.f32 %v145, %v513
    %v518 = vxor.u32 %v516, 2147483648
    %v519 = vxor.u32 %v517, 2147483648
    %v520 = vmul.f32 %v518, 1.442695
    %v521 = vpow.pop %v520
    %v522 = vmul.f32 %v519, 1.442695
    %v523 = vpow.pop %v522
    %v524 = vadd.f32 %v521, 1.0
    %v525 = vadd.f32 %v523, 1.0
    %v526 = vrcp.pop %v524
    %v527 = vmul.f32 1.0, %v526
    %v528 = vrcp.pop %v525
    %v529 = vmul.f32 1.0, %v528
    %v530 = vtanh.pop %v516
    %v531 = vtanh.pop %v517
    %v534 = vrot.slane %v410, 7
    %v535 = vrot.slane %v411, 7
    %v538 = vmul.f32 %v527, %v534
    %v539 = vmul.f32 %v529, %v535
    %542 = vrot.lane.b32.xlu0 %v530, 64
    %v543 = vpop.permute.xlu0 %542
    %544 = vrot.lane.b32.xlu0 %v531, 64
    %v545 = vpop.permute.xlu0 %544
    %v548 = vmul.f32 %v527, %v543
    %v549 = vmul.f32 %v529, %v545
    %552 = vrot.lane.b32.xlu0 %v548, 32
    %v553 = vpop.permute.xlu0 %552
    %554 = vrot.lane.b32.xlu0 %v549, 32
    %v555 = vpop.permute.xlu0 %554
    %v558 = vadd.f32 %v538, %v553
    %v559 = vadd.f32 %v539, %v555
    %v560 = vtanh.pop %v558
    %v561 = vtanh.pop %v559
    %564 = vrot.lane.b32.xlu0 %v560, 64
    %v565 = vpop.permute.xlu0 %564
    %566 = vrot.lane.b32.xlu0 %v561, 64
    %v567 = vpop.permute.xlu0 %566
    %v570 = vmul.f32 %v527, %v565
    %v571 = vmul.f32 %v529, %v567
    %574 = vrot.lane.b32.xlu0 %v570, 32
    %v575 = vpop.permute.xlu0 %574
    %576 = vrot.lane.b32.xlu0 %v571, 32
    %v577 = vpop.permute.xlu0 %576
    %vm580 = vcmask 256002
    %581 = vst.msk [vmem:[#allocation2] sm:$0x4] %vm580, %v575
    %582 = vst.msk [vmem:[#allocation2 + $0x8] sm:$0x4] %vm580, %v577
    %v583 = vrot.slane %v570, 2
    %v584 = vrot.slane %v571, 1
    %v585 = vsel %vm288, %v584, %v583
    %586 = vrot.lane.b32.xlu0 %v585, 32
    %v587 = vpop.permute.xlu0 %586
    %v588 = vsel %vm148, %v587, 0
    %590 = vmatprep.subr.mxu0 0.0
    %591 = vmatpush1.msra.mxu0 %v55
    %592 = vmatprep.subr.mxu0 0.0
    %593 = vmatpush1.msra.mxu0 %v56
    %594 = vmatprep.subr.mxu0 0.0
    %595 = vmatpush1.msra.mxu0 %v57
    %596 = vmatprep.subr.mxu0 0.0
    %597 = vmatpush1.msra.mxu0 %v58
    %598 = vmatprep.subr.mxu0 0.0
    %599 = vmatpush1.msra.mxu0 0.0
    %600 = vmatprep.subr.mxu0 0.0
    %601 = vmatpush1.msra.mxu0 0.0
    %602 = vmatprep.subr.mxu0 0.0
    %603 = vmatpush1.msra.mxu0 0.0
    %604 = vmatprep.subr.mxu0 0.0
    %605 = vmatpush1.msra.mxu0 0.0
    %606 = vmatprep.subr.mxu0 0.0
    %607 = vmatpush1.msra.mxu0 0.0
    %608 = vmatprep.subr.mxu0 0.0
    %609 = vmatpush1.msra.mxu0 0.0
    %610 = vmatprep.subr.mxu0 0.0
    %611 = vmatpush1.msra.mxu0 0.0
    %612 = vmatprep.subr.mxu0 0.0
    %613 = vmatpush1.msra.mxu0 0.0
    %614 = vmatprep.subr.mxu0 0.0
    %615 = vmatpush1.msra.mxu0 0.0
    %616 = vmatprep.subr.mxu0 0.0
    %617 = vmatpush1.msra.mxu0 0.0
    %618 = vmatprep.subr.mxu0 0.0
    %619 = vmatpush1.msra.mxu0 0.0
    %620 = vmatprep.subr.mxu0 0.0
    %621 = vmatpush1.msra.mxu0 0.0
    %622 = vmatprep.subr.mxu0 0.0
    %623 = vmatpush1.msra.mxu0 0.0
    %624 = vmatprep.subr.mxu0 0.0
    %625 = vmatpush1.msra.mxu0 0.0
    %626 = vmatprep.subr.mxu0 0.0
    %627 = vmatpush1.msra.mxu0 0.0
    %628 = vmatprep.subr.mxu0 0.0
    %629 = vmatpush1.msra.mxu0 0.0
    %630 = vmatprep.subr.mxu0 0.0
    %631 = vmatpush1.msra.mxu0 0.0
    %632 = vmatprep.subr.mxu0 0.0
    %633 = vmatpush1.msra.mxu0 0.0
    %634 = vmatprep.subr.mxu0 0.0
    %635 = vmatpush1.msra.mxu0 0.0
    %636 = vmatprep.subr.mxu0 0.0
    %637 = vmatpush1.msra.mxu0 0.0
    %638 = vmatprep.subr.mxu0 0.0
    %639 = vmatpush1.msra.mxu0 0.0
    %640 = vmatprep.subr.mxu0 0.0
    %641 = vmatpush1.msra.mxu0 0.0
    %642 = vmatprep.subr.mxu0 0.0
    %643 = vmatpush1.msra.mxu0 0.0
    %644 = vmatprep.subr.mxu0 0.0
    %645 = vmatpush1.msra.mxu0 0.0
    %646 = vmatprep.subr.mxu0 0.0
    %647 = vmatpush1.msra.mxu0 0.0
    %648 = vmatprep.subr.mxu0 0.0
    %649 = vmatpush1.msra.mxu0 0.0
    %650 = vmatprep.subr.mxu0 0.0
    %651 = vmatpush1.msra.mxu0 0.0
    %652 = vmatprep.subr.mxu0 0.0
    %653 = vmatpush1.msra.mxu0 0.0
    %654 = vmatprep.mubr.f32.mxu0 0.0
    %655 = vmatmul.mubr.f32.gmra.mrb[0].mxu0 %v588
    %v656 = vpop.f32.mrb[0].mxu0
    %v657 = vadd.f32 0.0, %v656
    %v658 = vpop.f32.mrb[0].mxu0
    %659 = vdwg.mxu0
    %v661 = vrot.slane %v657, 5
    %v662 = vrot.slane %v657, 6
    %v665 = vadd.f32 %v140, %v661
    %v666 = vadd.f32 %v145, %v662
    %v667 = vxor.u32 %v665, 2147483648
    %v668 = vxor.u32 %v666, 2147483648
    %v669 = vmul.f32 %v667, 1.442695
    %v670 = vpow.pop %v669
    %v671 = vmul.f32 %v668, 1.442695
    %v672 = vpow.pop %v671
    %v673 = vadd.f32 %v670, 1.0
    %v674 = vadd.f32 %v672, 1.0
    %v675 = vrcp.pop %v673
    %v676 = vmul.f32 1.0, %v675
    %v677 = vrcp.pop %v674
    %v678 = vmul.f32 1.0, %v677
    %v679 = vtanh.pop %v665
    %v680 = vtanh.pop %v666
    %v683 = vrot.slane %v558, 7
    %v684 = vrot.slane %v559, 7
    %v687 = vmul.f32 %v676, %v683
    %v688 = vmul.f32 %v678, %v684
    %691 = vrot.lane.b32.xlu0 %v679, 64
    %v692 = vpop.permute.xlu0 %691
    %693 = vrot.lane.b32.xlu0 %v680, 64
    %v694 = vpop.permute.xlu0 %693
    %v697 = vmul.f32 %v676, %v692
    %v698 = vmul.f32 %v678, %v694
    %701 = vrot.lane.b32.xlu0 %v697, 32
    %v702 = vpop.permute.xlu0 %701
    %703 = vrot.lane.b32.xlu0 %v698, 32
    %v704 = vpop.permute.xlu0 %703
    %v707 = vadd.f32 %v687, %v702
    %v708 = vadd.f32 %v688, %v704
    %v709 = vtanh.pop %v707
    %v710 = vtanh.pop %v708
    %713 = vrot.lane.b32.xlu0 %v709, 64
    %v714 = vpop.permute.xlu0 %713
    %715 = vrot.lane.b32.xlu0 %v710, 64
    %v716 = vpop.permute.xlu0 %715
    %v719 = vmul.f32 %v676, %v714
    %v720 = vmul.f32 %v678, %v716
    %723 = vrot.lane.b32.xlu0 %v719, 32
    %v724 = vpop.permute.xlu0 %723
    %725 = vrot.lane.b32.xlu0 %v720, 32
    %v726 = vpop.permute.xlu0 %725
    %vm729 = vcmask 257027
    %730 = vst.msk [vmem:[#allocation2] sm:$0x8] %vm729, %v724
    %731 = vst.msk [vmem:[#allocation2 + $0x8] sm:$0x8] %vm729, %v726
    %v732 = vrot.slane %v719, 3
    %v733 = vrot.slane %v720, 2
    %v734 = vsel %vm288, %v733, %v732
    %735 = vrot.lane.b32.xlu0 %v734, 32
    %v736 = vpop.permute.xlu0 %735
    %v737 = vsel %vm148, %v736, 0
    %739 = vmatprep.subr.mxu0 0.0
    %740 = vmatpush1.msra.mxu0 %v55
    %741 = vmatprep.subr.mxu0 0.0
    %742 = vmatpush1.msra.mxu0 %v56
    %743 = vmatprep.subr.mxu0 0.0
    %744 = vmatpush1.msra.mxu0 %v57
    %745 = vmatprep.subr.mxu0 0.0
    %746 = vmatpush1.msra.mxu0 %v58
    %747 = vmatprep.subr.mxu0 0.0
    %748 = vmatpush1.msra.mxu0 0.0
    %749 = vmatprep.subr.mxu0 0.0
    %750 = vmatpush1.msra.mxu0 0.0
    %751 = vmatprep.subr.mxu0 0.0
    %752 = vmatpush1.msra.mxu0 0.0
    %753 = vmatprep.subr.mxu0 0.0
    %754 = vmatpush1.msra.mxu0 0.0
    %755 = vmatprep.subr.mxu0 0.0
    %756 = vmatpush1.msra.mxu0 0.0
    %757 = vmatprep.subr.mxu0 0.0
    %758 = vmatpush1.msra.mxu0 0.0
    %759 = vmatprep.subr.mxu0 0.0
    %760 = vmatpush1.msra.mxu0 0.0
    %761 = vmatprep.subr.mxu0 0.0
    %762 = vmatpush1.msra.mxu0 0.0
    %763 = vmatprep.subr.mxu0 0.0
    %764 = vmatpush1.msra.mxu0 0.0
    %765 = vmatprep.subr.mxu0 0.0
    %766 = vmatpush1.msra.mxu0 0.0
    %767 = vmatprep.subr.mxu0 0.0
    %768 = vmatpush1.msra.mxu0 0.0
    %769 = vmatprep.subr.mxu0 0.0
    %770 = vmatpush1.msra.mxu0 0.0
    %771 = vmatprep.subr.mxu0 0.0
    %772 = vmatpush1.msra.mxu0 0.0
    %773 = vmatprep.subr.mxu0 0.0
    %774 = vmatpush1.msra.mxu0 0.0
    %775 = vmatprep.subr.mxu0 0.0
    %776 = vmatpush1.msra.mxu0 0.0
    %777 = vmatprep.subr.mxu0 0.0
    %778 = vmatpush1.msra.mxu0 0.0
    %779 = vmatprep.subr.mxu0 0.0
    %780 = vmatpush1.msra.mxu0 0.0
    %781 = vmatprep.subr.mxu0 0.0
    %782 = vmatpush1.msra.mxu0 0.0
    %783 = vmatprep.subr.mxu0 0.0
    %784 = vmatpush1.msra.mxu0 0.0
    %785 = vmatprep.subr.mxu0 0.0
    %786 = vmatpush1.msra.mxu0 0.0
    %787 = vmatprep.subr.mxu0 0.0
    %788 = vmatpush1.msra.mxu0 0.0
    %789 = vmatprep.subr.mxu0 0.0
    %790 = vmatpush1.msra.mxu0 0.0
    %791 = vmatprep.subr.mxu0 0.0
    %792 = vmatpush1.msra.mxu0 0.0
    %793 = vmatprep.subr.mxu0 0.0
    %794 = vmatpush1.msra.mxu0 0.0
    %795 = vmatprep.subr.mxu0 0.0
    %796 = vmatpush1.msra.mxu0 0.0
    %797 = vmatprep.subr.mxu0 0.0
    %798 = vmatpush1.msra.mxu0 0.0
    %799 = vmatprep.subr.mxu0 0.0
    %800 = vmatpush1.msra.mxu0 0.0
    %801 = vmatprep.subr.mxu0 0.0
    %802 = vmatpush1.msra.mxu0 0.0
    %803 = vmatprep.mubr.f32.mxu0 0.0
    %804 = vmatmul.mubr.f32.gmra.mrb[0].mxu0 %v737
    %v805 = vpop.f32.mrb[0].mxu0
    %v806 = vadd.f32 0.0, %v805
    %v807 = vpop.f32.mrb[0].mxu0
    %808 = vdwg.mxu0
    %v810 = vrot.slane %v806, 4
    %v811 = vrot.slane %v806, 5
    %v814 = vadd.f32 %v140, %v810
    %v815 = vadd.f32 %v145, %v811
    %v816 = vxor.u32 %v814, 2147483648
    %v817 = vxor.u32 %v815, 2147483648
    %v818 = vmul.f32 %v816, 1.442695
    %v819 = vpow.pop %v818
    %v820 = vmul.f32 %v817, 1.442695
    %v821 = vpow.pop %v820
    %v822 = vadd.f32 %v819, 1.0
    %v823 = vadd.f32 %v821, 1.0
    %v824 = vrcp.pop %v822
    %v825 = vmul.f32 1.0, %v824
    %v826 = vrcp.pop %v823
    %v827 = vmul.f32 1.0, %v826
    %v828 = vtanh.pop %v814
    %v829 = vtanh.pop %v815
    %v832 = vrot.slane %v707, 7
    %v833 = vrot.slane %v708, 7
    %v836 = vmul.f32 %v825, %v832
    %v837 = vmul.f32 %v827, %v833
    %840 = vrot.lane.b32.xlu0 %v828, 64
    %v841 = vpop.permute.xlu0 %840
    %842 = vrot.lane.b32.xlu0 %v829, 64
    %v843 = vpop.permute.xlu0 %842
    %v846 = vmul.f32 %v825, %v841
    %v847 = vmul.f32 %v827, %v843
    %850 = vrot.lane.b32.xlu0 %v846, 32
    %v851 = vpop.permute.xlu0 %850
    %852 = vrot.lane.b32.xlu0 %v847, 32
    %v853 = vpop.permute.xlu0 %852
    %v856 = vadd.f32 %v836, %v851
    %v857 = vadd.f32 %v837, %v853
    %v858 = vtanh.pop %v856
    %v859 = vtanh.pop %v857
    %862 = vrot.lane.b32.xlu0 %v858, 64
    %v863 = vpop.permute.xlu0 %862
    %864 = vrot.lane.b32.xlu0 %v859, 64
    %v865 = vpop.permute.xlu0 %864
    %v868 = vmul.f32 %v825, %v863
    %v869 = vmul.f32 %v827, %v865
    %872 = vrot.lane.b32.xlu0 %v868, 32
    %v873 = vpop.permute.xlu0 %872
    %874 = vrot.lane.b32.xlu0 %v869, 32
    %v875 = vpop.permute.xlu0 %874
    %vm878 = vcmask 258052
    %879 = vst.msk [vmem:[#allocation2] sm:$0x10] %vm878, %v873
    %880 = vst.msk [vmem:[#allocation2 + $0x8] sm:$0x10] %vm878, %v875
    %v881 = vrot.slane %v868, 4
    %v882 = vrot.slane %v869, 3
    %v883 = vsel %vm288, %v882, %v881
    %884 = vrot.lane.b32.xlu0 %v883, 32
    %v885 = vpop.permute.xlu0 %884
    %v886 = vsel %vm148, %v885, 0
    %888 = vmatprep.subr.mxu0 0.0
    %889 = vmatpush1.msra.mxu0 %v55
    %890 = vmatprep.subr.mxu0 0.0
    %891 = vmatpush1.msra.mxu0 %v56
    %892 = vmatprep.subr.mxu0 0.0
    %893 = vmatpush1.msra.mxu0 %v57
    %894 = vmatprep.subr.mxu0 0.0
    %895 = vmatpush1.msra.mxu0 %v58
    %896 = vmatprep.subr.mxu0 0.0
    %897 = vmatpush1.msra.mxu0 0.0
    %898 = vmatprep.subr.mxu0 0.0
    %899 = vmatpush1.msra.mxu0 0.0
    %900 = vmatprep.subr.mxu0 0.0
    %901 = vmatpush1.msra.mxu0 0.0
    %902 = vmatprep.subr.mxu0 0.0
    %903 = vmatpush1.msra.mxu0 0.0
    %904 = vmatprep.subr.mxu0 0.0
    %905 = vmatpush1.msra.mxu0 0.0
    %906 = vmatprep.subr.mxu0 0.0
    %907 = vmatpush1.msra.mxu0 0.0
    %908 = vmatprep.subr.mxu0 0.0
    %909 = vmatpush1.msra.mxu0 0.0
    %910 = vmatprep.subr.mxu0 0.0
    %911 = vmatpush1.msra.mxu0 0.0
    %912 = vmatprep.subr.mxu0 0.0
    %913 = vmatpush1.msra.mxu0 0.0
    %914 = vmatprep.subr.mxu0 0.0
    %915 = vmatpush1.msra.mxu0 0.0
    %916 = vmatprep.subr.mxu0 0.0
    %917 = vmatpush1.msra.mxu0 0.0
    %918 = vmatprep.subr.mxu0 0.0
    %919 = vmatpush1.msra.mxu0 0.0
    %920 = vmatprep.subr.mxu0 0.0
    %921 = vmatpush1.msra.mxu0 0.0
    %922 = vmatprep.subr.mxu0 0.0
    %923 = vmatpush1.msra.mxu0 0.0
    %924 = vmatprep.subr.mxu0 0.0
    %925 = vmatpush1.msra.mxu0 0.0
    %926 = vmatprep.subr.mxu0 0.0
    %927 = vmatpush1.msra.mxu0 0.0
    %928 = vmatprep.subr.mxu0 0.0
    %929 = vmatpush1.msra.mxu0 0.0
    %930 = vmatprep.subr.mxu0 0.0
    %931 = vmatpush1.msra.mxu0 0.0
    %932 = vmatprep.subr.mxu0 0.0
    %933 = vmatpush1.msra.mxu0 0.0
    %934 = vmatprep.subr.mxu0 0.0
    %935 = vmatpush1.msra.mxu0 0.0
    %936 = vmatprep.subr.mxu0 0.0
    %937 = vmatpush1.msra.mxu0 0.0
    %938 = vmatprep.subr.mxu0 0.0
    %939 = vmatpush1.msra.mxu0 0.0
    %940 = vmatprep.subr.mxu0 0.0
    %941 = vmatpush1.msra.mxu0 0.0
    %942 = vmatprep.subr.mxu0 0.0
    %943 = vmatpush1.msra.mxu0 0.0
    %944 = vmatprep.subr.mxu0 0.0
    %945 = vmatpush1.msra.mxu0 0.0
    %946 = vmatprep.subr.mxu0 0.0
    %947 = vmatpush1.msra.mxu0 0.0
    %948 = vmatprep.subr.mxu0 0.0
    %949 = vmatpush1.msra.mxu0 0.0
    %950 = vmatprep.subr.mxu0 0.0
    %951 = vmatpush1.msra.mxu0 0.0
    %952 = vmatprep.mubr.f32.mxu0 0.0
    %953 = vmatmul.mubr.f32.gmra.mrb[0].mxu0 %v886
    %v954 = vpop.f32.mrb[0].mxu0
    %v955 = vadd.f32 0.0, %v954
    %v956 = vpop.f32.mrb[0].mxu0
    %957 = vdwg.mxu0
    %v959 = vrot.slane %v955, 3
    %v960 = vrot.slane %v955, 4
    %v963 = vadd.f32 %v140, %v959
    %v964 = vadd.f32 %v145, %v960
    %v965 = vxor.u32 %v963, 2147483648
    %v966 = vxor.u32 %v964, 2147483648
    %v967 = vmul.f32 %v965, 1.442695
    %v968 = vpow.pop %v967
    %v969 = vmul.f32 %v966, 1.442695
    %v970 = vpow.pop %v969
    %v971 = vadd.f32 %v968, 1.0
    %v972 = vadd.f32 %v970, 1.0
    %v973 = vrcp.pop %v971
    %v974 = vmul.f32 1.0, %v973
    %v975 = vrcp.pop %v972
    %v976 = vmul.f32 1.0, %v975
    %v977 = vtanh.pop %v963
    %v978 = vtanh.pop %v964
    %v981 = vrot.slane %v856, 7
    %v982 = vrot.slane %v857, 7
    %v985 = vmul.f32 %v974, %v981
    %v986 = vmul.f32 %v976, %v982
    %989 = vrot.lane.b32.xlu0 %v977, 64
    %v990 = vpop.permute.xlu0 %989
    %991 = vrot.lane.b32.xlu0 %v978, 64
    %v992 = vpop.permute.xlu0 %991
    %v995 = vmul.f32 %v974, %v990
    %v996 = vmul.f32 %v976, %v992
    %999 = vrot.lane.b32.xlu0 %v995, 32
    %v1000 = vpop.permute.xlu0 %999
    %1001 = vrot.lane.b32.xlu0 %v996, 32
    %v1002 = vpop.permute.xlu0 %1001
    %v1005 = vadd.f32 %v985, %v1000
    %v1006 = vadd.f32 %v986, %v1002
    %v1007 = vtanh.pop %v1005
    %v1008 = vtanh.pop %v1006
    %1011 = vrot.lane.b32.xlu0 %v1007, 64
    %v1012 = vpop.permute.xlu0 %1011
    %1013 = vrot.lane.b32.xlu0 %v1008, 64
    %v1014 = vpop.permute.xlu0 %1013
    %v1017 = vmul.f32 %v974, %v1012
    %v1018 = vmul.f32 %v976, %v1014
    %1021 = vrot.lane.b32.xlu0 %v1017, 32
    %v1022 = vpop.permute.xlu0 %1021
    %1023 = vrot.lane.b32.xlu0 %v1018, 32
    %v1024 = vpop.permute.xlu0 %1023
    %vm1027 = vcmask 259077
    %1028 = vst.msk [vmem:[#allocation2] sm:$0x20] %vm1027, %v1022
    %1029 = vst.msk [vmem:[#allocation2 + $0x8] sm:$0x20] %vm1027, %v1024
    %v1030 = vrot.slane %v1017, 5
    %v1031 = vrot.slane %v1018, 4
    %v1032 = vsel %vm288, %v1031, %v1030
    %1033 = vrot.lane.b32.xlu0 %v1032, 32
    %v1034 = vpop.permute.xlu0 %1033
    %v1035 = vsel %vm148, %v1034, 0
    %1037 = vmatprep.subr.mxu0 0.0
    %1038 = vmatpush1.msra.mxu0 %v55
    %1039 = vmatprep.subr.mxu0 0.0
    %1040 = vmatpush1.msra.mxu0 %v56
    %1041 = vmatprep.subr.mxu0 0.0
    %1042 = vmatpush1.msra.mxu0 %v57
    %1043 = vmatprep.subr.mxu0 0.0
    %1044 = vmatpush1.msra.mxu0 %v58
    %1045 = vmatprep.subr.mxu0 0.0
    %1046 = vmatpush1.msra.mxu0 0.0
    %1047 = vmatprep.subr.mxu0 0.0
    %1048 = vmatpush1.msra.mxu0 0.0
    %1049 = vmatprep.subr.mxu0 0.0
    %1050 = vmatpush1.msra.mxu0 0.0
    %1051 = vmatprep.subr.mxu0 0.0
    %1052 = vmatpush1.msra.mxu0 0.0
    %1053 = vmatprep.subr.mxu0 0.0
    %1054 = vmatpush1.msra.mxu0 0.0
    %1055 = vmatprep.subr.mxu0 0.0
    %1056 = vmatpush1.msra.mxu0 0.0
    %1057 = vmatprep.subr.mxu0 0.0
    %1058 = vmatpush1.msra.mxu0 0.0
    %1059 = vmatprep.subr.mxu0 0.0
    %1060 = vmatpush1.msra.mxu0 0.0
    %1061 = vmatprep.subr.mxu0 0.0
    %1062 = vmatpush1.msra.mxu0 0.0
    %1063 = vmatprep.subr.mxu0 0.0
    %1064 = vmatpush1.msra.mxu0 0.0
    %1065 = vmatprep.subr.mxu0 0.0
    %1066 = vmatpush1.msra.mxu0 0.0
    %1067 = vmatprep.subr.mxu0 0.0
    %1068 = vmatpush1.msra.mxu0 0.0
    %1069 = vmatprep.subr.mxu0 0.0
    %1070 = vmatpush1.msra.mxu0 0.0
    %1071 = vmatprep.subr.mxu0 0.0
    %1072 = vmatpush1.msra.mxu0 0.0
    %1073 = vmatprep.subr.mxu0 0.0
    %1074 = vmatpush1.msra.mxu0 0.0
    %1075 = vmatprep.subr.mxu0 0.0
    %1076 = vmatpush1.msra.mxu0 0.0
    %1077 = vmatprep.subr.mxu0 0.0
    %1078 = vmatpush1.msra.mxu0 0.0
    %1079 = vmatprep.subr.mxu0 0.0
    %1080 = vmatpush1.msra.mxu0 0.0
    %1081 = vmatprep.subr.mxu0 0.0
    %1082 = vmatpush1.msra.mxu0 0.0
    %1083 = vmatprep.subr.mxu0 0.0
    %1084 = vmatpush1.msra.mxu0 0.0
    %1085 = vmatprep.subr.mxu0 0.0
    %1086 = vmatpush1.msra.mxu0 0.0
    %1087 = vmatprep.subr.mxu0 0.0
    %1088 = vmatpush1.msra.mxu0 0.0
    %1089 = vmatprep.subr.mxu0 0.0
    %1090 = vmatpush1.msra.mxu0 0.0
    %1091 = vmatprep.subr.mxu0 0.0
    %1092 = vmatpush1.msra.mxu0 0.0
    %1093 = vmatprep.subr.mxu0 0.0
    %1094 = vmatpush1.msra.mxu0 0.0
    %1095 = vmatprep.subr.mxu0 0.0
    %1096 = vmatpush1.msra.mxu0 0.0
    %1097 = vmatprep.subr.mxu0 0.0
    %1098 = vmatpush1.msra.mxu0 0.0
    %1099 = vmatprep.subr.mxu0 0.0
    %1100 = vmatpush1.msra.mxu0 0.0
    %1101 = vmatprep.mubr.f32.mxu0 0.0
    %1102 = vmatmul.mubr.f32.gmra.mrb[0].mxu0 %v1035
    %v1103 = vpop.f32.mrb[0].mxu0
    %v1104 = vadd.f32 0.0, %v1103
    %v1105 = vpop.f32.mrb[0].mxu0
    %1106 = vdwg.mxu0
    %v1108 = vrot.slane %v1104, 2
    %v1109 = vrot.slane %v1104, 3
    %v1112 = vadd.f32 %v140, %v1108
    %v1113 = vadd.f32 %v145, %v1109
    %v1114 = vxor.u32 %v1112, 2147483648
    %v1115 = vxor.u32 %v1113, 2147483648
    %v1116 = vmul.f32 %v1114, 1.442695
    %v1117 = vpow.pop %v1116
    %v1118 = vmul.f32 %v1115, 1.442695
    %v1119 = vpow.pop %v1118
    %v1120 = vadd.f32 %v1117, 1.0
    %v1121 = vadd.f32 %v1119, 1.0
    %v1122 = vrcp.pop %v1120
    %v1123 = vmul.f32 1.0, %v1122
    %v1124 = vrcp.pop %v1121
    %v1125 = vmul.f32 1.0, %v1124
    %v1126 = vtanh.pop %v1112
    %v1127 = vtanh.pop %v1113
    %v1130 = vrot.slane %v1005, 7
    %v1131 = vrot.slane %v1006, 7
    %v1134 = vmul.f32 %v1123, %v1130
    %v1135 = vmul.f32 %v1125, %v1131
    %1138 = vrot.lane.b32.xlu0 %v1126, 64
    %v1139 = vpop.permute.xlu0 %1138
    %1140 = vrot.lane.b32.xlu0 %v1127, 64
    %v1141 = vpop.permute.xlu0 %1140
    %v1144 = vmul.f32 %v1123, %v1139
    %v1145 = vmul.f32 %v1125, %v1141
    %1148 = vrot.lane.b32.xlu0 %v1144, 32
    %v1149 = vpop.permute.xlu0 %1148
    %1150 = vrot.lane.b32.xlu0 %v1145, 32
    %v1151 = vpop.permute.xlu0 %1150
    %v1154 = vadd.f32 %v1134, %v1149
    %v1155 = vadd.f32 %v1135, %v1151
    %v1156 = vtanh.pop %v1154
    %v1157 = vtanh.pop %v1155
    %1160 = vrot.lane.b32.xlu0 %v1156, 64
    %v1161 = vpop.permute.xlu0 %1160
    %1162 = vrot.lane.b32.xlu0 %v1157, 64
    %v1163 = vpop.permute.xlu0 %1162
    %v1166 = vmul.f32 %v1123, %v1161
    %v1167 = vmul.f32 %v1125, %v1163
    %1170 = vrot.lane.b32.xlu0 %v1166, 32
    %v1171 = vpop.permute.xlu0 %1170
    %1172 = vrot.lane.b32.xlu0 %v1167, 32
    %v1173 = vpop.permute.xlu0 %1172
    %vm1176 = vcmask 260102
    %1177 = vst.msk [vmem:[#allocation2] sm:$0x40] %vm1176, %v1171
    %1178 = vst.msk [vmem:[#allocation2 + $0x8] sm:$0x40] %vm1176, %v1173
    %v1179 = vrot.slane %v1166, 6
    %v1180 = vrot.slane %v1167, 5
    %v1181 = vsel %vm288, %v1180, %v1179
    %1182 = vrot.lane.b32.xlu0 %v1181, 32
    %v1183 = vpop.permute.xlu0 %1182
    %v1184 = vsel %vm148, %v1183, 0
    %1186 = vmatprep.subr.mxu0 0.0
    %1187 = vmatpush1.msra.mxu0 %v55
    %1188 = vmatprep.subr.mxu0 0.0
    %1189 = vmatpush1.msra.mxu0 %v56
    %1190 = vmatprep.subr.mxu0 0.0
    %1191 = vmatpush1.msra.mxu0 %v57
    %1192 = vmatprep.subr.mxu0 0.0
    %1193 = vmatpush1.msra.mxu0 %v58
    %1194 = vmatprep.subr.mxu0 0.0
    %1195 = vmatpush1.msra.mxu0 0.0
    %1196 = vmatprep.subr.mxu0 0.0
    %1197 = vmatpush1.msra.mxu0 0.0
    %1198 = vmatprep.subr.mxu0 0.0
    %1199 = vmatpush1.msra.mxu0 0.0
    %1200 = vmatprep.subr.mxu0 0.0
    %1201 = vmatpush1.msra.mxu0 0.0
    %1202 = vmatprep.subr.mxu0 0.0
    %1203 = vmatpush1.msra.mxu0 0.0
    %1204 = vmatprep.subr.mxu0 0.0
    %1205 = vmatpush1.msra.mxu0 0.0
    %1206 = vmatprep.subr.mxu0 0.0
    %1207 = vmatpush1.msra.mxu0 0.0
    %1208 = vmatprep.subr.mxu0 0.0
    %1209 = vmatpush1.msra.mxu0 0.0
    %1210 = vmatprep.subr.mxu0 0.0
    %1211 = vmatpush1.msra.mxu0 0.0
    %1212 = vmatprep.subr.mxu0 0.0
    %1213 = vmatpush1.msra.mxu0 0.0
    %1214 = vmatprep.subr.mxu0 0.0
    %1215 = vmatpush1.msra.mxu0 0.0
    %1216 = vmatprep.subr.mxu0 0.0
    %1217 = vmatpush1.msra.mxu0 0.0
    %1218 = vmatprep.subr.mxu0 0.0
    %1219 = vmatpush1.msra.mxu0 0.0
    %1220 = vmatprep.subr.mxu0 0.0
    %1221 = vmatpush1.msra.mxu0 0.0
    %1222 = vmatprep.subr.mxu0 0.0
    %1223 = vmatpush1.msra.mxu0 0.0
    %1224 = vmatprep.subr.mxu0 0.0
    %1225 = vmatpush1.msra.mxu0 0.0
    %1226 = vmatprep.subr.mxu0 0.0
    %1227 = vmatpush1.msra.mxu0 0.0
    %1228 = vmatprep.subr.mxu0 0.0
    %1229 = vmatpush1.msra.mxu0 0.0
    %1230 = vmatprep.subr.mxu0 0.0
    %1231 = vmatpush1.msra.mxu0 0.0
    %1232 = vmatprep.subr.mxu0 0.0
    %1233 = vmatpush1.msra.mxu0 0.0
    %1234 = vmatprep.subr.mxu0 0.0
    %1235 = vmatpush1.msra.mxu0 0.0
    %1236 = vmatprep.subr.mxu0 0.0
    %1237 = vmatpush1.msra.mxu0 0.0
    %1238 = vmatprep.subr.mxu0 0.0
    %1239 = vmatpush1.msra.mxu0 0.0
    %1240 = vmatprep.subr.mxu0 0.0
    %1241 = vmatpush1.msra.mxu0 0.0
    %1242 = vmatprep.subr.mxu0 0.0
    %1243 = vmatpush1.msra.mxu0 0.0
    %1244 = vmatprep.subr.mxu0 0.0
    %1245 = vmatpush1.msra.mxu0 0.0
    %1246 = vmatprep.subr.mxu0 0.0
    %1247 = vmatpush1.msra.mxu0 0.0
    %1248 = vmatprep.subr.mxu0 0.0
    %1249 = vmatpush1.msra.mxu0 0.0
    %1250 = vmatprep.mubr.f32.mxu0 0.0
    %1251 = vmatmul.mubr.f32.gmra.mrb[0].mxu0 %v1184
    %v1252 = vpop.f32.mrb[0].mxu0
    %v1253 = vadd.f32 0.0, %v1252
    %v1254 = vpop.f32.mrb[0].mxu0
    %1255 = vdwg.mxu0
    %v1257 = vrot.slane %v1253, 1
    %v1258 = vrot.slane %v1253, 2
    %v1261 = vadd.f32 %v140, %v1257
    %v1262 = vadd.f32 %v145, %v1258
    %v1263 = vxor.u32 %v1261, 2147483648
    %v1264 = vxor.u32 %v1262, 2147483648
    %v1265 = vmul.f32 %v1263, 1.442695
    %v1266 = vpow.pop %v1265
    %v1267 = vmul.f32 %v1264, 1.442695
    %v1268 = vpow.pop %v1267
    %v1269 = vadd.f32 %v1266, 1.0
    %v1270 = vadd.f32 %v1268, 1.0
    %v1271 = vrcp.pop %v1269
    %v1272 = vmul.f32 1.0, %v1271
    %v1273 = vrcp.pop %v1270
    %v1274 = vmul.f32 1.0, %v1273
    %v1275 = vtanh.pop %v1261
    %v1276 = vtanh.pop %v1262
    %v1279 = vrot.slane %v1154, 7
    %v1280 = vrot.slane %v1155, 7
    %v1283 = vmul.f32 %v1272, %v1279
    %v1284 = vmul.f32 %v1274, %v1280
    %1287 = vrot.lane.b32.xlu0 %v1275, 64
    %v1288 = vpop.permute.xlu0 %1287
    %1289 = vrot.lane.b32.xlu0 %v1276, 64
    %v1290 = vpop.permute.xlu0 %1289
    %v1293 = vmul.f32 %v1272, %v1288
    %v1294 = vmul.f32 %v1274, %v1290
    %1297 = vrot.lane.b32.xlu0 %v1293, 32
    %v1298 = vpop.permute.xlu0 %1297
    %1299 = vrot.lane.b32.xlu0 %v1294, 32
    %v1300 = vpop.permute.xlu0 %1299
    %v1303 = vadd.f32 %v1283, %v1298
    %v1304 = vadd.f32 %v1284, %v1300
    %v1305 = vtanh.pop %v1303
    %v1306 = vtanh.pop %v1304
    %1309 = vrot.lane.b32.xlu0 %v1305, 64
    %v1310 = vpop.permute.xlu0 %1309
    %1311 = vrot.lane.b32.xlu0 %v1306, 64
    %v1312 = vpop.permute.xlu0 %1311
    %v1315 = vmul.f32 %v1272, %v1310
    %v1316 = vmul.f32 %v1274, %v1312
    %1319 = vrot.lane.b32.xlu0 %v1315, 32
    %v1320 = vpop.permute.xlu0 %1319
    %1321 = vrot.lane.b32.xlu0 %v1316, 32
    %v1322 = vpop.permute.xlu0 %1321
    %vm1325 = vcmask 261127
    %1326 = vst.msk [vmem:[#allocation2] sm:$0x80] %vm1325, %v1320
    %1327 = vst.msk [vmem:[#allocation2 + $0x8] sm:$0x80] %vm1325, %v1322
    %v1328 = vrot.slane %v1316, 7
    %1329 = vrot.lane.b32.xlu0 %v1328, 32
    %v1330 = vpop.permute.xlu0 %1329
    %1332 = vst.msk [vmem:[#allocation7 - $0x7] sm:$0x80] %vm1325, %v1320
    %1333 = vst.msk [vmem:[#allocation7 + $0x1] sm:$0x1] %vm284, %v1330
    %v1336 = vrot.slane %v1304, 7
    %1337 = vrot.lane.b32.xlu0 %v1303, 96
    %v1338 = vpop.permute.xlu0 %1337
    %1339 = vrot.lane.b32.xlu0 %v1336, 96
    %v1340 = vpop.permute.xlu0 %1339
    %1343 = vst.msk [vmem:[#allocation9 - $0x7] sm:$0x80] %vm1325, %v1338
    %1344 = vst.msk [vmem:[#allocation9 + $0x1] sm:$0x1] %vm284, %v1340
    %v1345 = vld [vmem:[#allocation2] sm:$0xff]
    %v1346 = vld [vmem:[#allocation2 + $0x8] sm:$0xff]
    %v1347 = vld [vmem:[%s4] sm:$0xff]
    %v1348 = vld [vmem:[%s4 + $0x8] sm:$0xff]
    %v1349 = vld [vmem:[%s4 + $0x10] sm:$0xff]
    %v1350 = vld [vmem:[%s4 + $0x18] sm:$0xff]
    %v1351 = vld [vmem:[%s5] sm:$0xff]
    %v1352 = vld [vmem:[%s5 + $0x8] sm:$0xff]
    %v1353 = vld [vmem:[%s5 + $0x10] sm:$0xff]
    %v1354 = vld [vmem:[%s5 + $0x18] sm:$0xff]
    %v1355 = vld [vmem:[%s6] sm:$0x1]
    %v1357 = vlaneseq
    %v1358 = vshrl.u32 %v1357, 7
    %v1359 = vsub.s32 0, %v1358
    %v1360 = vrot.slane %v1355, %v1359
    %v1363 = vsel %vm148, %v1345, 0
    %v1366 = vsel %vm148, %v1346, 0
    %1368 = vmatprep.subr.mxu0 0.0
    %1369 = vmatpush1.msra.mxu0 %v1347
    %1370 = vmatprep.subr.mxu0 0.0
    %1371 = vmatpush1.msra.mxu0 %v1348
    %1372 = vmatprep.subr.mxu0 0.0
    %1373 = vmatpush1.msra.mxu0 %v1349
    %1374 = vmatprep.subr.mxu0 0.0
    %1375 = vmatpush1.msra.mxu0 %v1350
    %1376 = vmatprep.subr.mxu0 0.0
    %1377 = vmatpush1.msra.mxu0 0.0
    %1378 = vmatprep.subr.mxu0 0.0
    %1379 = vmatpush1.msra.mxu0 0.0
    %1380 = vmatprep.subr.mxu0 0.0
    %1381 = vmatpush1.msra.mxu0 0.0
    %1382 = vmatprep.subr.mxu0 0.0
    %1383 = vmatpush1.msra.mxu0 0.0
    %1384 = vmatprep.subr.mxu0 0.0
    %1385 = vmatpush1.msra.mxu0 0.0
    %1386 = vmatprep.subr.mxu0 0.0
    %1387 = vmatpush1.msra.mxu0 0.0
    %1388 = vmatprep.subr.mxu0 0.0
    %1389 = vmatpush1.msra.mxu0 0.0
    %1390 = vmatprep.subr.mxu0 0.0
    %1391 = vmatpush1.msra.mxu0 0.0
    %1392 = vmatprep.subr.mxu0 0.0
    %1393 = vmatpush1.msra.mxu0 0.0
    %1394 = vmatprep.subr.mxu0 0.0
    %1395 = vmatpush1.msra.mxu0 0.0
    %1396 = vmatprep.subr.mxu0 0.0
    %1397 = vmatpush1.msra.mxu0 0.0
    %1398 = vmatprep.subr.mxu0 0.0
    %1399 = vmatpush1.msra.mxu0 0.0
    %1400 = vmatprep.subr.mxu0 0.0
    %1401 = vmatpush1.msra.mxu0 0.0
    %1402 = vmatprep.subr.mxu0 0.0
    %1403 = vmatpush1.msra.mxu0 0.0
    %1404 = vmatprep.subr.mxu0 0.0
    %1405 = vmatpush1.msra.mxu0 0.0
    %1406 = vmatprep.subr.mxu0 0.0
    %1407 = vmatpush1.msra.mxu0 0.0
    %1408 = vmatprep.subr.mxu0 0.0
    %1409 = vmatpush1.msra.mxu0 0.0
    %1410 = vmatprep.subr.mxu0 0.0
    %1411 = vmatpush1.msra.mxu0 0.0
    %1412 = vmatprep.subr.mxu0 0.0
    %1413 = vmatpush1.msra.mxu0 0.0
    %1414 = vmatprep.subr.mxu0 0.0
    %1415 = vmatpush1.msra.mxu0 0.0
    %1416 = vmatprep.subr.mxu0 0.0
    %1417 = vmatpush1.msra.mxu0 0.0
    %1418 = vmatprep.subr.mxu0 0.0
    %1419 = vmatpush1.msra.mxu0 0.0
    %1420 = vmatprep.subr.mxu0 0.0
    %1421 = vmatpush1.msra.mxu0 0.0
    %1422 = vmatprep.subr.mxu0 0.0
    %1423 = vmatpush1.msra.mxu0 0.0
    %1424 = vmatprep.subr.mxu0 0.0
    %1425 = vmatpush1.msra.mxu0 0.0
    %1426 = vmatprep.subr.mxu0 0.0
    %1427 = vmatpush1.msra.mxu0 0.0
    %1428 = vmatprep.subr.mxu0 0.0
    %1429 = vmatpush1.msra.mxu0 0.0
    %1430 = vmatprep.subr.mxu0 0.0
    %1431 = vmatpush1.msra.mxu0 0.0
    %1432 = vmatprep.mubr.f32.mxu0 0.0
    %1433 = vmatmul.mubr.f32.gmra.mrb[0].mxu0 %v1363
    %v1434 = vpop.f32.mrb[0].mxu0
    %v1435 = vadd.f32 %v1360, %v1434
    %v1436 = vpop.f32.mrb[0].mxu0
    %1437 = vmatprep.mubr.f32.mxu0 0.0
    %1438 = vmatmul.mubr.f32.gmra.mrb[0].mxu0 %v1366
    %v1439 = vpop.f32.mrb[0].mxu0
    %v1440 = vadd.f32 %v1360, %v1439
    %v1441 = vpop.f32.mrb[0].mxu0
    %1442 = vdwg.mxu0
    %1443 = vmatprep.subr.mxu0 0.0
    %1444 = vmatpush1.msra.mxu0 %v1351
    %1445 = vmatprep.subr.mxu0 0.0
    %1446 = vmatpush1.msra.mxu0 %v1352
    %1447 = vmatprep.subr.mxu0 0.0
    %1448 = vmatpush1.msra.mxu0 %v1353
    %1449 = vmatprep.subr.mxu0 0.0
    %1450 = vmatpush1.msra.mxu0 %v1354
    %1451 = vmatprep.subr.mxu0 0.0
    %1452 = vmatpush1.msra.mxu0 0.0
    %1453 = vmatprep.subr.mxu0 0.0
    %1454 = vmatpush1.msra.mxu0 0.0
    %1455 = vmatprep.subr.mxu0 0.0
    %1456 = vmatpush1.msra.mxu0 0.0
    %1457 = vmatprep.subr.mxu0 0.0
    %1458 = vmatpush1.msra.mxu0 0.0
    %1459 = vmatprep.subr.mxu0 0.0
    %1460 = vmatpush1.msra.mxu0 0.0
    %1461 = vmatprep.subr.mxu0 0.0
    %1462 = vmatpush1.msra.mxu0 0.0
    %1463 = vmatprep.subr.mxu0 0.0
    %1464 = vmatpush1.msra.mxu0 0.0
    %1465 = vmatprep.subr.mxu0 0.0
    %1466 = vmatpush1.msra.mxu0 0.0
    %1467 = vmatprep.subr.mxu0 0.0
    %1468 = vmatpush1.msra.mxu0 0.0
    %1469 = vmatprep.subr.mxu0 0.0
    %1470 = vmatpush1.msra.mxu0 0.0
    %1471 = vmatprep.subr.mxu0 0.0
    %1472 = vmatpush1.msra.mxu0 0.0
    %1473 = vmatprep.subr.mxu0 0.0
    %1474 = vmatpush1.msra.mxu0 0.0
    %1475 = vmatprep.subr.mxu0 0.0
    %1476 = vmatpush1.msra.mxu0 0.0
    %1477 = vmatprep.subr.mxu0 0.0
    %1478 = vmatpush1.msra.mxu0 0.0
    %1479 = vmatprep.subr.mxu0 0.0
    %1480 = vmatpush1.msra.mxu0 0.0
    %1481 = vmatprep.subr.mxu0 0.0
    %1482 = vmatpush1.msra.mxu0 0.0
    %1483 = vmatprep.subr.mxu0 0.0
    %1484 = vmatpush1.msra.mxu0 0.0
    %1485 = vmatprep.subr.mxu0 0.0
    %1486 = vmatpush1.msra.mxu0 0.0
    %1487 = vmatprep.subr.mxu0 0.0
    %1488 = vmatpush1.msra.mxu0 0.0
    %1489 = vmatprep.subr.mxu0 0.0
    %1490 = vmatpush1.msra.mxu0 0.0
    %1491 = vmatprep.subr.mxu0 0.0
    %1492 = vmatpush1.msra.mxu0 0.0
    %1493 = vmatprep.subr.mxu0 0.0
    %1494 = vmatpush1.msra.mxu0 0.0
    %1495 = vmatprep.subr.mxu0 0.0
    %1496 = vmatpush1.msra.mxu0 0.0
    %1497 = vmatprep.subr.mxu0 0.0
    %1498 = vmatpush1.msra.mxu0 0.0
    %1499 = vmatprep.subr.mxu0 0.0
    %1500 = vmatpush1.msra.mxu0 0.0
    %1501 = vmatprep.subr.mxu0 0.0
    %1502 = vmatpush1.msra.mxu0 0.0
    %1503 = vmatprep.subr.mxu0 0.0
    %1504 = vmatpush1.msra.mxu0 0.0
    %1505 = vmatprep.subr.mxu0 0.0
    %1506 = vmatpush1.msra.mxu0 0.0
    %1507 = vmatprep.mubr.f32.mxu0 0.0
    %1508 = vmatmul.mubr.f32.gmra.mrb[0].mxu0 %v150
    %v1509 = vpop.f32.mrb[0].mxu0
    %v1510 = vadd.f32 0.0, %v1509
    %v1511 = vpop.f32.mrb[0].mxu0
    %1512 = vdwg.mxu0
    %v1514 = vrot.slane %v1510, 1
    %v1517 = vadd.f32 %v1435, %v1510
    %v1518 = vadd.f32 %v1440, %v1514
    %v1519 = vxor.u32 %v1517, 2147483648
    %v1520 = vxor.u32 %v1518, 2147483648
    %v1521 = vmul.f32 %v1519, 1.442695
    %v1522 = vpow.pop %v1521
    %v1523 = vmul.f32 %v1520, 1.442695
    %v1524 = vpow.pop %v1523
    %v1525 = vadd.f32 %v1522, 1.0
    %v1526 = vadd.f32 %v1524, 1.0
    %v1527 = vrcp.pop %v1525
    %v1528 = vmul.f32 1.0, %v1527
    %v1529 = vrcp.pop %v1526
    %v1530 = vmul.f32 1.0, %v1529
    %v1531 = vtanh.pop %v1517
    %v1532 = vtanh.pop %v1518
    %v1533 = vmul.f32 %v1528, 0.0
    %v1534 = vmul.f32 %v1530, 0.0
    %1537 = vrot.lane.b32.xlu0 %v1531, 64
    %v1538 = vpop.permute.xlu0 %1537
    %1539 = vrot.lane.b32.xlu0 %v1532, 64
    %v1540 = vpop.permute.xlu0 %1539
    %v1543 = vmul.f32 %v1528, %v1538
    %v1544 = vmul.f32 %v1530, %v1540
    %1547 = vrot.lane.b32.xlu0 %v1543, 32
    %v1548 = vpop.permute.xlu0 %1547
    %1549 = vrot.lane.b32.xlu0 %v1544, 32
    %v1550 = vpop.permute.xlu0 %1549
    %v1553 = vadd.f32 %v1533, %v1548
    %v1554 = vadd.f32 %v1534, %v1550
    %v1555 = vtanh.pop %v1553
    %v1556 = vtanh.pop %v1554
    %1559 = vrot.lane.b32.xlu0 %v1555, 64
    %v1560 = vpop.permute.xlu0 %1559
    %1561 = vrot.lane.b32.xlu0 %v1556, 64
    %v1562 = vpop.permute.xlu0 %1561
    %v1565 = vmul.f32 %v1528, %v1560
    %v1566 = vmul.f32 %v1530, %v1562
    %1569 = vrot.lane.b32.xlu0 %v1565, 32
    %v1570 = vpop.permute.xlu0 %1569
    %1571 = vrot.lane.b32.xlu0 %v1566, 32
    %v1572 = vpop.permute.xlu0 %1571
    %1575 = vst.msk [vmem:[#allocation2] sm:$0x1] %vm284, %v1570
    %1576 = vst.msk [vmem:[#allocation2 + $0x8] sm:$0x1] %vm284, %v1572
    %v1577 = vrot.slane %v1566, 7
    %v1578 = vsel %vm288, %v1577, %v1565
    %1579 = vrot.lane.b32.xlu0 %v1578, 32
    %v1580 = vpop.permute.xlu0 %1579
    %v1581 = vsel %vm148, %v1580, 0
    %1583 = vmatprep.subr.mxu0 0.0
    %1584 = vmatpush1.msra.mxu0 %v1351
    %1585 = vmatprep.subr.mxu0 0.0
    %1586 = vmatpush1.msra.mxu0 %v1352
    %1587 = vmatprep.subr.mxu0 0.0
    %1588 = vmatpush1.msra.mxu0 %v1353
    %1589 = vmatprep.subr.mxu0 0.0
    %1590 = vmatpush1.msra.mxu0 %v1354
    %1591 = vmatprep.subr.mxu0 0.0
    %1592 = vmatpush1.msra.mxu0 0.0
    %1593 = vmatprep.subr.mxu0 0.0
    %1594 = vmatpush1.msra.mxu0 0.0
    %1595 = vmatprep.subr.mxu0 0.0
    %1596 = vmatpush1.msra.mxu0 0.0
    %1597 = vmatprep.subr.mxu0 0.0
    %1598 = vmatpush1.msra.mxu0 0.0
    %1599 = vmatprep.subr.mxu0 0.0
    %1600 = vmatpush1.msra.mxu0 0.0
    %1601 = vmatprep.subr.mxu0 0.0
    %1602 = vmatpush1.msra.mxu0 0.0
    %1603 = vmatprep.subr.mxu0 0.0
    %1604 = vmatpush1.msra.mxu0 0.0
    %1605 = vmatprep.subr.mxu0 0.0
    %1606 = vmatpush1.msra.mxu0 0.0
    %1607 = vmatprep.subr.mxu0 0.0
    %1608 = vmatpush1.msra.mxu0 0.0
    %1609 = vmatprep.subr.mxu0 0.0
    %1610 = vmatpush1.msra.mxu0 0.0
    %1611 = vmatprep.subr.mxu0 0.0
    %1612 = vmatpush1.msra.mxu0 0.0
    %1613 = vmatprep.subr.mxu0 0.0
    %1614 = vmatpush1.msra.mxu0 0.0
    %1615 = vmatprep.subr.mxu0 0.0
    %1616 = vmatpush1.msra.mxu0 0.0
    %1617 = vmatprep.subr.mxu0 0.0
    %1618 = vmatpush1.msra.mxu0 0.0
    %1619 = vmatprep.subr.mxu0 0.0
    %1620 = vmatpush1.msra.mxu0 0.0
    %1621 = vmatprep.subr.mxu0 0.0
    %1622 = vmatpush1.msra.mxu0 0.0
    %1623 = vmatprep.subr.mxu0 0.0
    %1624 = vmatpush1.msra.mxu0 0.0
    %1625 = vmatprep.subr.mxu0 0.0
    %1626 = vmatpush1.msra.mxu0 0.0
    %1627 = vmatprep.subr.mxu0 0.0
    %1628 = vmatpush1.msra.mxu0 0.0
    %1629 = vmatprep.subr.mxu0 0.0
    %1630 = vmatpush1.msra.mxu0 0.0
    %1631 = vmatprep.subr.mxu0 0.0
    %1632 = vmatpush1.msra.mxu0 0.0
    %1633 = vmatprep.subr.mxu0 0.0
    %1634 = vmatpush1.msra.mxu0 0.0
    %1635 = vmatprep.subr.mxu0 0.0
    %1636 = vmatpush1.msra.mxu0 0.0
    %1637 = vmatprep.subr.mxu0 0.0
    %1638 = vmatpush1.msra.mxu0 0.0
    %1639 = vmatprep.subr.mxu0 0.0
    %1640 = vmatpush1.msra.mxu0 0.0
    %1641 = vmatprep.subr.mxu0 0.0
    %1642 = vmatpush1.msra.mxu0 0.0
    %1643 = vmatprep.subr.mxu0 0.0
    %1644 = vmatpush1.msra.mxu0 0.0
    %1645 = vmatprep.subr.mxu0 0.0
    %1646 = vmatpush1.msra.mxu0 0.0
    %1647 = vmatprep.mubr.f32.mxu0 0.0
    %1648 = vmatmul.mubr.f32.gmra.mrb[0].mxu0 %v1581
    %v1649 = vpop.f32.mrb[0].mxu0
    %v1650 = vadd.f32 0.0, %v1649
    %v1651 = vpop.f32.mrb[0].mxu0
    %1652 = vdwg.mxu0
    %v1654 = vrot.slane %v1650, 7
    %v1657 = vadd.f32 %v1435, %v1654
    %v1658 = vadd.f32 %v1440, %v1650
    %v1659 = vxor.u32 %v1657, 2147483648
    %v1660 = vxor.u32 %v1658, 2147483648
    %v1661 = vmul.f32 %v1659, 1.442695
    %v1662 = vpow.pop %v1661
    %v1663 = vmul.f32 %v1660, 1.442695
    %v1664 = vpow.pop %v1663
    %v1665 = vadd.f32 %v1662, 1.0
    %v1666 = vadd.f32 %v1664, 1.0
    %v1667 = vrcp.pop %v1665
    %v1668 = vmul.f32 1.0, %v1667
    %v1669 = vrcp.pop %v1666
    %v1670 = vmul.f32 1.0, %v1669
    %v1671 = vtanh.pop %v1657
    %v1672 = vtanh.pop %v1658
    %v1675 = vrot.slane %v1553, 7
    %v1676 = vrot.slane %v1554, 7
    %v1679 = vmul.f32 %v1668, %v1675
    %v1680 = vmul.f32 %v1670, %v1676
    %1683 = vrot.lane.b32.xlu0 %v1671, 64
    %v1684 = vpop.permute.xlu0 %1683
    %1685 = vrot.lane.b32.xlu0 %v1672, 64
    %v1686 = vpop.permute.xlu0 %1685
    %v1689 = vmul.f32 %v1668, %v1684
    %v1690 = vmul.f32 %v1670, %v1686
    %1693 = vrot.lane.b32.xlu0 %v1689, 32
    %v1694 = vpop.permute.xlu0 %1693
    %1695 = vrot.lane.b32.xlu0 %v1690, 32
    %v1696 = vpop.permute.xlu0 %1695
    %v1699 = vadd.f32 %v1679, %v1694
    %v1700 = vadd.f32 %v1680, %v1696
    %v1701 = vtanh.pop %v1699
    %v1702 = vtanh.pop %v1700
    %1705 = vrot.lane.b32.xlu0 %v1701, 64
    %v1706 = vpop.permute.xlu0 %1705
    %1707 = vrot.lane.b32.xlu0 %v1702, 64
    %v1708 = vpop.permute.xlu0 %1707
    %v1711 = vmul.f32 %v1668, %v1706
    %v1712 = vmul.f32 %v1670, %v1708
    %1715 = vrot.lane.b32.xlu0 %v1711, 32
    %v1716 = vpop.permute.xlu0 %1715
    %1717 = vrot.lane.b32.xlu0 %v1712, 32
    %v1718 = vpop.permute.xlu0 %1717
    %1721 = vst.msk [vmem:[#allocation2] sm:$0x2] %vm432, %v1716
    %1722 = vst.msk [vmem:[#allocation2 + $0x8] sm:$0x2] %vm432, %v1718
    %v1723 = vrot.slane %v1711, 1
    %v1724 = vsel %vm288, %v1712, %v1723
    %1725 = vrot.lane.b32.xlu0 %v1724, 32
    %v1726 = vpop.permute.xlu0 %1725
    %v1727 = vsel %vm148, %v1726, 0
    %1729 = vmatprep.subr.mxu0 0.0
    %1730 = vmatpush1.msra.mxu0 %v1351
    %1731 = vmatprep.subr.mxu0 0.0
    %1732 = vmatpush1.msra.mxu0 %v1352
    %1733 = vmatprep.subr.mxu0 0.0
    %1734 = vmatpush1.msra.mxu0 %v1353
    %1735 = vmatprep.subr.mxu0 0.0
    %1736 = vmatpush1.msra.mxu0 %v1354
    %1737 = vmatprep.subr.mxu0 0.0
    %1738 = vmatpush1.msra.mxu0 0.0
    %1739 = vmatprep.subr.mxu0 0.0
    %1740 = vmatpush1.msra.mxu0 0.0
    %1741 = vmatprep.subr.mxu0 0.0
    %1742 = vmatpush1.msra.mxu0 0.0
    %1743 = vmatprep.subr.mxu0 0.0
    %1744 = vmatpush1.msra.mxu0 0.0
    %1745 = vmatprep.subr.mxu0 0.0
    %1746 = vmatpush1.msra.mxu0 0.0
    %1747 = vmatprep.subr.mxu0 0.0
    %1748 = vmatpush1.msra.mxu0 0.0
    %1749 = vmatprep.subr.mxu0 0.0
    %1750 = vmatpush1.msra.mxu0 0.0
    %1751 = vmatprep.subr.mxu0 0.0
    %1752 = vmatpush1.msra.mxu0 0.0
    %1753 = vmatprep.subr.mxu0 0.0
    %1754 = vmatpush1.msra.mxu0 0.0
    %1755 = vmatprep.subr.mxu0 0.0
    %1756 = vmatpush1.msra.mxu0 0.0
    %1757 = vmatprep.subr.mxu0 0.0
    %1758 = vmatpush1.msra.mxu0 0.0
    %1759 = vmatprep.subr.mxu0 0.0
    %1760 = vmatpush1.msra.mxu0 0.0
    %1761 = vmatprep.subr.mxu0 0.0
    %1762 = vmatpush1.msra.mxu0 0.0
    %1763 = vmatprep.subr.mxu0 0.0
    %1764 = vmatpush1.msra.mxu0 0.0
    %1765 = vmatprep.subr.mxu0 0.0
    %1766 = vmatpush1.msra.mxu0 0.0
    %1767 = vmatprep.subr.mxu0 0.0
    %1768 = vmatpush1.msra.mxu0 0.0
    %1769 = vmatprep.subr.mxu0 0.0
    %1770 = vmatpush1.msra.mxu0 0.0
    %1771 = vmatprep.subr.mxu0 0.0
    %1772 = vmatpush1.msra.mxu0 0.0
    %1773 = vmatprep.subr.mxu0 0.0
    %1774 = vmatpush1.msra.mxu0 0.0
    %1775 = vmatprep.subr.mxu0 0.0
    %1776 = vmatpush1.msra.mxu0 0.0
    %1777 = vmatprep.subr.mxu0 0.0
    %1778 = vmatpush1.msra.mxu0 0.0
    %1779 = vmatprep.subr.mxu0 0.0
    %1780 = vmatpush1.msra.mxu0 0.0
    %1781 = vmatprep.subr.mxu0 0.0
    %1782 = vmatpush1.msra.mxu0 0.0
    %1783 = vmatprep.subr.mxu0 0.0
    %1784 = vmatpush1.msra.mxu0 0.0
    %1785 = vmatprep.subr.mxu0 0.0
    %1786 = vmatpush1.msra.mxu0 0.0
    %1787 = vmatprep.subr.mxu0 0.0
    %1788 = vmatpush1.msra.mxu0 0.0
    %1789 = vmatprep.subr.mxu0 0.0
    %1790 = vmatpush1.msra.mxu0 0.0
    %1791 = vmatprep.subr.mxu0 0.0
    %1792 = vmatpush1.msra.mxu0 0.0
    %1793 = vmatprep.mubr.f32.mxu0 0.0
    %1794 = vmatmul.mubr.f32.gmra.mrb[0].mxu0 %v1727
    %v1795 = vpop.f32.mrb[0].mxu0
    %v1796 = vadd.f32 0.0, %v1795
    %v1797 = vpop.f32.mrb[0].mxu0
    %1798 = vdwg.mxu0
    %v1800 = vrot.slane %v1796, 6
    %v1801 = vrot.slane %v1796, 7
    %v1804 = vadd.f32 %v1435, %v1800
    %v1805 = vadd.f32 %v1440, %v1801
    %v1806 = vxor.u32 %v1804, 2147483648
    %v1807 = vxor.u32 %v1805, 2147483648
    %v1808 = vmul.f32 %v1806, 1.442695
    %v1809 = vpow.pop %v1808
    %v1810 = vmul.f32 %v1807, 1.442695
    %v1811 = vpow.pop %v1810
    %v1812 = vadd.f32 %v1809, 1.0
    %v1813 = vadd.f32 %v1811, 1.0
    %v1814 = vrcp.pop %v1812
    %v1815 = vmul.f32 1.0, %v1814
    %v1816 = vrcp.pop %v1813
    %v1817 = vmul.f32 1.0, %v1816
    %v1818 = vtanh.pop %v1804
    %v1819 = vtanh.pop %v1805
    %v1822 = vrot.slane %v1699, 7
    %v1823 = vrot.slane %v1700, 7
    %v1826 = vmul.f32 %v1815, %v1822
    %v1827 = vmul.f32 %v1817, %v1823
    %1830 = vrot.lane.b32.xlu0 %v1818, 64
    %v1831 = vpop.permute.xlu0 %1830
    %1832 = vrot.lane.b32.xlu0 %v1819, 64
    %v1833 = vpop.permute.xlu0 %1832
    %v1836 = vmul.f32 %v1815, %v1831
    %v1837 = vmul.f32 %v1817, %v1833
    %1840 = vrot.lane.b32.xlu0 %v1836, 32
    %v1841 = vpop.permute.xlu0 %1840
    %1842 = vrot.lane.b32.xlu0 %v1837, 32
    %v1843 = vpop.permute.xlu0 %1842
    %v1846 = vadd.f32 %v1826, %v1841
    %v1847 = vadd.f32 %v1827, %v1843
    %v1848 = vtanh.pop %v1846
    %v1849 = vtanh.pop %v1847
    %1852 = vrot.lane.b32.xlu0 %v1848, 64
    %v1853 = vpop.permute.xlu0 %1852
    %1854 = vrot.lane.b32.xlu0 %v1849, 64
    %v1855 = vpop.permute.xlu0 %1854
    %v1858 = vmul.f32 %v1815, %v1853
    %v1859 = vmul.f32 %v1817, %v1855
    %1862 = vrot.lane.b32.xlu0 %v1858, 32
    %v1863 = vpop.permute.xlu0 %1862
    %1864 = vrot.lane.b32.xlu0 %v1859, 32
    %v1865 = vpop.permute.xlu0 %1864
    %1868 = vst.msk [vmem:[#allocation2] sm:$0x4] %vm580, %v1863
    %1869 = vst.msk [vmem:[#allocation2 + $0x8] sm:$0x4] %vm580, %v1865
    %v1870 = vrot.slane %v1858, 2
    %v1871 = vrot.slane %v1859, 1
    %v1872 = vsel %vm288, %v1871, %v1870
    %1873 = vrot.lane.b32.xlu0 %v1872, 32
    %v1874 = vpop.permute.xlu0 %1873
    %v1875 = vsel %vm148, %v1874, 0
    %1877 = vmatprep.subr.mxu0 0.0
    %1878 = vmatpush1.msra.mxu0 %v1351
    %1879 = vmatprep.subr.mxu0 0.0
    %1880 = vmatpush1.msra.mxu0 %v1352
    %1881 = vmatprep.subr.mxu0 0.0
    %1882 = vmatpush1.msra.mxu0 %v1353
    %1883 = vmatprep.subr.mxu0 0.0
    %1884 = vmatpush1.msra.mxu0 %v1354
    %1885 = vmatprep.subr.mxu0 0.0
    %1886 = vmatpush1.msra.mxu0 0.0
    %1887 = vmatprep.subr.mxu0 0.0
    %1888 = vmatpush1.msra.mxu0 0.0
    %1889 = vmatprep.subr.mxu0 0.0
    %1890 = vmatpush1.msra.mxu0 0.0
    %1891 = vmatprep.subr.mxu0 0.0
    %1892 = vmatpush1.msra.mxu0 0.0
    %1893 = vmatprep.subr.mxu0 0.0
    %1894 = vmatpush1.msra.mxu0 0.0
    %1895 = vmatprep.subr.mxu0 0.0
    %1896 = vmatpush1.msra.mxu0 0.0
    %1897 = vmatprep.subr.mxu0 0.0
    %1898 = vmatpush1.msra.mxu0 0.0
    %1899 = vmatprep.subr.mxu0 0.0
    %1900 = vmatpush1.msra.mxu0 0.0
    %1901 = vmatprep.subr.mxu0 0.0
    %1902 = vmatpush1.msra.mxu0 0.0
    %1903 = vmatprep.subr.mxu0 0.0
    %1904 = vmatpush1.msra.mxu0 0.0
    %1905 = vmatprep.subr.mxu0 0.0
    %1906 = vmatpush1.msra.mxu0 0.0
    %1907 = vmatprep.subr.mxu0 0.0
    %1908 = vmatpush1.msra.mxu0 0.0
    %1909 = vmatprep.subr.mxu0 0.0
    %1910 = vmatpush1.msra.mxu0 0.0
    %1911 = vmatprep.subr.mxu0 0.0
    %1912 = vmatpush1.msra.mxu0 0.0
    %1913 = vmatprep.subr.mxu0 0.0
    %1914 = vmatpush1.msra.mxu0 0.0
    %1915 = vmatprep.subr.mxu0 0.0
    %1916 = vmatpush1.msra.mxu0 0.0
    %1917 = vmatprep.subr.mxu0 0.0
    %1918 = vmatpush1.msra.mxu0 0.0
    %1919 = vmatprep.subr.mxu0 0.0
    %1920 = vmatpush1.msra.mxu0 0.0
    %1921 = vmatprep.subr.mxu0 0.0
    %1922 = vmatpush1.msra.mxu0 0.0
    %1923 = vmatprep.subr.mxu0 0.0
    %1924 = vmatpush1.msra.mxu0 0.0
    %1925 = vmatprep.subr.mxu0 0.0
    %1926 = vmatpush1.msra.mxu0 0.0
    %1927 = vmatprep.subr.mxu0 0.0
    %1928 = vmatpush1.msra.mxu0 0.0
    %1929 = vmatprep.subr.mxu0 0.0
    %1930 = vmatpush1.msra.mxu0 0.0
    %1931 = vmatprep.subr.mxu0 0.0
    %1932 = vmatpush1.msra.mxu0 0.0
    %1933 = vmatprep.subr.mxu0 0.0
    %1934 = vmatpush1.msra.mxu0 0.0
    %1935 = vmatprep.subr.mxu0 0.0
    %1936 = vmatpush1.msra.mxu0 0.0
    %1937 = vmatprep.subr.mxu0 0.0
    %1938 = vmatpush1.msra.mxu0 0.0
    %1939 = vmatprep.subr.mxu0 0.0
    %1940 = vmatpush1.msra.mxu0 0.0
    %1941 = vmatprep.mubr.f32.mxu0 0.0
    %1942 = vmatmul.mubr.f32.gmra.mrb[0].mxu0 %v1875
    %v1943 = vpop.f32.mrb[0].mxu0
    %v1944 = vadd.f32 0.0, %v1943
    %v1945 = vpop.f32.mrb[0].mxu0
    %1946 = vdwg.mxu0
    %v1948 = vrot.slane %v1944, 5
    %v1949 = vrot.slane %v1944, 6
    %v1952 = vadd.f32 %v1435, %v1948
    %v1953 = vadd.f32 %v1440, %v1949
    %v1954 = vxor.u32 %v1952, 2147483648
    %v1955 = vxor.u32 %v1953, 2147483648
    %v1956 = vmul.f32 %v1954, 1.442695
    %v1957 = vpow.pop %v1956
    %v1958 = vmul.f32 %v1955, 1.442695
    %v1959 = vpow.pop %v1958
    %v1960 = vadd.f32 %v1957, 1.0
    %v1961 = vadd.f32 %v1959, 1.0
    %v1962 = vrcp.pop %v1960
    %v1963 = vmul.f32 1.0, %v1962
    %v1964 = vrcp.pop %v1961
    %v1965 = vmul.f32 1.0, %v1964
    %v1966 = vtanh.pop %v1952
    %v1967 = vtanh.pop %v1953
    %v1970 = vrot.slane %v1846, 7
    %v1971 = vrot.slane %v1847, 7
    %v1974 = vmul.f32 %v1963, %v1970
    %v1975 = vmul.f32 %v1965, %v1971
    %1978 = vrot.lane.b32.xlu0 %v1966, 64
    %v1979 = vpop.permute.xlu0 %1978
    %1980 = vrot.lane.b32.xlu0 %v1967, 64
    %v1981 = vpop.permute.xlu0 %1980
    %v1984 = vmul.f32 %v1963, %v1979
    %v1985 = vmul.f32 %v1965, %v1981
    %1988 = vrot.lane.b32.xlu0 %v1984, 32
    %v1989 = vpop.permute.xlu0 %1988
    %1990 = vrot.lane.b32.xlu0 %v1985, 32
    %v1991 = vpop.permute.xlu0 %1990
    %v1994 = vadd.f32 %v1974, %v1989
    %v1995 = vadd.f32 %v1975, %v1991
    %v1996 = vtanh.pop %v1994
    %v1997 = vtanh.pop %v1995
    %2000 = vrot.lane.b32.xlu0 %v1996, 64
    %v2001 = vpop.permute.xlu0 %2000
    %2002 = vrot.lane.b32.xlu0 %v1997, 64
    %v2003 = vpop.permute.xlu0 %2002
    %v2006 = vmul.f32 %v1963, %v2001
    %v2007 = vmul.f32 %v1965, %v2003
    %2010 = vrot.lane.b32.xlu0 %v2006, 32
    %v2011 = vpop.permute.xlu0 %2010
    %2012 = vrot.lane.b32.xlu0 %v2007, 32
    %v2013 = vpop.permute.xlu0 %2012
    %2016 = vst.msk [vmem:[#allocation2] sm:$0x8] %vm729, %v2011
    %2017 = vst.msk [vmem:[#allocation2 + $0x8] sm:$0x8] %vm729, %v2013
    %v2018 = vrot.slane %v2006, 3
    %v2019 = vrot.slane %v2007, 2
    %v2020 = vsel %vm288, %v2019, %v2018
    %2021 = vrot.lane.b32.xlu0 %v2020, 32
    %v2022 = vpop.permute.xlu0 %2021
    %v2023 = vsel %vm148, %v2022, 0
    %2025 = vmatprep.subr.mxu0 0.0
    %2026 = vmatpush1.msra.mxu0 %v1351
    %2027 = vmatprep.subr.mxu0 0.0
    %2028 = vmatpush1.msra.mxu0 %v1352
    %2029 = vmatprep.subr.mxu0 0.0
    %2030 = vmatpush1.msra.mxu0 %v1353
    %2031 = vmatprep.subr.mxu0 0.0
    %2032 = vmatpush1.msra.mxu0 %v1354
    %2033 = vmatprep.subr.mxu0 0.0
    %2034 = vmatpush1.msra.mxu0 0.0
    %2035 = vmatprep.subr.mxu0 0.0
    %2036 = vmatpush1.msra.mxu0 0.0
    %2037 = vmatprep.subr.mxu0 0.0
    %2038 = vmatpush1.msra.mxu0 0.0
    %2039 = vmatprep.subr.mxu0 0.0
    %2040 = vmatpush1.msra.mxu0 0.0
    %2041 = vmatprep.subr.mxu0 0.0
    %2042 = vmatpush1.msra.mxu0 0.0
    %2043 = vmatprep.subr.mxu0 0.0
    %2044 = vmatpush1.msra.mxu0 0.0
    %2045 = vmatprep.subr.mxu0 0.0
    %2046 = vmatpush1.msra.mxu0 0.0
    %2047 = vmatprep.subr.mxu0 0.0
    %2048 = vmatpush1.msra.mxu0 0.0
    %2049 = vmatprep.subr.mxu0 0.0
    %2050 = vmatpush1.msra.mxu0 0.0
    %2051 = vmatprep.subr.mxu0 0.0
    %2052 = vmatpush1.msra.mxu0 0.0
    %2053 = vmatprep.subr.mxu0 0.0
    %2054 = vmatpush1.msra.mxu0 0.0
    %2055 = vmatprep.subr.mxu0 0.0
    %2056 = vmatpush1.msra.mxu0 0.0
    %2057 = vmatprep.subr.mxu0 0.0
    %2058 = vmatpush1.msra.mxu0 0.0
    %2059 = vmatprep.subr.mxu0 0.0
    %2060 = vmatpush1.msra.mxu0 0.0
    %2061 = vmatprep.subr.mxu0 0.0
    %2062 = vmatpush1.msra.mxu0 0.0
    %2063 = vmatprep.subr.mxu0 0.0
    %2064 = vmatpush1.msra.mxu0 0.0
    %2065 = vmatprep.subr.mxu0 0.0
    %2066 = vmatpush1.msra.mxu0 0.0
    %2067 = vmatprep.subr.mxu0 0.0
    %2068 = vmatpush1.msra.mxu0 0.0
    %2069 = vmatprep.subr.mxu0 0.0
    %2070 = vmatpush1.msra.mxu0 0.0
    %2071 = vmatprep.subr.mxu0 0.0
    %2072 = vmatpush1.msra.mxu0 0.0
    %2073 = vmatprep.subr.mxu0 0.0
    %2074 = vmatpush1.msra.mxu0 0.0
    %2075 = vmatprep.subr.mxu0 0.0
    %2076 = vmatpush1.msra.mxu0 0.0
    %2077 = vmatprep.subr.mxu0 0.0
    %2078 = vmatpush1.msra.mxu0 0.0
    %2079 = vmatprep.subr.mxu0 0.0
    %2080 = vmatpush1.msra.mxu0 0.0
    %2081 = vmatprep.subr.mxu0 0.0
    %2082 = vmatpush1.msra.mxu0 0.0
    %2083 = vmatprep.subr.mxu0 0.0
    %2084 = vmatpush1.msra.mxu0 0.0
    %2085 = vmatprep.subr.mxu0 0.0
    %2086 = vmatpush1.msra.mxu0 0.0
    %2087 = vmatprep.subr.mxu0 0.0
    %2088 = vmatpush1.msra.mxu0 0.0
    %2089 = vmatprep.mubr.f32.mxu0 0.0
    %2090 = vmatmul.mubr.f32.gmra.mrb[0].mxu0 %v2023
    %v2091 = vpop.f32.mrb[0].mxu0
    %v2092 = vadd.f32 0.0, %v2091
    %v2093 = vpop.f32.mrb[0].mxu0
    %2094 = vdwg.mxu0
    %v2096 = vrot.slane %v2092, 4
    %v2097 = vrot.slane %v2092, 5
    %v2100 = vadd.f32 %v1435, %v2096
    %v2101 = vadd.f32 %v1440, %v2097
    %v2102 = vxor.u32 %v2100, 2147483648
    %v2103 = vxor.u32 %v2101, 2147483648
    %v2104 = vmul.f32 %v2102, 1.442695
    %v2105 = vpow.pop %v2104
    %v2106 = vmul.f32 %v2103, 1.442695
    %v2107 = vpow.pop %v2106
    %v2108 = vadd.f32 %v2105, 1.0
    %v2109 = vadd.f32 %v2107, 1.0
    %v2110 = vrcp.pop %v2108
    %v2111 = vmul.f32 1.0, %v2110
    %v2112 = vrcp.pop %v2109
    %v2113 = vmul.f32 1.0, %v2112
    %v2114 = vtanh.pop %v2100
    %v2115 = vtanh.pop %v2101
    %v2118 = vrot.slane %v1994, 7
    %v2119 = vrot.slane %v1995, 7
    %v2122 = vmul.f32 %v2111, %v2118
    %v2123 = vmul.f32 %v2113, %v2119
    %2126 = vrot.lane.b32.xlu0 %v2114, 64
    %v2127 = vpop.permute.xlu0 %2126
    %2128 = vrot.lane.b32.xlu0 %v2115, 64
    %v2129 = vpop.permute.xlu0 %2128
    %v2132 = vmul.f32 %v2111, %v2127
    %v2133 = vmul.f32 %v2113, %v2129
    %2136 = vrot.lane.b32.xlu0 %v2132, 32
    %v2137 = vpop.permute.xlu0 %2136
    %2138 = vrot.lane.b32.xlu0 %v2133, 32
    %v2139 = vpop.permute.xlu0 %2138
    %v2142 = vadd.f32 %v2122, %v2137
    %v2143 = vadd.f32 %v2123, %v2139
    %v2144 = vtanh.pop %v2142
    %v2145 = vtanh.pop %v2143
    %2148 = vrot.lane.b32.xlu0 %v2144, 64
    %v2149 = vpop.permute.xlu0 %2148
    %2150 = vrot.lane.b32.xlu0 %v2145, 64
    %v2151 = vpop.permute.xlu0 %2150
    %v2154 = vmul.f32 %v2111, %v2149
    %v2155 = vmul.f32 %v2113, %v2151
    %2158 = vrot.lane.b32.xlu0 %v2154, 32
    %v2159 = vpop.permute.xlu0 %2158
    %2160 = vrot.lane.b32.xlu0 %v2155, 32
    %v2161 = vpop.permute.xlu0 %2160
    %2164 = vst.msk [vmem:[#allocation2] sm:$0x10] %vm878, %v2159
    %2165 = vst.msk [vmem:[#allocation2 + $0x8] sm:$0x10] %vm878, %v2161
    %v2166 = vrot.slane %v2154, 4
    %v2167 = vrot.slane %v2155, 3
    %v2168 = vsel %vm288, %v2167, %v2166
    %2169 = vrot.lane.b32.xlu0 %v2168, 32
    %v2170 = vpop.permute.xlu0 %2169
    %v2171 = vsel %vm148, %v2170, 0
    %2173 = vmatprep.subr.mxu0 0.0
    %2174 = vmatpush1.msra.mxu0 %v1351
    %2175 = vmatprep.subr.mxu0 0.0
    %2176 = vmatpush1.msra.mxu0 %v1352
    %2177 = vmatprep.subr.mxu0 0.0
    %2178 = vmatpush1.msra.mxu0 %v1353
    %2179 = vmatprep.subr.mxu0 0.0
    %2180 = vmatpush1.msra.mxu0 %v1354
    %2181 = vmatprep.subr.mxu0 0.0
    %2182 = vmatpush1.msra.mxu0 0.0
    %2183 = vmatprep.subr.mxu0 0.0
    %2184 = vmatpush1.msra.mxu0 0.0
    %2185 = vmatprep.subr.mxu0 0.0
    %2186 = vmatpush1.msra.mxu0 0.0
    %2187 = vmatprep.subr.mxu0 0.0
    %2188 = vmatpush1.msra.mxu0 0.0
    %2189 = vmatprep.subr.mxu0 0.0
    %2190 = vmatpush1.msra.mxu0 0.0
    %2191 = vmatprep.subr.mxu0 0.0
    %2192 = vmatpush1.msra.mxu0 0.0
    %2193 = vmatprep.subr.mxu0 0.0
    %2194 = vmatpush1.msra.mxu0 0.0
    %2195 = vmatprep.subr.mxu0 0.0
    %2196 = vmatpush1.msra.mxu0 0.0
    %2197 = vmatprep.subr.mxu0 0.0
    %2198 = vmatpush1.msra.mxu0 0.0
    %2199 = vmatprep.subr.mxu0 0.0
    %2200 = vmatpush1.msra.mxu0 0.0
    %2201 = vmatprep.subr.mxu0 0.0
    %2202 = vmatpush1.msra.mxu0 0.0
    %2203 = vmatprep.subr.mxu0 0.0
    %2204 = vmatpush1.msra.mxu0 0.0
    %2205 = vmatprep.subr.mxu0 0.0
    %2206 = vmatpush1.msra.mxu0 0.0
    %2207 = vmatprep.subr.mxu0 0.0
    %2208 = vmatpush1.msra.mxu0 0.0
    %2209 = vmatprep.subr.mxu0 0.0
    %2210 = vmatpush1.msra.mxu0 0.0
    %2211 = vmatprep.subr.mxu0 0.0
    %2212 = vmatpush1.msra.mxu0 0.0
    %2213 = vmatprep.subr.mxu0 0.0
    %2214 = vmatpush1.msra.mxu0 0.0
    %2215 = vmatprep.subr.mxu0 0.0
    %2216 = vmatpush1.msra.mxu0 0.0
    %2217 = vmatprep.subr.mxu0 0.0
    %2218 = vmatpush1.msra.mxu0 0.0
    %2219 = vmatprep.subr.mxu0 0.0
    %2220 = vmatpush1.msra.mxu0 0.0
    %2221 = vmatprep.subr.mxu0 0.0
    %2222 = vmatpush1.msra.mxu0 0.0
    %2223 = vmatprep.subr.mxu0 0.0
    %2224 = vmatpush1.msra.mxu0 0.0
    %2225 = vmatprep.subr.mxu0 0.0
    %2226 = vmatpush1.msra.mxu0 0.0
    %2227 = vmatprep.subr.mxu0 0.0
    %2228 = vmatpush1.msra.mxu0 0.0
    %2229 = vmatprep.subr.mxu0 0.0
    %2230 = vmatpush1.msra.mxu0 0.0
    %2231 = vmatprep.subr.mxu0 0.0
    %2232 = vmatpush1.msra.mxu0 0.0
    %2233 = vmatprep.subr.mxu0 0.0
    %2234 = vmatpush1.msra.mxu0 0.0
    %2235 = vmatprep.subr.mxu0 0.0
    %2236 = vmatpush1.msra.mxu0 0.0
    %2237 = vmatprep.mubr.f32.mxu0 0.0
    %2238 = vmatmul.mubr.f32.gmra.mrb[0].mxu0 %v2171
    %v2239 = vpop.f32.mrb[0].mxu0
    %v2240 = vadd.f32 0.0, %v2239
    %v2241 = vpop.f32.mrb[0].mxu0
    %2242 = vdwg.mxu0
    %v2244 = vrot.slane %v2240, 3
    %v2245 = vrot.slane %v2240, 4
    %v2248 = vadd.f32 %v1435, %v2244
    %v2249 = vadd.f32 %v1440, %v2245
    %v2250 = vxor.u32 %v2248, 2147483648
    %v2251 = vxor.u32 %v2249, 2147483648
    %v2252 = vmul.f32 %v2250, 1.442695
    %v2253 = vpow.pop %v2252
    %v2254 = vmul.f32 %v2251, 1.442695
    %v2255 = vpow.pop %v2254
    %v2256 = vadd.f32 %v2253, 1.0
    %v2257 = vadd.f32 %v2255, 1.0
    %v2258 = vrcp.pop %v2256
    %v2259 = vmul.f32 1.0, %v2258
    %v2260 = vrcp.pop %v2257
    %v2261 = vmul.f32 1.0, %v2260
    %v2262 = vtanh.pop %v2248
    %v2263 = vtanh.pop %v2249
    %v2266 = vrot.slane %v2142, 7
    %v2267 = vrot.slane %v2143, 7
    %v2270 = vmul.f32 %v2259, %v2266
    %v2271 = vmul.f32 %v2261, %v2267
    %2274 = vrot.lane.b32.xlu0 %v2262, 64
    %v2275 = vpop.permute.xlu0 %2274
    %2276 = vrot.lane.b32.xlu0 %v2263, 64
    %v2277 = vpop.permute.xlu0 %2276
    %v2280 = vmul.f32 %v2259, %v2275
    %v2281 = vmul.f32 %v2261, %v2277
    %2284 = vrot.lane.b32.xlu0 %v2280, 32
    %v2285 = vpop.permute.xlu0 %2284
    %2286 = vrot.lane.b32.xlu0 %v2281, 32
    %v2287 = vpop.permute.xlu0 %2286
    %v2290 = vadd.f32 %v2270, %v2285
    %v2291 = vadd.f32 %v2271, %v2287
    %v2292 = vtanh.pop %v2290
    %v2293 = vtanh.pop %v2291
    %2296 = vrot.lane.b32.xlu0 %v2292, 64
    %v2297 = vpop.permute.xlu0 %2296
    %2298 = vrot.lane.b32.xlu0 %v2293, 64
    %v2299 = vpop.permute.xlu0 %2298
    %v2302 = vmul.f32 %v2259, %v2297
    %v2303 = vmul.f32 %v2261, %v2299
    %2306 = vrot.lane.b32.xlu0 %v2302, 32
    %v2307 = vpop.permute.xlu0 %2306
    %2308 = vrot.lane.b32.xlu0 %v2303, 32
    %v2309 = vpop.permute.xlu0 %2308
    %2312 = vst.msk [vmem:[#allocation2] sm:$0x20] %vm1027, %v2307
    %2313 = vst.msk [vmem:[#allocation2 + $0x8] sm:$0x20] %vm1027, %v2309
    %v2314 = vrot.slane %v2302, 5
    %v2315 = vrot.slane %v2303, 4
    %v2316 = vsel %vm288, %v2315, %v2314
    %2317 = vrot.lane.b32.xlu0 %v2316, 32
    %v2318 = vpop.permute.xlu0 %2317
    %v2319 = vsel %vm148, %v2318, 0
    %2321 = vmatprep.subr.mxu0 0.0
    %2322 = vmatpush1.msra.mxu0 %v1351
    %2323 = vmatprep.subr.mxu0 0.0
    %2324 = vmatpush1.msra.mxu0 %v1352
    %2325 = vmatprep.subr.mxu0 0.0
    %2326 = vmatpush1.msra.mxu0 %v1353
    %2327 = vmatprep.subr.mxu0 0.0
    %2328 = vmatpush1.msra.mxu0 %v1354
    %2329 = vmatprep.subr.mxu0 0.0
    %2330 = vmatpush1.msra.mxu0 0.0
    %2331 = vmatprep.subr.mxu0 0.0
    %2332 = vmatpush1.msra.mxu0 0.0
    %2333 = vmatprep.subr.mxu0 0.0
    %2334 = vmatpush1.msra.mxu0 0.0
    %2335 = vmatprep.subr.mxu0 0.0
    %2336 = vmatpush1.msra.mxu0 0.0
    %2337 = vmatprep.subr.mxu0 0.0
    %2338 = vmatpush1.msra.mxu0 0.0
    %2339 = vmatprep.subr.mxu0 0.0
    %2340 = vmatpush1.msra.mxu0 0.0
    %2341 = vmatprep.subr.mxu0 0.0
    %2342 = vmatpush1.msra.mxu0 0.0
    %2343 = vmatprep.subr.mxu0 0.0
    %2344 = vmatpush1.msra.mxu0 0.0
    %2345 = vmatprep.subr.mxu0 0.0
    %2346 = vmatpush1.msra.mxu0 0.0
    %2347 = vmatprep.subr.mxu0 0.0
    %2348 = vmatpush1.msra.mxu0 0.0
    %2349 = vmatprep.subr.mxu0 0.0
    %2350 = vmatpush1.msra.mxu0 0.0
    %2351 = vmatprep.subr.mxu0 0.0
    %2352 = vmatpush1.msra.mxu0 0.0
    %2353 = vmatprep.subr.mxu0 0.0
    %2354 = vmatpush1.msra.mxu0 0.0
    %2355 = vmatprep.subr.mxu0 0.0
    %2356 = vmatpush1.msra.mxu0 0.0
    %2357 = vmatprep.subr.mxu0 0.0
    %2358 = vmatpush1.msra.mxu0 0.0
    %2359 = vmatprep.subr.mxu0 0.0
    %2360 = vmatpush1.msra.mxu0 0.0
    %2361 = vmatprep.subr.mxu0 0.0
    %2362 = vmatpush1.msra.mxu0 0.0
    %2363 = vmatprep.subr.mxu0 0.0
    %2364 = vmatpush1.msra.mxu0 0.0
    %2365 = vmatprep.subr.mxu0 0.0
    %2366 = vmatpush1.msra.mxu0 0.0
    %2367 = vmatprep.subr.mxu0 0.0
    %2368 = vmatpush1.msra.mxu0 0.0
    %2369 = vmatprep.subr.mxu0 0.0
    %2370 = vmatpush1.msra.mxu0 0.0
    %2371 = vmatprep.subr.mxu0 0.0
    %2372 = vmatpush1.msra.mxu0 0.0
    %2373 = vmatprep.subr.mxu0 0.0
    %2374 = vmatpush1.msra.mxu0 0.0
    %2375 = vmatprep.subr.mxu0 0.0
    %2376 = vmatpush1.msra.mxu0 0.0
    %2377 = vmatprep.subr.mxu0 0.0
    %2378 = vmatpush1.msra.mxu0 0.0
    %2379 = vmatprep.subr.mxu0 0.0
    %2380 = vmatpush1.msra.mxu0 0.0
    %2381 = vmatprep.subr.mxu0 0.0
    %2382 = vmatpush1.msra.mxu0 0.0
    %2383 = vmatprep.subr.mxu0 0.0
    %2384 = vmatpush1.msra.mxu0 0.0
    %2385 = vmatprep.mubr.f32.mxu0 0.0
    %2386 = vmatmul.mubr.f32.gmra.mrb[0].mxu0 %v2319
    %v2387 = vpop.f32.mrb[0].mxu0
    %v2388 = vadd.f32 0.0, %v2387
    %v2389 = vpop.f32.mrb[0].mxu0
    %2390 = vdwg.mxu0
    %v2392 = vrot.slane %v2388, 2
    %v2393 = vrot.slane %v2388, 3
    %v2396 = vadd.f32 %v1435, %v2392
    %v2397 = vadd.f32 %v1440, %v2393
    %v2398 = vxor.u32 %v2396, 2147483648
    %v2399 = vxor.u32 %v2397, 2147483648
    %v2400 = vmul.f32 %v2398, 1.442695
    %v2401 = vpow.pop %v2400
    %v2402 = vmul.f32 %v2399, 1.442695
    %v2403 = vpow.pop %v2402
    %v2404 = vadd.f32 %v2401, 1.0
    %v2405 = vadd.f32 %v2403, 1.0
    %v2406 = vrcp.pop %v2404
    %v2407 = vmul.f32 1.0, %v2406
    %v2408 = vrcp.pop %v2405
    %v2409 = vmul.f32 1.0, %v2408
    %v2410 = vtanh.pop %v2396
    %v2411 = vtanh.pop %v2397
    %v2414 = vrot.slane %v2290, 7
    %v2415 = vrot.slane %v2291, 7
    %v2418 = vmul.f32 %v2407, %v2414
    %v2419 = vmul.f32 %v2409, %v2415
    %2422 = vrot.lane.b32.xlu0 %v2410, 64
    %v2423 = vpop.permute.xlu0 %2422
    %2424 = vrot.lane.b32.xlu0 %v2411, 64
    %v2425 = vpop.permute.xlu0 %2424
    %v2428 = vmul.f32 %v2407, %v2423
    %v2429 = vmul.f32 %v2409, %v2425
    %2432 = vrot.lane.b32.xlu0 %v2428, 32
    %v2433 = vpop.permute.xlu0 %2432
    %2434 = vrot.lane.b32.xlu0 %v2429, 32
    %v2435 = vpop.permute.xlu0 %2434
    %v2438 = vadd.f32 %v2418, %v2433
    %v2439 = vadd.f32 %v2419, %v2435
    %v2440 = vtanh.pop %v2438
    %v2441 = vtanh.pop %v2439
    %2444 = vrot.lane.b32.xlu0 %v2440, 64
    %v2445 = vpop.permute.xlu0 %2444
    %2446 = vrot.lane.b32.xlu0 %v2441, 64
    %v2447 = vpop.permute.xlu0 %2446
    %v2450 = vmul.f32 %v2407, %v2445
    %v2451 = vmul.f32 %v2409, %v2447
    %2454 = vrot.lane.b32.xlu0 %v2450, 32
    %v2455 = vpop.permute.xlu0 %2454
    %2456 = vrot.lane.b32.xlu0 %v2451, 32
    %v2457 = vpop.permute.xlu0 %2456
    %2460 = vst.msk [vmem:[#allocation2] sm:$0x40] %vm1176, %v2455
    %2461 = vst.msk [vmem:[#allocation2 + $0x8] sm:$0x40] %vm1176, %v2457
    %v2462 = vrot.slane %v2450, 6
    %v2463 = vrot.slane %v2451, 5
    %v2464 = vsel %vm288, %v2463, %v2462
    %2465 = vrot.lane.b32.xlu0 %v2464, 32
    %v2466 = vpop.permute.xlu0 %2465
    %v2467 = vsel %vm148, %v2466, 0
    %2469 = vmatprep.subr.mxu0 0.0
    %2470 = vmatpush1.msra.mxu0 %v1351
    %2471 = vmatprep.subr.mxu0 0.0
    %2472 = vmatpush1.msra.mxu0 %v1352
    %2473 = vmatprep.subr.mxu0 0.0
    %2474 = vmatpush1.msra.mxu0 %v1353
    %2475 = vmatprep.subr.mxu0 0.0
    %2476 = vmatpush1.msra.mxu0 %v1354
    %2477 = vmatprep.subr.mxu0 0.0
    %2478 = vmatpush1.msra.mxu0 0.0
    %2479 = vmatprep.subr.mxu0 0.0
    %2480 = vmatpush1.msra.mxu0 0.0
    %2481 = vmatprep.subr.mxu0 0.0
    %2482 = vmatpush1.msra.mxu0 0.0
    %2483 = vmatprep.subr.mxu0 0.0
    %2484 = vmatpush1.msra.mxu0 0.0
    %2485 = vmatprep.subr.mxu0 0.0
    %2486 = vmatpush1.msra.mxu0 0.0
    %2487 = vmatprep.subr.mxu0 0.0
    %2488 = vmatpush1.msra.mxu0 0.0
    %2489 = vmatprep.subr.mxu0 0.0
    %2490 = vmatpush1.msra.mxu0 0.0
    %2491 = vmatprep.subr.mxu0 0.0
    %2492 = vmatpush1.msra.mxu0 0.0
    %2493 = vmatprep.subr.mxu0 0.0
    %2494 = vmatpush1.msra.mxu0 0.0
    %2495 = vmatprep.subr.mxu0 0.0
    %2496 = vmatpush1.msra.mxu0 0.0
    %2497 = vmatprep.subr.mxu0 0.0
    %2498 = vmatpush1.msra.mxu0 0.0
    %2499 = vmatprep.subr.mxu0 0.0
    %2500 = vmatpush1.msra.mxu0 0.0
    %2501 = vmatprep.subr.mxu0 0.0
    %2502 = vmatpush1.msra.mxu0 0.0
    %2503 = vmatprep.subr.mxu0 0.0
    %2504 = vmatpush1.msra.mxu0 0.0
    %2505 = vmatprep.subr.mxu0 0.0
    %2506 = vmatpush1.msra.mxu0 0.0
    %2507 = vmatprep.subr.mxu0 0.0
    %2508 = vmatpush1.msra.mxu0 0.0
    %2509 = vmatprep.subr.mxu0 0.0
    %2510 = vmatpush1.msra.mxu0 0.0
    %2511 = vmatprep.subr.mxu0 0.0
    %2512 = vmatpush1.msra.mxu0 0.0
    %2513 = vmatprep.subr.mxu0 0.0
    %2514 = vmatpush1.msra.mxu0 0.0
    %2515 = vmatprep.subr.mxu0 0.0
    %2516 = vmatpush1.msra.mxu0 0.0
    %2517 = vmatprep.subr.mxu0 0.0
    %2518 = vmatpush1.msra.mxu0 0.0
    %2519 = vmatprep.subr.mxu0 0.0
    %2520 = vmatpush1.msra.mxu0 0.0
    %2521 = vmatprep.subr.mxu0 0.0
    %2522 = vmatpush1.msra.mxu0 0.0
    %2523 = vmatprep.subr.mxu0 0.0
    %2524 = vmatpush1.msra.mxu0 0.0
    %2525 = vmatprep.subr.mxu0 0.0
    %2526 = vmatpush1.msra.mxu0 0.0
    %2527 = vmatprep.subr.mxu0 0.0
    %2528 = vmatpush1.msra.mxu0 0.0
    %2529 = vmatprep.subr.mxu0 0.0
    %2530 = vmatpush1.msra.mxu0 0.0
    %2531 = vmatprep.subr.mxu0 0.0
    %2532 = vmatpush1.msra.mxu0 0.0
    %2533 = vmatprep.mubr.f32.mxu0 0.0
    %2534 = vmatmul.mubr.f32.gmra.mrb[0].mxu0 %v2467
    %v2535 = vpop.f32.mrb[0].mxu0
    %v2536 = vadd.f32 0.0, %v2535
    %v2537 = vpop.f32.mrb[0].mxu0
    %2538 = vdwg.mxu0
    %v2540 = vrot.slane %v2536, 1
    %v2541 = vrot.slane %v2536, 2
    %v2544 = vadd.f32 %v1435, %v2540
    %v2545 = vadd.f32 %v1440, %v2541
    %v2546 = vxor.u32 %v2544, 2147483648
    %v2547 = vxor.u32 %v2545, 2147483648
    %v2548 = vmul.f32 %v2546, 1.442695
    %v2549 = vpow.pop %v2548
    %v2550 = vmul.f32 %v2547, 1.442695
    %v2551 = vpow.pop %v2550
    %v2552 = vadd.f32 %v2549, 1.0
    %v2553 = vadd.f32 %v2551, 1.0
    %v2554 = vrcp.pop %v2552
    %v2555 = vmul.f32 1.0, %v2554
    %v2556 = vrcp.pop %v2553
    %v2557 = vmul.f32 1.0, %v2556
    %v2558 = vtanh.pop %v2544
    %v2559 = vtanh.pop %v2545
    %v2562 = vrot.slane %v2438, 7
    %v2563 = vrot.slane %v2439, 7
    %v2566 = vmul.f32 %v2555, %v2562
    %v2567 = vmul.f32 %v2557, %v2563
    %2570 = vrot.lane.b32.xlu0 %v2558, 64
    %v2571 = vpop.permute.xlu0 %2570
    %2572 = vrot.lane.b32.xlu0 %v2559, 64
    %v2573 = vpop.permute.xlu0 %2572
    %v2576 = vmul.f32 %v2555, %v2571
    %v2577 = vmul.f32 %v2557, %v2573
    %2580 = vrot.lane.b32.xlu0 %v2576, 32
    %v2581 = vpop.permute.xlu0 %2580
    %2582 = vrot.lane.b32.xlu0 %v2577, 32
    %v2583 = vpop.permute.xlu0 %2582
    %v2586 = vadd.f32 %v2566, %v2581
    %v2587 = vadd.f32 %v2567, %v2583
    %v2588 = vtanh.pop %v2586
    %v2589 = vtanh.pop %v2587
    %2592 = vrot.lane.b32.xlu0 %v2588, 64
    %v2593 = vpop.permute.xlu0 %2592
    %2594 = vrot.lane.b32.xlu0 %v2589, 64
    %v2595 = vpop.permute.xlu0 %2594
    %v2598 = vmul.f32 %v2555, %v2593
    %v2599 = vmul.f32 %v2557, %v2595
    %2602 = vrot.lane.b32.xlu0 %v2598, 32
    %v2603 = vpop.permute.xlu0 %2602
    %2604 = vrot.lane.b32.xlu0 %v2599, 32
    %v2605 = vpop.permute.xlu0 %2604
    %2608 = vst.msk [vmem:[#allocation2] sm:$0x80] %vm1325, %v2603
    %2609 = vst.msk [vmem:[#allocation2 + $0x8] sm:$0x80] %vm1325, %v2605
    %v2610 = vrot.slane %v2599, 7
    %2611 = vrot.lane.b32.xlu0 %v2610, 32
    %v2612 = vpop.permute.xlu0 %2611
    %s2614 = scalar_lea.vmem [#allocation7], 2
    %2615 = vst.msk [vmem:[%s2614 - $0x7] sm:$0x80] %vm1325, %v2603
    %2616 = vst.msk [vmem:[%s2614 + $0x1] sm:$0x1] %vm284, %v2612
    %v2619 = vrot.slane %v2587, 7
    %2620 = vrot.lane.b32.xlu0 %v2586, 96
    %v2621 = vpop.permute.xlu0 %2620
    %2622 = vrot.lane.b32.xlu0 %v2619, 96
    %v2623 = vpop.permute.xlu0 %2622
    %s2626 = scalar_lea.vmem [#allocation9], 2
    %2627 = vst.msk [vmem:[%s2626 - $0x7] sm:$0x80] %vm1325, %v2621
    %2628 = vst.msk [vmem:[%s2626 + $0x1] sm:$0x1] %vm284, %v2623
    %v2629 = vld [vmem:[#allocation2] sm:$0xff]
    %v2630 = vld [vmem:[#allocation2 + $0x8] sm:$0xff]
    %v2631 = vld [vmem:[%s7] sm:$0xff]
    %v2632 = vld [vmem:[%s7 + $0x8] sm:$0xff]
    %v2633 = vld [vmem:[%s7 + $0x10] sm:$0xff]
    %v2634 = vld [vmem:[%s7 + $0x18] sm:$0xff]
    %v2635 = vld [vmem:[%s8] sm:$0x1]
    %v2637 = vlaneseq
    %v2638 = vshrl.u32 %v2637, 7
    %v2639 = vsub.s32 0, %v2638
    %v2640 = vrot.slane %v2635, %v2639
    %v2643 = vsel %vm148, %v2629, 0
    %v2646 = vsel %vm148, %v2630, 0
    %2648 = vmatprep.subr.mxu0 0.0
    %2649 = vmatpush1.msra.mxu0 %v2631
    %2650 = vmatprep.subr.mxu0 0.0
    %2651 = vmatpush1.msra.mxu0 %v2632
    %2652 = vmatprep.subr.mxu0 0.0
    %2653 = vmatpush1.msra.mxu0 %v2633
    %2654 = vmatprep.subr.mxu0 0.0
    %2655 = vmatpush1.msra.mxu0 %v2634
    %2656 = vmatprep.subr.mxu0 0.0
    %2657 = vmatpush1.msra.mxu0 0.0
    %2658 = vmatprep.subr.mxu0 0.0
    %2659 = vmatpush1.msra.mxu0 0.0
    %2660 = vmatprep.subr.mxu0 0.0
    %2661 = vmatpush1.msra.mxu0 0.0
    %2662 = vmatprep.subr.mxu0 0.0
    %2663 = vmatpush1.msra.mxu0 0.0
    %2664 = vmatprep.subr.mxu0 0.0
    %2665 = vmatpush1.msra.mxu0 0.0
    %2666 = vmatprep.subr.mxu0 0.0
    %2667 = vmatpush1.msra.mxu0 0.0
    %2668 = vmatprep.subr.mxu0 0.0
    %2669 = vmatpush1.msra.mxu0 0.0
    %2670 = vmatprep.subr.mxu0 0.0
    %2671 = vmatpush1.msra.mxu0 0.0
    %2672 = vmatprep.subr.mxu0 0.0
    %2673 = vmatpush1.msra.mxu0 0.0
    %2674 = vmatprep.subr.mxu0 0.0
    %2675 = vmatpush1.msra.mxu0 0.0
    %2676 = vmatprep.subr.mxu0 0.0
    %2677 = vmatpush1.msra.mxu0 0.0
    %2678 = vmatprep.subr.mxu0 0.0
    %2679 = vmatpush1.msra.mxu0 0.0
    %2680 = vmatprep.subr.mxu0 0.0
    %2681 = vmatpush1.msra.mxu0 0.0
    %2682 = vmatprep.subr.mxu0 0.0
    %2683 = vmatpush1.msra.mxu0 0.0
    %2684 = vmatprep.subr.mxu0 0.0
    %2685 = vmatpush1.msra.mxu0 0.0
    %2686 = vmatprep.subr.mxu0 0.0
    %2687 = vmatpush1.msra.mxu0 0.0
    %2688 = vmatprep.subr.mxu0 0.0
    %2689 = vmatpush1.msra.mxu0 0.0
    %2690 = vmatprep.subr.mxu0 0.0
    %2691 = vmatpush1.msra.mxu0 0.0
    %2692 = vmatprep.subr.mxu0 0.0
    %2693 = vmatpush1.msra.mxu0 0.0
    %2694 = vmatprep.subr.mxu0 0.0
    %2695 = vmatpush1.msra.mxu0 0.0
    %2696 = vmatprep.subr.mxu0 0.0
    %2697 = vmatpush1.msra.mxu0 0.0
    %2698 = vmatprep.subr.mxu0 0.0
    %2699 = vmatpush1.msra.mxu0 0.0
    %2700 = vmatprep.subr.mxu0 0.0
    %2701 = vmatpush1.msra.mxu0 0.0
    %2702 = vmatprep.subr.mxu0 0.0
    %2703 = vmatpush1.msra.mxu0 0.0
    %2704 = vmatprep.subr.mxu0 0.0
    %2705 = vmatpush1.msra.mxu0 0.0
    %2706 = vmatprep.subr.mxu0 0.0
    %2707 = vmatpush1.msra.mxu0 0.0
    %2708 = vmatprep.subr.mxu0 0.0
    %2709 = vmatpush1.msra.mxu0 0.0
    %2710 = vmatprep.subr.mxu0 0.0
    %2711 = vmatpush1.msra.mxu0 0.0
    %2712 = vmatprep.mubr.f32.mxu0 0.0
    %2713 = vmatmul.mubr.f32.gmra.mrb[0].mxu0 %v2643
    %v2714 = vpop.f32.mrb[0].mxu0
    %v2715 = vadd.f32 %v2640, %v2714
    %v2716 = vpop.f32.mrb[0].mxu0
    %2717 = vmatprep.mubr.f32.mxu0 0.0
    %2718 = vmatmul.mubr.f32.gmra.mrb[0].mxu0 %v2646
    %v2719 = vpop.f32.mrb[0].mxu0
    %v2720 = vadd.f32 %v2640, %v2719
    %v2721 = vpop.f32.mrb[0].mxu0
    %2722 = vdwg.mxu0
    %2723 = vst.msk [vmem:[#allocation6] sm:$0xff] %vm66, %v2715
    %2724 = vst.msk [vmem:[#allocation6 + $0x8] sm:$0xff] %vm66, %v2720
    // Predicated region
    $region42: #{my_model_forward.1} parent=1 // pred_check
      _
    $region43: #{my_model_forward.1} parent=1 // pred_check_branch
      %2726 = sbr.rel (0) target = $region45
    $region44: #{my_model_forward.1} parent=1 // pred_region
      %s2728 = ssub.s32 256, 256
      %2729 = vsyncadd [#allocation5], %s2728
      %s2730 = sshll.u32 [#allocation6], 4
      %s2731 = int_to_ptr.vmem [resolvable:$true] %s2730
      %2736 = dma.vmem_to_hbm [thread:$0]  %s2731, 256, %s9, [#allocation5], 128, 128, 8
    $region45: #{my_model_forward.1} parent=1 // pred_fallthru
      _
    // Predicated region
    $region46: #{my_model_forward.1} parent=1 // pred_check
      _
    $region47: #{my_model_forward.1} parent=1 // pred_check_branch
      %2738 = sbr.rel (0) target = $region49
    $region48: #{my_model_forward.1} parent=1 // pred_region
      %s2740 = ssub.s32 64, 64
      %2741 = vsyncadd [#allocation8], %s2740
      %s2742 = sshll.u32 [#allocation7], 4
      %s2743 = int_to_ptr.vmem [resolvable:$true] %s2742
      %2748 = dma.vmem_to_hbm [thread:$0]  %s2743, 64, %s10, [#allocation8], 32, 32, 2
    $region49: #{my_model_forward.1} parent=1 // pred_fallthru
      _
    // Predicated region
    $region50: #{my_model_forward.1} parent=1 // pred_check
      _
    $region51: #{my_model_forward.1} parent=1 // pred_check_branch
      %2750 = sbr.rel (0) target = $region53
    $region52: #{my_model_forward.1} parent=1 // pred_region
      %s2752 = ssub.s32 64, 64
      %2753 = vsyncadd [#allocation8], %s2752
      %s2754 = sshll.u32 [#allocation9], 4
      %s2755 = int_to_ptr.vmem [resolvable:$true] %s2754
      %2760 = dma.vmem_to_hbm [thread:$0]  %s2755, 64, %s11, [#allocation8], 32, 32, 2
    $region53: #{my_model_forward.1} parent=1 // pred_fallthru
      _
    // Predicated region
    $region54: #{my_model_forward.1} parent=1 // pred_check
      _
    $region55: #{my_model_forward.1} parent=1 // pred_check_branch
      %2762 = sbr.rel (0) target = $region57
    $region56: #{my_model_forward.1} parent=1 // pred_region
      %2763 = dma.done [#allocation5], 256
    $region57: #{my_model_forward.1} parent=1 // pred_fallthru
      _
    // Predicated region
    $region58: #{my_model_forward.1} parent=1 // pred_check
      _
    $region59: #{my_model_forward.1} parent=1 // pred_check_branch
      %2765 = sbr.rel (0) target = $region61
    $region60: #{my_model_forward.1} parent=1 // pred_region
      %2766 = dma.done [#allocation8], 64
    $region61: #{my_model_forward.1} parent=1 // pred_fallthru
      _
    // Predicated region
    $region62: #{my_model_forward.1} parent=1 // pred_check
      _
    $region63: #{my_model_forward.1} parent=1 // pred_check_branch
      %2768 = sbr.rel (0) target = $region65
    $region64: #{my_model_forward.1} parent=1 // pred_region
      %2769 = dma.done [#allocation8], 64
    $region65: #{my_model_forward.1} parent=1 // pred_fallthru
      _
    %2770 = vsyncpa [#allocation4], 1
    %2771 = vsyncpa [#allocation5], 1
    %2772 = vsyncpa [#allocation8], 1

</llo_original>
